<compile_context>
chip_gen: v7x
topology: tpu7x:2x2x1
jax: 0.10.0
libtpu: 0.0.40
codegen_flags: <defaults>
</compile_context>

<pallas_src>
import jax
import jax.numpy as jnp
from jax.experimental import pallas as pl
from jax.experimental.pallas import tpu as pltpu

IN_FEATURES = 196608   # fixed by the module's __init__
OUT_FEATURES = 10

_LANE = 128   # lane width of a vreg
_CH = 8       # sublanes per inner micro-chunk: one (8, 128) f32 vreg


def linear_kernel(x_ref, w_ref, b_ref, o_ref, acc_ref):
    """Accumulates per-lane partial sums of x . w^T over the K grid axis.

    x_ref:   (B, tkc, 128) f32 — K tile of the input, lane-dense
    w_ref:   (N, tkc, 128) f32 — K tile of the weight (native PyTorch (N, K))
    b_ref:   (1, N)        f32 — bias (VMEM resident, tiny)
    o_ref:   (B, N)        f32 — output (written once, at the last K step)
    acc_ref: (B, N, 8, 128) f32 scratch — per-(b, n) lane/sublane accumulators
    """
    c = pl.program_id(0)                      # TensorCore split index
    k = pl.program_id(1)                      # K-reduction step

    @pl.when(k == 0)
    def _init():
        acc_ref[...] = jnp.zeros_like(acc_ref)

    B, tkc, _ = x_ref.shape
    N = w_ref.shape[0]
    n_inner = tkc // _CH

    # Pull the 20 accumulators into registers, sweep the whole tile with VPU
    # mul+add (exact f32, no MXU/XLU involvement), write back once per step.
    accs = [[acc_ref[b, n] for n in range(N)] for b in range(B)]
    for i in range(n_inner):
        lo = i * _CH
        xb = [x_ref[b, lo:lo + _CH, :] for b in range(B)]      # B x (8, 128)
        for n in range(N):
            ws = w_ref[n, lo:lo + _CH, :]                      # (8, 128)
            for b in range(B):
                accs[b][n] = accs[b][n] + xb[b] * ws
    for b in range(B):
        for n in range(N):
            acc_ref[b, n] = accs[b][n]

    @pl.when(k == pl.num_programs(1) - 1)
    def _finalize():
        tot = acc_ref[...]                     # (B, N, 8, 128)
        part = jnp.sum(tot, axis=2)            # (B, N, 128)  sublane reduce
        res = jnp.sum(part, axis=-1)           # (B, N)       lane reduce
        # Only the c == 0 partial carries the bias (covers core_splits == 1
        # and the v7x two-TensorCore split without a separate code path).
        res = res + (c == 0).astype(jnp.float32) * b_ref[...]
        o_ref[...] = res.astype(o_ref.dtype)


def _tpu_defaults():
    """(tk, core_splits) tuned per TPU generation."""
    try:
        kind = jax.devices()[0].device_kind.lower()
    except Exception:  # pragma: no cover - detection is best-effort only
        kind = ""
    if "v7" in kind:
        return 49152, 2     # 2 TensorCores share the K reduction, 2 steps each
    if "v6" in kind:
        return 49152, 1     # 4 grid steps, ~4.6 MiB double-buffered VMEM
    return 24576, 1         # v5e / anything else: 8 steps, ~2.4 MiB


def linear_forward(x, weight, bias, *, tk=None, core_splits=None):
    """x: (B, K) f32, weight: (N, K) f32 (PyTorch layout), bias: (N,) f32."""
    B, K = x.shape
    N, K2 = weight.shape
    assert K == K2 and K % (_LANE * _CH) == 0

    dtk, dcs = _tpu_defaults()
    if tk is None:
        tk = dtk
    if core_splits is None:
        core_splits = dcs
    if K % (core_splits * tk) != 0:            # defensive fallback
        core_splits = 1
        while tk > _LANE * _CH and K % tk != 0:
            tk //= 2
    assert K % (core_splits * tk) == 0 and tk % (_LANE * _CH) == 0

    kc = K // _LANE
    tkc = tk // _LANE
    k_steps = K // (core_splits * tk)

    # Metadata-only reshapes in HBM: kernel tiles are lane-dense (.., s, 128)
    # with zero sublane-padding waste and no in-kernel relayouts.
    x3 = x.reshape(B, kc, _LANE)
    w3 = weight.reshape(N, kc, _LANE)
    b2 = bias.reshape(1, N)

    if core_splits == 1:
        out_shape = jax.ShapeDtypeStruct((B, N), jnp.float32)
        out_specs = pl.BlockSpec((B, N), lambda c, k: (0, 0))
    else:
        out_shape = jax.ShapeDtypeStruct((core_splits, B, N), jnp.float32)
        out_specs = pl.BlockSpec((None, B, N), lambda c, k: (c, 0, 0))

    partials = pl.pallas_call(
        linear_kernel,
        out_shape=out_shape,
        grid_spec=pltpu.PrefetchScalarGridSpec(
            num_scalar_prefetch=0,
            grid=(core_splits, k_steps),       # (TensorCore split, K reduction)
            in_specs=[
                pl.BlockSpec((B, tkc, _LANE), lambda c, k: (0, c * k_steps + k, 0)),
                pl.BlockSpec((N, tkc, _LANE), lambda c, k: (0, c * k_steps + k, 0)),
                pl.BlockSpec((1, N), lambda c, k: (0, 0)),
            ],
            out_specs=out_specs,
            scratch_shapes=[pltpu.VMEM((B, N, _CH, _LANE), jnp.float32)],
        ),
        compiler_params=pltpu.CompilerParams(
            dimension_semantics=("parallel", "arbitrary"),
        ),
        cost_estimate=pl.CostEstimate(
            flops=2 * B * K * N,
            transcendentals=0,
            bytes_accessed=(B * K + N * K + B * N + N) * 4,
        ),
    )(x3, w3, b2)

    if core_splits == 1:
        out = partials                          # bias already added in-kernel
    else:
        out = partials.sum(axis=0)              # bias folded into the c==0 partial
    return out.astype(x.dtype)


if __name__ == "__main__":
    key = jax.random.PRNGKey(0)
    k_x, k_w, k_b = jax.random.split(key, 3)

    batch = 2
    # Deterministic parameter init (PyTorch-style uniform(-1/sqrt(K), 1/sqrt(K))).
    bound = 1.0 / jnp.sqrt(jnp.float32(IN_FEATURES))
    weight = jax.random.uniform(
        k_w, (OUT_FEATURES, IN_FEATURES), jnp.float32, -bound, bound
    )
    bias = jax.random.uniform(k_b, (OUT_FEATURES,), jnp.float32, -bound, bound)

    x = jax.random.normal(k_x, (batch, IN_FEATURES), jnp.float32)

    out = linear_forward(x, weight, bias)
    out = jax.block_until_ready(out)

    # Correctness check against a high-precision plain-JAX reference
    # (the kernel accumulates in exact f32 on the VPU).
    ref = jnp.dot(x, weight.T, precision=jax.lax.Precision.HIGHEST) + bias
    assert out.shape == (batch, OUT_FEATURES)
    assert jnp.allclose(out, ref, atol=2e-3, rtol=2e-3), "mismatch vs reference"

    print("KERNEL_OK")
</pallas_src>

<mosaic_0001>
module attributes {stable_mosaic.version = 11 : i64} {
  func.func @linear_kernel(%arg0: i32, %arg1: i32, %arg2: memref<2x192x128xf32, #tpu.memory_space<vmem>>, %arg3: memref<10x192x128xf32, #tpu.memory_space<vmem>>, %arg4: memref<1x10xf32, #tpu.memory_space<vmem>>, %arg5: memref<2x10xf32, #tpu.memory_space<vmem>>, %arg6: memref<2x10x8x128xf32, #tpu.memory_space<vmem>>) attributes {dimension_semantics = [#tpu.dimension_semantics<parallel>, #tpu.dimension_semantics<arbitrary>], iteration_bounds = array<i64: 1, 8>, scalar_prefetch = 0 : i64, scratch_operands = 1 : i64, tpu.core_type = #tpu.core_type<tc>, window_params = [{transform_indices = @transform_0, window_bounds = array<i64: 2, 192, 128>}, {transform_indices = @transform_1, window_bounds = array<i64: 10, 192, 128>}, {pipeline_mode = #tpu.pipeline_mode<synchronous>, transform_indices = @transform_2, window_bounds = array<i64: 1, 10>}, {pipeline_mode = #tpu.pipeline_mode<synchronous>, transform_indices = @transform_3, window_bounds = array<i64: 2, 10>}]} {
    %c0_i32 = arith.constant 0 : i32
    %0 = arith.cmpi eq, %arg1, %c0_i32 : i32
    %1 = arith.extui %0 : i1 to i32
    %c0_i32_0 = arith.constant 0 : i32
    %2 = arith.cmpi ne, %1, %c0_i32_0 : i32
    scf.if %2 {
      %cst = arith.constant 0.000000e+00 : f32
      %1642 = vector.broadcast %cst : f32 to vector<2x10x8x128xf32>
      %c0_994 = arith.constant 0 : index
      %c0_995 = arith.constant 0 : index
      %c0_996 = arith.constant 0 : index
      %c0_997 = arith.constant 0 : index
      %1643 = vector.load %arg6[%c0_994, %c0_995, %c0_996, %c0_997] : memref<2x10x8x128xf32, #tpu.memory_space<vmem>>, vector<2x10x8x128xf32>
      tpu.vector_store %arg6[%c0_994, %c0_995, %c0_996, %c0_997], %1642 {strides = array<i32>} : memref<2x10x8x128xf32, #tpu.memory_space<vmem>>, vector<2x10x8x128xf32>,
    } else {
    }
    %c0 = arith.constant 0 : index
    %c0_1 = arith.constant 0 : index
    %c0_2 = arith.constant 0 : index
    %c0_3 = arith.constant 0 : index
    %3 = vector.load %arg6[%c0, %c0_1, %c0_2, %c0_3] : memref<2x10x8x128xf32, #tpu.memory_space<vmem>>, vector<1x1x8x128xf32>
    %4 = vector.shape_cast %3 : vector<1x1x8x128xf32> to vector<8x128xf32>
    %c0_4 = arith.constant 0 : index
    %c1 = arith.constant 1 : index
    %c0_5 = arith.constant 0 : index
    %c0_6 = arith.constant 0 : index
    %5 = vector.load %arg6[%c0_4, %c1, %c0_5, %c0_6] : memref<2x10x8x128xf32, #tpu.memory_space<vmem>>, vector<1x1x8x128xf32>
    %6 = vector.shape_cast %5 : vector<1x1x8x128xf32> to vector<8x128xf32>
    %c0_7 = arith.constant 0 : index
    %c2 = arith.constant 2 : index
    %c0_8 = arith.constant 0 : index
    %c0_9 = arith.constant 0 : index
    %7 = vector.load %arg6[%c0_7, %c2, %c0_8, %c0_9] : memref<2x10x8x128xf32, #tpu.memory_space<vmem>>, vector<1x1x8x128xf32>
    %8 = vector.shape_cast %7 : vector<1x1x8x128xf32> to vector<8x128xf32>
    %c0_10 = arith.constant 0 : index
    %c3 = arith.constant 3 : index
    %c0_11 = arith.constant 0 : index
    %c0_12 = arith.constant 0 : index
    %9 = vector.load %arg6[%c0_10, %c3, %c0_11, %c0_12] : memref<2x10x8x128xf32, #tpu.memory_space<vmem>>, vector<1x1x8x128xf32>
    %10 = vector.shape_cast %9 : vector<1x1x8x128xf32> to vector<8x128xf32>
    %c0_13 = arith.constant 0 : index
    %c4 = arith.constant 4 : index
    %c0_14 = arith.constant 0 : index
    %c0_15 = arith.constant 0 : index
    %11 = vector.load %arg6[%c0_13, %c4, %c0_14, %c0_15] : memref<2x10x8x128xf32, #tpu.memory_space<vmem>>, vector<1x1x8x128xf32>
    %12 = vector.shape_cast %11 : vector<1x1x8x128xf32> to vector<8x128xf32>
    %c0_16 = arith.constant 0 : index
    %c5 = arith.constant 5 : index
    %c0_17 = arith.constant 0 : index
    %c0_18 = arith.constant 0 : index
    %13 = vector.load %arg6[%c0_16, %c5, %c0_17, %c0_18] : memref<2x10x8x128xf32, #tpu.memory_space<vmem>>, vector<1x1x8x128xf32>
    %14 = vector.shape_cast %13 : vector<1x1x8x128xf32> to vector<8x128xf32>
    %c0_19 = arith.constant 0 : index
    %c6 = arith.constant 6 : index
    %c0_20 = arith.constant 0 : index
    %c0_21 = arith.constant 0 : index
    %15 = vector.load %arg6[%c0_19, %c6, %c0_20, %c0_21] : memref<2x10x8x128xf32, #tpu.memory_space<vmem>>, vector<1x1x8x128xf32>
    %16 = vector.shape_cast %15 : vector<1x1x8x128xf32> to vector<8x128xf32>
    %c0_22 = arith.constant 0 : index
    %c7 = arith.constant 7 : index
    %c0_23 = arith.constant 0 : index
    %c0_24 = arith.constant 0 : index
    %17 = vector.load %arg6[%c0_22, %c7, %c0_23, %c0_24] : memref<2x10x8x128xf32, #tpu.memory_space<vmem>>, vector<1x1x8x128xf32>
    %18 = vector.shape_cast %17 : vector<1x1x8x128xf32> to vector<8x128xf32>
    %c0_25 = arith.constant 0 : index
    %c8 = arith.constant 8 : index
    %c0_26 = arith.constant 0 : index
    %c0_27 = arith.constant 0 : index
    %19 = vector.load %arg6[%c0_25, %c8, %c0_26, %c0_27] : memref<2x10x8x128xf32, #tpu.memory_space<vmem>>, vector<1x1x8x128xf32>
    %20 = vector.shape_cast %19 : vector<1x1x8x128xf32> to vector<8x128xf32>
    %c0_28 = arith.constant 0 : index
    %c9 = arith.constant 9 : index
    %c0_29 = arith.constant 0 : index
    %c0_30 = arith.constant 0 : index
    %21 = vector.load %arg6[%c0_28, %c9, %c0_29, %c0_30] : memref<2x10x8x128xf32, #tpu.memory_space<vmem>>, vector<1x1x8x128xf32>
    %22 = vector.shape_cast %21 : vector<1x1x8x128xf32> to vector<8x128xf32>
    %c1_31 = arith.constant 1 : index
    %c0_32 = arith.constant 0 : index
    %c0_33 = arith.constant 0 : index
    %c0_34 = arith.constant 0 : index
    %23 = vector.load %arg6[%c1_31, %c0_32, %c0_33, %c0_34] : memref<2x10x8x128xf32, #tpu.memory_space<vmem>>, vector<1x1x8x128xf32>
    %24 = vector.shape_cast %23 : vector<1x1x8x128xf32> to vector<8x128xf32>
    %c1_35 = arith.constant 1 : index
    %c1_36 = arith.constant 1 : index
    %c0_37 = arith.constant 0 : index
    %c0_38 = arith.constant 0 : index
    %25 = vector.load %arg6[%c1_35, %c1_36, %c0_37, %c0_38] : memref<2x10x8x128xf32, #tpu.memory_space<vmem>>, vector<1x1x8x128xf32>
    %26 = vector.shape_cast %25 : vector<1x1x8x128xf32> to vector<8x128xf32>
    %c1_39 = arith.constant 1 : index
    %c2_40 = arith.constant 2 : index
    %c0_41 = arith.constant 0 : index
    %c0_42 = arith.constant 0 : index
    %27 = vector.load %arg6[%c1_39, %c2_40, %c0_41, %c0_42] : memref<2x10x8x128xf32, #tpu.memory_space<vmem>>, vector<1x1x8x128xf32>
    %28 = vector.shape_cast %27 : vector<1x1x8x128xf32> to vector<8x128xf32>
    %c1_43 = arith.constant 1 : index
    %c3_44 = arith.constant 3 : index
    %c0_45 = arith.constant 0 : index
    %c0_46 = arith.constant 0 : index
    %29 = vector.load %arg6[%c1_43, %c3_44, %c0_45, %c0_46] : memref<2x10x8x128xf32, #tpu.memory_space<vmem>>, vector<1x1x8x128xf32>
    %30 = vector.shape_cast %29 : vector<1x1x8x128xf32> to vector<8x128xf32>
    %c1_47 = arith.constant 1 : index
    %c4_48 = arith.constant 4 : index
    %c0_49 = arith.constant 0 : index
    %c0_50 = arith.constant 0 : index
    %31 = vector.load %arg6[%c1_47, %c4_48, %c0_49, %c0_50] : memref<2x10x8x128xf32, #tpu.memory_space<vmem>>, vector<1x1x8x128xf32>
    %32 = vector.shape_cast %31 : vector<1x1x8x128xf32> to vector<8x128xf32>
    %c1_51 = arith.constant 1 : index
    %c5_52 = arith.constant 5 : index
    %c0_53 = arith.constant 0 : index
    %c0_54 = arith.constant 0 : index
    %33 = vector.load %arg6[%c1_51, %c5_52, %c0_53, %c0_54] : memref<2x10x8x128xf32, #tpu.memory_space<vmem>>, vector<1x1x8x128xf32>
    %34 = vector.shape_cast %33 : vector<1x1x8x128xf32> to vector<8x128xf32>
    %c1_55 = arith.constant 1 : index
    %c6_56 = arith.constant 6 : index
    %c0_57 = arith.constant 0 : index
    %c0_58 = arith.constant 0 : index
    %35 = vector.load %arg6[%c1_55, %c6_56, %c0_57, %c0_58] : memref<2x10x8x128xf32, #tpu.memory_space<vmem>>, vector<1x1x8x128xf32>
    %36 = vector.shape_cast %35 : vector<1x1x8x128xf32> to vector<8x128xf32>
    %c1_59 = arith.constant 1 : index
    %c7_60 = arith.constant 7 : index
    %c0_61 = arith.constant 0 : index
    %c0_62 = arith.constant 0 : index
    %37 = vector.load %arg6[%c1_59, %c7_60, %c0_61, %c0_62] : memref<2x10x8x128xf32, #tpu.memory_space<vmem>>, vector<1x1x8x128xf32>
    %38 = vector.shape_cast %37 : vector<1x1x8x128xf32> to vector<8x128xf32>
    %c1_63 = arith.constant 1 : index
    %c8_64 = arith.constant 8 : index
    %c0_65 = arith.constant 0 : index
    %c0_66 = arith.constant 0 : index
    %39 = vector.load %arg6[%c1_63, %c8_64, %c0_65, %c0_66] : memref<2x10x8x128xf32, #tpu.memory_space<vmem>>, vector<1x1x8x128xf32>
    %40 = vector.shape_cast %39 : vector<1x1x8x128xf32> to vector<8x128xf32>
    %c1_67 = arith.constant 1 : index
    %c9_68 = arith.constant 9 : index
    %c0_69 = arith.constant 0 : index
    %c0_70 = arith.constant 0 : index
    %41 = vector.load %arg6[%c1_67, %c9_68, %c0_69, %c0_70] : memref<2x10x8x128xf32, #tpu.memory_space<vmem>>, vector<1x1x8x128xf32>
    %42 = vector.shape_cast %41 : vector<1x1x8x128xf32> to vector<8x128xf32>
    %c0_71 = arith.constant 0 : index
    %c0_72 = arith.constant 0 : index
    %c0_73 = arith.constant 0 : index
    %43 = vector.load %arg2[%c0_71, %c0_72, %c0_73] : memref<2x192x128xf32, #tpu.memory_space<vmem>>, vector<1x8x128xf32>
    %44 = vector.shape_cast %43 : vector<1x8x128xf32> to vector<8x128xf32>
    %c1_74 = arith.constant 1 : index
    %c0_75 = arith.constant 0 : index
    %c0_76 = arith.constant 0 : index
    %45 = vector.load %arg2[%c1_74, %c0_75, %c0_76] : memref<2x192x128xf32, #tpu.memory_space<vmem>>, vector<1x8x128xf32>
    %46 = vector.shape_cast %45 : vector<1x8x128xf32> to vector<8x128xf32>
    %c0_77 = arith.constant 0 : index
    %c0_78 = arith.constant 0 : index
    %c0_79 = arith.constant 0 : index
    %47 = vector.load %arg3[%c0_77, %c0_78, %c0_79] : memref<10x192x128xf32, #tpu.memory_space<vmem>>, vector<1x8x128xf32>
    %48 = vector.shape_cast %47 : vector<1x8x128xf32> to vector<8x128xf32>
    %49 = arith.mulf %44, %48 : vector<8x128xf32>
    %50 = arith.addf %4, %49 : vector<8x128xf32>
    %51 = arith.mulf %46, %48 : vector<8x128xf32>
    %52 = arith.addf %24, %51 : vector<8x128xf32>
    %c1_80 = arith.constant 1 : index
    %c0_81 = arith.constant 0 : index
    %c0_82 = arith.constant 0 : index
    %53 = vector.load %arg3[%c1_80, %c0_81, %c0_82] : memref<10x192x128xf32, #tpu.memory_space<vmem>>, vector<1x8x128xf32>
    %54 = vector.shape_cast %53 : vector<1x8x128xf32> to vector<8x128xf32>
    %55 = arith.mulf %44, %54 : vector<8x128xf32>
    %56 = arith.addf %6, %55 : vector<8x128xf32>
    %57 = arith.mulf %46, %54 : vector<8x128xf32>
    %58 = arith.addf %26, %57 : vector<8x128xf32>
    %c2_83 = arith.constant 2 : index
    %c0_84 = arith.constant 0 : index
    %c0_85 = arith.constant 0 : index
    %59 = vector.load %arg3[%c2_83, %c0_84, %c0_85] : memref<10x192x128xf32, #tpu.memory_space<vmem>>, vector<1x8x128xf32>
    %60 = vector.shape_cast %59 : vector<1x8x128xf32> to vector<8x128xf32>
    %61 = arith.mulf %44, %60 : vector<8x128xf32>
    %62 = arith.addf %8, %61 : vector<8x128xf32>
    %63 = arith.mulf %46, %60 : vector<8x128xf32>
    %64 = arith.addf %28, %63 : vector<8x128xf32>
    %c3_86 = arith.constant 3 : index
    %c0_87 = arith.constant 0 : index
    %c0_88 = arith.constant 0 : index
    %65 = vector.load %arg3[%c3_86, %c0_87, %c0_88] : memref<10x192x128xf32, #tpu.memory_space<vmem>>, vector<1x8x128xf32>
    %66 = vector.shape_cast %65 : vector<1x8x128xf32> to vector<8x128xf32>
    %67 = arith.mulf %44, %66 : vector<8x128xf32>
    %68 = arith.addf %10, %67 : vector<8x128xf32>
    %69 = arith.mulf %46, %66 : vector<8x128xf32>
    %70 = arith.addf %30, %69 : vector<8x128xf32>
    %c4_89 = arith.constant 4 : index
    %c0_90 = arith.constant 0 : index
    %c0_91 = arith.constant 0 : index
    %71 = vector.load %arg3[%c4_89, %c0_90, %c0_91] : memref<10x192x128xf32, #tpu.memory_space<vmem>>, vector<1x8x128xf32>
    %72 = vector.shape_cast %71 : vector<1x8x128xf32> to vector<8x128xf32>
    %73 = arith.mulf %44, %72 : vector<8x128xf32>
    %74 = arith.addf %12, %73 : vector<8x128xf32>
    %75 = arith.mulf %46, %72 : vector<8x128xf32>
    %76 = arith.addf %32, %75 : vector<8x128xf32>
    %c5_92 = arith.constant 5 : index
    %c0_93 = arith.constant 0 : index
    %c0_94 = arith.constant 0 : index
    %77 = vector.load %arg3[%c5_92, %c0_93, %c0_94] : memref<10x192x128xf32, #tpu.memory_space<vmem>>, vector<1x8x128xf32>
    %78 = vector.shape_cast %77 : vector<1x8x128xf32> to vector<8x128xf32>
    %79 = arith.mulf %44, %78 : vector<8x128xf32>
    %80 = arith.addf %14, %79 : vector<8x128xf32>
    %81 = arith.mulf %46, %78 : vector<8x128xf32>
    %82 = arith.addf %34, %81 : vector<8x128xf32>
    %c6_95 = arith.constant 6 : index
    %c0_96 = arith.constant 0 : index
    %c0_97 = arith.constant 0 : index
    %83 = vector.load %arg3[%c6_95, %c0_96, %c0_97] : memref<10x192x128xf32, #tpu.memory_space<vmem>>, vector<1x8x128xf32>
    %84 = vector.shape_cast %83 : vector<1x8x128xf32> to vector<8x128xf32>
    %85 = arith.mulf %44, %84 : vector<8x128xf32>
    %86 = arith.addf %16, %85 : vector<8x128xf32>
    %87 = arith.mulf %46, %84 : vector<8x128xf32>
    %88 = arith.addf %36, %87 : vector<8x128xf32>
    %c7_98 = arith.constant 7 : index
    %c0_99 = arith.constant 0 : index
    %c0_100 = arith.constant 0 : index
    %89 = vector.load %arg3[%c7_98, %c0_99, %c0_100] : memref<10x192x128xf32, #tpu.memory_space<vmem>>, vector<1x8x128xf32>
    %90 = vector.shape_cast %89 : vector<1x8x128xf32> to vector<8x128xf32>
    %91 = arith.mulf %44, %90 : vector<8x128xf32>
    %92 = arith.addf %18, %91 : vector<8x128xf32>
    %93 = arith.mulf %46, %90 : vector<8x128xf32>
    %94 = arith.addf %38, %93 : vector<8x128xf32>
    %c8_101 = arith.constant 8 : index
    %c0_102 = arith.constant 0 : index
    %c0_103 = arith.constant 0 : index
    %95 = vector.load %arg3[%c8_101, %c0_102, %c0_103] : memref<10x192x128xf32, #tpu.memory_space<vmem>>, vector<1x8x128xf32>
    %96 = vector.shape_cast %95 : vector<1x8x128xf32> to vector<8x128xf32>
    %97 = arith.mulf %44, %96 : vector<8x128xf32>
    %98 = arith.addf %20, %97 : vector<8x128xf32>
    %99 = arith.mulf %46, %96 : vector<8x128xf32>
    %100 = arith.addf %40, %99 : vector<8x128xf32>
    %c9_104 = arith.constant 9 : index
    %c0_105 = arith.constant 0 : index
    %c0_106 = arith.constant 0 : index
    %101 = vector.load %arg3[%c9_104, %c0_105, %c0_106] : memref<10x192x128xf32, #tpu.memory_space<vmem>>, vector<1x8x128xf32>
    %102 = vector.shape_cast %101 : vector<1x8x128xf32> to vector<8x128xf32>
    %103 = arith.mulf %44, %102 : vector<8x128xf32>
    %104 = arith.addf %22, %103 : vector<8x128xf32>
    %105 = arith.mulf %46, %102 : vector<8x128xf32>
    %106 = arith.addf %42, %105 : vector<8x128xf32>
    %c0_107 = arith.constant 0 : index
    %c8_108 = arith.constant 8 : index
    %c0_109 = arith.constant 0 : index
    %107 = vector.load %arg2[%c0_107, %c8_108, %c0_109] : memref<2x192x128xf32, #tpu.memory_space<vmem>>, vector<1x8x128xf32>
    %108 = vector.shape_cast %107 : vector<1x8x128xf32> to vector<8x128xf32>
    %c1_110 = arith.constant 1 : index
    %c8_111 = arith.constant 8 : index
    %c0_112 = arith.constant 0 : index
    %109 = vector.load %arg2[%c1_110, %c8_111, %c0_112] : memref<2x192x128xf32, #tpu.memory_space<vmem>>, vector<1x8x128xf32>
    %110 = vector.shape_cast %109 : vector<1x8x128xf32> to vector<8x128xf32>
    %c0_113 = arith.constant 0 : index
    %c8_114 = arith.constant 8 : index
    %c0_115 = arith.constant 0 : index
    %111 = vector.load %arg3[%c0_113, %c8_114, %c0_115] : memref<10x192x128xf32, #tpu.memory_space<vmem>>, vector<1x8x128xf32>
    %112 = vector.shape_cast %111 : vector<1x8x128xf32> to vector<8x128xf32>
    %113 = arith.mulf %108, %112 : vector<8x128xf32>
    %114 = arith.addf %50, %113 : vector<8x128xf32>
    %115 = arith.mulf %110, %112 : vector<8x128xf32>
    %116 = arith.addf %52, %115 : vector<8x128xf32>
    %c1_116 = arith.constant 1 : index
    %c8_117 = arith.constant 8 : index
    %c0_118 = arith.constant 0 : index
    %117 = vector.load %arg3[%c1_116, %c8_117, %c0_118] : memref<10x192x128xf32, #tpu.memory_space<vmem>>, vector<1x8x128xf32>
    %118 = vector.shape_cast %117 : vector<1x8x128xf32> to vector<8x128xf32>
    %119 = arith.mulf %108, %118 : vector<8x128xf32>
    %120 = arith.addf %56, %119 : vector<8x128xf32>
    %121 = arith.mulf %110, %118 : vector<8x128xf32>
    %122 = arith.addf %58, %121 : vector<8x128xf32>
    %c2_119 = arith.constant 2 : index
    %c8_120 = arith.constant 8 : index
    %c0_121 = arith.constant 0 : index
    %123 = vector.load %arg3[%c2_119, %c8_120, %c0_121] : memref<10x192x128xf32, #tpu.memory_space<vmem>>, vector<1x8x128xf32>
    %124 = vector.shape_cast %123 : vector<1x8x128xf32> to vector<8x128xf32>
    %125 = arith.mulf %108, %124 : vector<8x128xf32>
    %126 = arith.addf %62, %125 : vector<8x128xf32>
    %127 = arith.mulf %110, %124 : vector<8x128xf32>
    %128 = arith.addf %64, %127 : vector<8x128xf32>
    %c3_122 = arith.constant 3 : index
    %c8_123 = arith.constant 8 : index
    %c0_124 = arith.constant 0 : index
    %129 = vector.load %arg3[%c3_122, %c8_123, %c0_124] : memref<10x192x128xf32, #tpu.memory_space<vmem>>, vector<1x8x128xf32>
    %130 = vector.shape_cast %129 : vector<1x8x128xf32> to vector<8x128xf32>
    %131 = arith.mulf %108, %130 : vector<8x128xf32>
    %132 = arith.addf %68, %131 : vector<8x128xf32>
    %133 = arith.mulf %110, %130 : vector<8x128xf32>
    %134 = arith.addf %70, %133 : vector<8x128xf32>
    %c4_125 = arith.constant 4 : index
    %c8_126 = arith.constant 8 : index
    %c0_127 = arith.constant 0 : index
    %135 = vector.load %arg3[%c4_125, %c8_126, %c0_127] : memref<10x192x128xf32, #tpu.memory_space<vmem>>, vector<1x8x128xf32>
    %136 = vector.shape_cast %135 : vector<1x8x128xf32> to vector<8x128xf32>
    %137 = arith.mulf %108, %136 : vector<8x128xf32>
    %138 = arith.addf %74, %137 : vector<8x128xf32>
    %139 = arith.mulf %110, %136 : vector<8x128xf32>
    %140 = arith.addf %76, %139 : vector<8x128xf32>
    %c5_128 = arith.constant 5 : index
    %c8_129 = arith.constant 8 : index
    %c0_130 = arith.constant 0 : index
    %141 = vector.load %arg3[%c5_128, %c8_129, %c0_130] : memref<10x192x128xf32, #tpu.memory_space<vmem>>, vector<1x8x128xf32>
    %142 = vector.shape_cast %141 : vector<1x8x128xf32> to vector<8x128xf32>
    %143 = arith.mulf %108, %142 : vector<8x128xf32>
    %144 = arith.addf %80, %143 : vector<8x128xf32>
    %145 = arith.mulf %110, %142 : vector<8x128xf32>
    %146 = arith.addf %82, %145 : vector<8x128xf32>
    %c6_131 = arith.constant 6 : index
    %c8_132 = arith.constant 8 : index
    %c0_133 = arith.constant 0 : index
    %147 = vector.load %arg3[%c6_131, %c8_132, %c0_133] : memref<10x192x128xf32, #tpu.memory_space<vmem>>, vector<1x8x128xf32>
    %148 = vector.shape_cast %147 : vector<1x8x128xf32> to vector<8x128xf32>
    %149 = arith.mulf %108, %148 : vector<8x128xf32>
    %150 = arith.addf %86, %149 : vector<8x128xf32>
    %151 = arith.mulf %110, %148 : vector<8x128xf32>
    %152 = arith.addf %88, %151 : vector<8x128xf32>
    %c7_134 = arith.constant 7 : index
    %c8_135 = arith.constant 8 : index
    %c0_136 = arith.constant 0 : index
    %153 = vector.load %arg3[%c7_134, %c8_135, %c0_136] : memref<10x192x128xf32, #tpu.memory_space<vmem>>, vector<1x8x128xf32>
    %154 = vector.shape_cast %153 : vector<1x8x128xf32> to vector<8x128xf32>
    %155 = arith.mulf %108, %154 : vector<8x128xf32>
    %156 = arith.addf %92, %155 : vector<8x128xf32>
    %157 = arith.mulf %110, %154 : vector<8x128xf32>
    %158 = arith.addf %94, %157 : vector<8x128xf32>
    %c8_137 = arith.constant 8 : index
    %c8_138 = arith.constant 8 : index
    %c0_139 = arith.constant 0 : index
    %159 = vector.load %arg3[%c8_137, %c8_138, %c0_139] : memref<10x192x128xf32, #tpu.memory_space<vmem>>, vector<1x8x128xf32>
    %160 = vector.shape_cast %159 : vector<1x8x128xf32> to vector<8x128xf32>
    %161 = arith.mulf %108, %160 : vector<8x128xf32>
    %162 = arith.addf %98, %161 : vector<8x128xf32>
    %163 = arith.mulf %110, %160 : vector<8x128xf32>
    %164 = arith.addf %100, %163 : vector<8x128xf32>
    %c9_140 = arith.constant 9 : index
    %c8_141 = arith.constant 8 : index
    %c0_142 = arith.constant 0 : index
    %165 = vector.load %arg3[%c9_140, %c8_141, %c0_142] : memref<10x192x128xf32, #tpu.memory_space<vmem>>, vector<1x8x128xf32>
    %166 = vector.shape_cast %165 : vector<1x8x128xf32> to vector<8x128xf32>
    %167 = arith.mulf %108, %166 : vector<8x128xf32>
    %168 = arith.addf %104, %167 : vector<8x128xf32>
    %169 = arith.mulf %110, %166 : vector<8x128xf32>
    %170 = arith.addf %106, %169 : vector<8x128xf32>
    %c0_143 = arith.constant 0 : index
    %c16 = arith.constant 16 : index
    %c0_144 = arith.constant 0 : index
    %171 = vector.load %arg2[%c0_143, %c16, %c0_144] : memref<2x192x128xf32, #tpu.memory_space<vmem>>, vector<1x8x128xf32>
    %172 = vector.shape_cast %171 : vector<1x8x128xf32> to vector<8x128xf32>
    %c1_145 = arith.constant 1 : index
    %c16_146 = arith.constant 16 : index
    %c0_147 = arith.constant 0 : index
    %173 = vector.load %arg2[%c1_145, %c16_146, %c0_147] : memref<2x192x128xf32, #tpu.memory_space<vmem>>, vector<1x8x128xf32>
    %174 = vector.shape_cast %173 : vector<1x8x128xf32> to vector<8x128xf32>
    %c0_148 = arith.constant 0 : index
    %c16_149 = arith.constant 16 : index
    %c0_150 = arith.constant 0 : index
    %175 = vector.load %arg3[%c0_148, %c16_149, %c0_150] : memref<10x192x128xf32, #tpu.memory_space<vmem>>, vector<1x8x128xf32>
    %176 = vector.shape_cast %175 : vector<1x8x128xf32> to vector<8x128xf32>
    %177 = arith.mulf %172, %176 : vector<8x128xf32>
    %178 = arith.addf %114, %177 : vector<8x128xf32>
    %179 = arith.mulf %174, %176 : vector<8x128xf32>
    %180 = arith.addf %116, %179 : vector<8x128xf32>
    %c1_151 = arith.constant 1 : index
    %c16_152 = arith.constant 16 : index
    %c0_153 = arith.constant 0 : index
    %181 = vector.load %arg3[%c1_151, %c16_152, %c0_153] : memref<10x192x128xf32, #tpu.memory_space<vmem>>, vector<1x8x128xf32>
    %182 = vector.shape_cast %181 : vector<1x8x128xf32> to vector<8x128xf32>
    %183 = arith.mulf %172, %182 : vector<8x128xf32>
    %184 = arith.addf %120, %183 : vector<8x128xf32>
    %185 = arith.mulf %174, %182 : vector<8x128xf32>
    %186 = arith.addf %122, %185 : vector<8x128xf32>
    %c2_154 = arith.constant 2 : index
    %c16_155 = arith.constant 16 : index
    %c0_156 = arith.constant 0 : index
    %187 = vector.load %arg3[%c2_154, %c16_155, %c0_156] : memref<10x192x128xf32, #tpu.memory_space<vmem>>, vector<1x8x128xf32>
    %188 = vector.shape_cast %187 : vector<1x8x128xf32> to vector<8x128xf32>
    %189 = arith.mulf %172, %188 : vector<8x128xf32>
    %190 = arith.addf %126, %189 : vector<8x128xf32>
    %191 = arith.mulf %174, %188 : vector<8x128xf32>
    %192 = arith.addf %128, %191 : vector<8x128xf32>
    %c3_157 = arith.constant 3 : index
    %c16_158 = arith.constant 16 : index
    %c0_159 = arith.constant 0 : index
    %193 = vector.load %arg3[%c3_157, %c16_158, %c0_159] : memref<10x192x128xf32, #tpu.memory_space<vmem>>, vector<1x8x128xf32>
    %194 = vector.shape_cast %193 : vector<1x8x128xf32> to vector<8x128xf32>
    %195 = arith.mulf %172, %194 : vector<8x128xf32>
    %196 = arith.addf %132, %195 : vector<8x128xf32>
    %197 = arith.mulf %174, %194 : vector<8x128xf32>
    %198 = arith.addf %134, %197 : vector<8x128xf32>
    %c4_160 = arith.constant 4 : index
    %c16_161 = arith.constant 16 : index
    %c0_162 = arith.constant 0 : index
    %199 = vector.load %arg3[%c4_160, %c16_161, %c0_162] : memref<10x192x128xf32, #tpu.memory_space<vmem>>, vector<1x8x128xf32>
    %200 = vector.shape_cast %199 : vector<1x8x128xf32> to vector<8x128xf32>
    %201 = arith.mulf %172, %200 : vector<8x128xf32>
    %202 = arith.addf %138, %201 : vector<8x128xf32>
    %203 = arith.mulf %174, %200 : vector<8x128xf32>
    %204 = arith.addf %140, %203 : vector<8x128xf32>
    %c5_163 = arith.constant 5 : index
    %c16_164 = arith.constant 16 : index
    %c0_165 = arith.constant 0 : index
    %205 = vector.load %arg3[%c5_163, %c16_164, %c0_165] : memref<10x192x128xf32, #tpu.memory_space<vmem>>, vector<1x8x128xf32>
    %206 = vector.shape_cast %205 : vector<1x8x128xf32> to vector<8x128xf32>
    %207 = arith.mulf %172, %206 : vector<8x128xf32>
    %208 = arith.addf %144, %207 : vector<8x128xf32>
    %209 = arith.mulf %174, %206 : vector<8x128xf32>
    %210 = arith.addf %146, %209 : vector<8x128xf32>
    %c6_166 = arith.constant 6 : index
    %c16_167 = arith.constant 16 : index
    %c0_168 = arith.constant 0 : index
    %211 = vector.load %arg3[%c6_166, %c16_167, %c0_168] : memref<10x192x128xf32, #tpu.memory_space<vmem>>, vector<1x8x128xf32>
    %212 = vector.shape_cast %211 : vector<1x8x128xf32> to vector<8x128xf32>
    %213 = arith.mulf %172, %212 : vector<8x128xf32>
    %214 = arith.addf %150, %213 : vector<8x128xf32>
    %215 = arith.mulf %174, %212 : vector<8x128xf32>
    %216 = arith.addf %152, %215 : vector<8x128xf32>
    %c7_169 = arith.constant 7 : index
    %c16_170 = arith.constant 16 : index
    %c0_171 = arith.constant 0 : index
    %217 = vector.load %arg3[%c7_169, %c16_170, %c0_171] : memref<10x192x128xf32, #tpu.memory_space<vmem>>, vector<1x8x128xf32>
    %218 = vector.shape_cast %217 : vector<1x8x128xf32> to vector<8x128xf32>
    %219 = arith.mulf %172, %218 : vector<8x128xf32>
    %220 = arith.addf %156, %219 : vector<8x128xf32>
    %221 = arith.mulf %174, %218 : vector<8x128xf32>
    %222 = arith.addf %158, %221 : vector<8x128xf32>
    %c8_172 = arith.constant 8 : index
    %c16_173 = arith.constant 16 : index
    %c0_174 = arith.constant 0 : index
    %223 = vector.load %arg3[%c8_172, %c16_173, %c0_174] : memref<10x192x128xf32, #tpu.memory_space<vmem>>, vector<1x8x128xf32>
    %224 = vector.shape_cast %223 : vector<1x8x128xf32> to vector<8x128xf32>
    %225 = arith.mulf %172, %224 : vector<8x128xf32>
    %226 = arith.addf %162, %225 : vector<8x128xf32>
    %227 = arith.mulf %174, %224 : vector<8x128xf32>
    %228 = arith.addf %164, %227 : vector<8x128xf32>
    %c9_175 = arith.constant 9 : index
    %c16_176 = arith.constant 16 : index
    %c0_177 = arith.constant 0 : index
    %229 = vector.load %arg3[%c9_175, %c16_176, %c0_177] : memref<10x192x128xf32, #tpu.memory_space<vmem>>, vector<1x8x128xf32>
    %230 = vector.shape_cast %229 : vector<1x8x128xf32> to vector<8x128xf32>
    %231 = arith.mulf %172, %230 : vector<8x128xf32>
    %232 = arith.addf %168, %231 : vector<8x128xf32>
    %233 = arith.mulf %174, %230 : vector<8x128xf32>
    %234 = arith.addf %170, %233 : vector<8x128xf32>
    %c0_178 = arith.constant 0 : index
    %c24 = arith.constant 24 : index
    %c0_179 = arith.constant 0 : index
    %235 = vector.load %arg2[%c0_178, %c24, %c0_179] : memref<2x192x128xf32, #tpu.memory_space<vmem>>, vector<1x8x128xf32>
    %236 = vector.shape_cast %235 : vector<1x8x128xf32> to vector<8x128xf32>
    %c1_180 = arith.constant 1 : index
    %c24_181 = arith.constant 24 : index
    %c0_182 = arith.constant 0 : index
    %237 = vector.load %arg2[%c1_180, %c24_181, %c0_182] : memref<2x192x128xf32, #tpu.memory_space<vmem>>, vector<1x8x128xf32>
    %238 = vector.shape_cast %237 : vector<1x8x128xf32> to vector<8x128xf32>
    %c0_183 = arith.constant 0 : index
    %c24_184 = arith.constant 24 : index
    %c0_185 = arith.constant 0 : index
    %239 = vector.load %arg3[%c0_183, %c24_184, %c0_185] : memref<10x192x128xf32, #tpu.memory_space<vmem>>, vector<1x8x128xf32>
    %240 = vector.shape_cast %239 : vector<1x8x128xf32> to vector<8x128xf32>
    %241 = arith.mulf %236, %240 : vector<8x128xf32>
    %242 = arith.addf %178, %241 : vector<8x128xf32>
    %243 = arith.mulf %238, %240 : vector<8x128xf32>
    %244 = arith.addf %180, %243 : vector<8x128xf32>
    %c1_186 = arith.constant 1 : index
    %c24_187 = arith.constant 24 : index
    %c0_188 = arith.constant 0 : index
    %245 = vector.load %arg3[%c1_186, %c24_187, %c0_188] : memref<10x192x128xf32, #tpu.memory_space<vmem>>, vector<1x8x128xf32>
    %246 = vector.shape_cast %245 : vector<1x8x128xf32> to vector<8x128xf32>
    %247 = arith.mulf %236, %246 : vector<8x128xf32>
    %248 = arith.addf %184, %247 : vector<8x128xf32>
    %249 = arith.mulf %238, %246 : vector<8x128xf32>
    %250 = arith.addf %186, %249 : vector<8x128xf32>
    %c2_189 = arith.constant 2 : index
    %c24_190 = arith.constant 24 : index
    %c0_191 = arith.constant 0 : index
    %251 = vector.load %arg3[%c2_189, %c24_190, %c0_191] : memref<10x192x128xf32, #tpu.memory_space<vmem>>, vector<1x8x128xf32>
    %252 = vector.shape_cast %251 : vector<1x8x128xf32> to vector<8x128xf32>
    %253 = arith.mulf %236, %252 : vector<8x128xf32>
    %254 = arith.addf %190, %253 : vector<8x128xf32>
    %255 = arith.mulf %238, %252 : vector<8x128xf32>
    %256 = arith.addf %192, %255 : vector<8x128xf32>
    %c3_192 = arith.constant 3 : index
    %c24_193 = arith.constant 24 : index
    %c0_194 = arith.constant 0 : index
    %257 = vector.load %arg3[%c3_192, %c24_193, %c0_194] : memref<10x192x128xf32, #tpu.memory_space<vmem>>, vector<1x8x128xf32>
    %258 = vector.shape_cast %257 : vector<1x8x128xf32> to vector<8x128xf32>
    %259 = arith.mulf %236, %258 : vector<8x128xf32>
    %260 = arith.addf %196, %259 : vector<8x128xf32>
    %261 = arith.mulf %238, %258 : vector<8x128xf32>
    %262 = arith.addf %198, %261 : vector<8x128xf32>
    %c4_195 = arith.constant 4 : index
    %c24_196 = arith.constant 24 : index
    %c0_197 = arith.constant 0 : index
    %263 = vector.load %arg3[%c4_195, %c24_196, %c0_197] : memref<10x192x128xf32, #tpu.memory_space<vmem>>, vector<1x8x128xf32>
    %264 = vector.shape_cast %263 : vector<1x8x128xf32> to vector<8x128xf32>
    %265 = arith.mulf %236, %264 : vector<8x128xf32>
    %266 = arith.addf %202, %265 : vector<8x128xf32>
    %267 = arith.mulf %238, %264 : vector<8x128xf32>
    %268 = arith.addf %204, %267 : vector<8x128xf32>
    %c5_198 = arith.constant 5 : index
    %c24_199 = arith.constant 24 : index
    %c0_200 = arith.constant 0 : index
    %269 = vector.load %arg3[%c5_198, %c24_199, %c0_200] : memref<10x192x128xf32, #tpu.memory_space<vmem>>, vector<1x8x128xf32>
    %270 = vector.shape_cast %269 : vector<1x8x128xf32> to vector<8x128xf32>
    %271 = arith.mulf %236, %270 : vector<8x128xf32>
    %272 = arith.addf %208, %271 : vector<8x128xf32>
    %273 = arith.mulf %238, %270 : vector<8x128xf32>
    %274 = arith.addf %210, %273 : vector<8x128xf32>
    %c6_201 = arith.constant 6 : index
    %c24_202 = arith.constant 24 : index
    %c0_203 = arith.constant 0 : index
    %275 = vector.load %arg3[%c6_201, %c24_202, %c0_203] : memref<10x192x128xf32, #tpu.memory_space<vmem>>, vector<1x8x128xf32>
    %276 = vector.shape_cast %275 : vector<1x8x128xf32> to vector<8x128xf32>
    %277 = arith.mulf %236, %276 : vector<8x128xf32>
    %278 = arith.addf %214, %277 : vector<8x128xf32>
    %279 = arith.mulf %238, %276 : vector<8x128xf32>
    %280 = arith.addf %216, %279 : vector<8x128xf32>
    %c7_204 = arith.constant 7 : index
    %c24_205 = arith.constant 24 : index
    %c0_206 = arith.constant 0 : index
    %281 = vector.load %arg3[%c7_204, %c24_205, %c0_206] : memref<10x192x128xf32, #tpu.memory_space<vmem>>, vector<1x8x128xf32>
    %282 = vector.shape_cast %281 : vector<1x8x128xf32> to vector<8x128xf32>
    %283 = arith.mulf %236, %282 : vector<8x128xf32>
    %284 = arith.addf %220, %283 : vector<8x128xf32>
    %285 = arith.mulf %238, %282 : vector<8x128xf32>
    %286 = arith.addf %222, %285 : vector<8x128xf32>
    %c8_207 = arith.constant 8 : index
    %c24_208 = arith.constant 24 : index
    %c0_209 = arith.constant 0 : index
    %287 = vector.load %arg3[%c8_207, %c24_208, %c0_209] : memref<10x192x128xf32, #tpu.memory_space<vmem>>, vector<1x8x128xf32>
    %288 = vector.shape_cast %287 : vector<1x8x128xf32> to vector<8x128xf32>
    %289 = arith.mulf %236, %288 : vector<8x128xf32>
    %290 = arith.addf %226, %289 : vector<8x128xf32>
    %291 = arith.mulf %238, %288 : vector<8x128xf32>
    %292 = arith.addf %228, %291 : vector<8x128xf32>
    %c9_210 = arith.constant 9 : index
    %c24_211 = arith.constant 24 : index
    %c0_212 = arith.constant 0 : index
    %293 = vector.load %arg3[%c9_210, %c24_211, %c0_212] : memref<10x192x128xf32, #tpu.memory_space<vmem>>, vector<1x8x128xf32>
    %294 = vector.shape_cast %293 : vector<1x8x128xf32> to vector<8x128xf32>
    %295 = arith.mulf %236, %294 : vector<8x128xf32>
    %296 = arith.addf %232, %295 : vector<8x128xf32>
    %297 = arith.mulf %238, %294 : vector<8x128xf32>
    %298 = arith.addf %234, %297 : vector<8x128xf32>
    %c0_213 = arith.constant 0 : index
    %c32 = arith.constant 32 : index
    %c0_214 = arith.constant 0 : index
    %299 = vector.load %arg2[%c0_213, %c32, %c0_214] : memref<2x192x128xf32, #tpu.memory_space<vmem>>, vector<1x8x128xf32>
    %300 = vector.shape_cast %299 : vector<1x8x128xf32> to vector<8x128xf32>
    %c1_215 = arith.constant 1 : index
    %c32_216 = arith.constant 32 : index
    %c0_217 = arith.constant 0 : index
    %301 = vector.load %arg2[%c1_215, %c32_216, %c0_217] : memref<2x192x128xf32, #tpu.memory_space<vmem>>, vector<1x8x128xf32>
    %302 = vector.shape_cast %301 : vector<1x8x128xf32> to vector<8x128xf32>
    %c0_218 = arith.constant 0 : index
    %c32_219 = arith.constant 32 : index
    %c0_220 = arith.constant 0 : index
    %303 = vector.load %arg3[%c0_218, %c32_219, %c0_220] : memref<10x192x128xf32, #tpu.memory_space<vmem>>, vector<1x8x128xf32>
    %304 = vector.shape_cast %303 : vector<1x8x128xf32> to vector<8x128xf32>
    %305 = arith.mulf %300, %304 : vector<8x128xf32>
    %306 = arith.addf %242, %305 : vector<8x128xf32>
    %307 = arith.mulf %302, %304 : vector<8x128xf32>
    %308 = arith.addf %244, %307 : vector<8x128xf32>
    %c1_221 = arith.constant 1 : index
    %c32_222 = arith.constant 32 : index
    %c0_223 = arith.constant 0 : index
    %309 = vector.load %arg3[%c1_221, %c32_222, %c0_223] : memref<10x192x128xf32, #tpu.memory_space<vmem>>, vector<1x8x128xf32>
    %310 = vector.shape_cast %309 : vector<1x8x128xf32> to vector<8x128xf32>
    %311 = arith.mulf %300, %310 : vector<8x128xf32>
    %312 = arith.addf %248, %311 : vector<8x128xf32>
    %313 = arith.mulf %302, %310 : vector<8x128xf32>
    %314 = arith.addf %250, %313 : vector<8x128xf32>
    %c2_224 = arith.constant 2 : index
    %c32_225 = arith.constant 32 : index
    %c0_226 = arith.constant 0 : index
    %315 = vector.load %arg3[%c2_224, %c32_225, %c0_226] : memref<10x192x128xf32, #tpu.memory_space<vmem>>, vector<1x8x128xf32>
    %316 = vector.shape_cast %315 : vector<1x8x128xf32> to vector<8x128xf32>
    %317 = arith.mulf %300, %316 : vector<8x128xf32>
    %318 = arith.addf %254, %317 : vector<8x128xf32>
    %319 = arith.mulf %302, %316 : vector<8x128xf32>
    %320 = arith.addf %256, %319 : vector<8x128xf32>
    %c3_227 = arith.constant 3 : index
    %c32_228 = arith.constant 32 : index
    %c0_229 = arith.constant 0 : index
    %321 = vector.load %arg3[%c3_227, %c32_228, %c0_229] : memref<10x192x128xf32, #tpu.memory_space<vmem>>, vector<1x8x128xf32>
    %322 = vector.shape_cast %321 : vector<1x8x128xf32> to vector<8x128xf32>
    %323 = arith.mulf %300, %322 : vector<8x128xf32>
    %324 = arith.addf %260, %323 : vector<8x128xf32>
    %325 = arith.mulf %302, %322 : vector<8x128xf32>
    %326 = arith.addf %262, %325 : vector<8x128xf32>
    %c4_230 = arith.constant 4 : index
    %c32_231 = arith.constant 32 : index
    %c0_232 = arith.constant 0 : index
    %327 = vector.load %arg3[%c4_230, %c32_231, %c0_232] : memref<10x192x128xf32, #tpu.memory_space<vmem>>, vector<1x8x128xf32>
    %328 = vector.shape_cast %327 : vector<1x8x128xf32> to vector<8x128xf32>
    %329 = arith.mulf %300, %328 : vector<8x128xf32>
    %330 = arith.addf %266, %329 : vector<8x128xf32>
    %331 = arith.mulf %302, %328 : vector<8x128xf32>
    %332 = arith.addf %268, %331 : vector<8x128xf32>
    %c5_233 = arith.constant 5 : index
    %c32_234 = arith.constant 32 : index
    %c0_235 = arith.constant 0 : index
    %333 = vector.load %arg3[%c5_233, %c32_234, %c0_235] : memref<10x192x128xf32, #tpu.memory_space<vmem>>, vector<1x8x128xf32>
    %334 = vector.shape_cast %333 : vector<1x8x128xf32> to vector<8x128xf32>
    %335 = arith.mulf %300, %334 : vector<8x128xf32>
    %336 = arith.addf %272, %335 : vector<8x128xf32>
    %337 = arith.mulf %302, %334 : vector<8x128xf32>
    %338 = arith.addf %274, %337 : vector<8x128xf32>
    %c6_236 = arith.constant 6 : index
    %c32_237 = arith.constant 32 : index
    %c0_238 = arith.constant 0 : index
    %339 = vector.load %arg3[%c6_236, %c32_237, %c0_238] : memref<10x192x128xf32, #tpu.memory_space<vmem>>, vector<1x8x128xf32>
    %340 = vector.shape_cast %339 : vector<1x8x128xf32> to vector<8x128xf32>
    %341 = arith.mulf %300, %340 : vector<8x128xf32>
    %342 = arith.addf %278, %341 : vector<8x128xf32>
    %343 = arith.mulf %302, %340 : vector<8x128xf32>
    %344 = arith.addf %280, %343 : vector<8x128xf32>
    %c7_239 = arith.constant 7 : index
    %c32_240 = arith.constant 32 : index
    %c0_241 = arith.constant 0 : index
    %345 = vector.load %arg3[%c7_239, %c32_240, %c0_241] : memref<10x192x128xf32, #tpu.memory_space<vmem>>, vector<1x8x128xf32>
    %346 = vector.shape_cast %345 : vector<1x8x128xf32> to vector<8x128xf32>
    %347 = arith.mulf %300, %346 : vector<8x128xf32>
    %348 = arith.addf %284, %347 : vector<8x128xf32>
    %349 = arith.mulf %302, %346 : vector<8x128xf32>
    %350 = arith.addf %286, %349 : vector<8x128xf32>
    %c8_242 = arith.constant 8 : index
    %c32_243 = arith.constant 32 : index
    %c0_244 = arith.constant 0 : index
    %351 = vector.load %arg3[%c8_242, %c32_243, %c0_244] : memref<10x192x128xf32, #tpu.memory_space<vmem>>, vector<1x8x128xf32>
    %352 = vector.shape_cast %351 : vector<1x8x128xf32> to vector<8x128xf32>
    %353 = arith.mulf %300, %352 : vector<8x128xf32>
    %354 = arith.addf %290, %353 : vector<8x128xf32>
    %355 = arith.mulf %302, %352 : vector<8x128xf32>
    %356 = arith.addf %292, %355 : vector<8x128xf32>
    %c9_245 = arith.constant 9 : index
    %c32_246 = arith.constant 32 : index
    %c0_247 = arith.constant 0 : index
    %357 = vector.load %arg3[%c9_245, %c32_246, %c0_247] : memref<10x192x128xf32, #tpu.memory_space<vmem>>, vector<1x8x128xf32>
    %358 = vector.shape_cast %357 : vector<1x8x128xf32> to vector<8x128xf32>
    %359 = arith.mulf %300, %358 : vector<8x128xf32>
    %360 = arith.addf %296, %359 : vector<8x128xf32>
    %361 = arith.mulf %302, %358 : vector<8x128xf32>
    %362 = arith.addf %298, %361 : vector<8x128xf32>
    %c0_248 = arith.constant 0 : index
    %c40 = arith.constant 40 : index
    %c0_249 = arith.constant 0 : index
    %363 = vector.load %arg2[%c0_248, %c40, %c0_249] : memref<2x192x128xf32, #tpu.memory_space<vmem>>, vector<1x8x128xf32>
    %364 = vector.shape_cast %363 : vector<1x8x128xf32> to vector<8x128xf32>
    %c1_250 = arith.constant 1 : index
    %c40_251 = arith.constant 40 : index
    %c0_252 = arith.constant 0 : index
    %365 = vector.load %arg2[%c1_250, %c40_251, %c0_252] : memref<2x192x128xf32, #tpu.memory_space<vmem>>, vector<1x8x128xf32>
    %366 = vector.shape_cast %365 : vector<1x8x128xf32> to vector<8x128xf32>
    %c0_253 = arith.constant 0 : index
    %c40_254 = arith.constant 40 : index
    %c0_255 = arith.constant 0 : index
    %367 = vector.load %arg3[%c0_253, %c40_254, %c0_255] : memref<10x192x128xf32, #tpu.memory_space<vmem>>, vector<1x8x128xf32>
    %368 = vector.shape_cast %367 : vector<1x8x128xf32> to vector<8x128xf32>
    %369 = arith.mulf %364, %368 : vector<8x128xf32>
    %370 = arith.addf %306, %369 : vector<8x128xf32>
    %371 = arith.mulf %366, %368 : vector<8x128xf32>
    %372 = arith.addf %308, %371 : vector<8x128xf32>
    %c1_256 = arith.constant 1 : index
    %c40_257 = arith.constant 40 : index
    %c0_258 = arith.constant 0 : index
    %373 = vector.load %arg3[%c1_256, %c40_257, %c0_258] : memref<10x192x128xf32, #tpu.memory_space<vmem>>, vector<1x8x128xf32>
    %374 = vector.shape_cast %373 : vector<1x8x128xf32> to vector<8x128xf32>
    %375 = arith.mulf %364, %374 : vector<8x128xf32>
    %376 = arith.addf %312, %375 : vector<8x128xf32>
    %377 = arith.mulf %366, %374 : vector<8x128xf32>
    %378 = arith.addf %314, %377 : vector<8x128xf32>
    %c2_259 = arith.constant 2 : index
    %c40_260 = arith.constant 40 : index
    %c0_261 = arith.constant 0 : index
    %379 = vector.load %arg3[%c2_259, %c40_260, %c0_261] : memref<10x192x128xf32, #tpu.memory_space<vmem>>, vector<1x8x128xf32>
    %380 = vector.shape_cast %379 : vector<1x8x128xf32> to vector<8x128xf32>
    %381 = arith.mulf %364, %380 : vector<8x128xf32>
    %382 = arith.addf %318, %381 : vector<8x128xf32>
    %383 = arith.mulf %366, %380 : vector<8x128xf32>
    %384 = arith.addf %320, %383 : vector<8x128xf32>
    %c3_262 = arith.constant 3 : index
    %c40_263 = arith.constant 40 : index
    %c0_264 = arith.constant 0 : index
    %385 = vector.load %arg3[%c3_262, %c40_263, %c0_264] : memref<10x192x128xf32, #tpu.memory_space<vmem>>, vector<1x8x128xf32>
    %386 = vector.shape_cast %385 : vector<1x8x128xf32> to vector<8x128xf32>
    %387 = arith.mulf %364, %386 : vector<8x128xf32>
    %388 = arith.addf %324, %387 : vector<8x128xf32>
    %389 = arith.mulf %366, %386 : vector<8x128xf32>
    %390 = arith.addf %326, %389 : vector<8x128xf32>
    %c4_265 = arith.constant 4 : index
    %c40_266 = arith.constant 40 : index
    %c0_267 = arith.constant 0 : index
    %391 = vector.load %arg3[%c4_265, %c40_266, %c0_267] : memref<10x192x128xf32, #tpu.memory_space<vmem>>, vector<1x8x128xf32>
    %392 = vector.shape_cast %391 : vector<1x8x128xf32> to vector<8x128xf32>
    %393 = arith.mulf %364, %392 : vector<8x128xf32>
    %394 = arith.addf %330, %393 : vector<8x128xf32>
    %395 = arith.mulf %366, %392 : vector<8x128xf32>
    %396 = arith.addf %332, %395 : vector<8x128xf32>
    %c5_268 = arith.constant 5 : index
    %c40_269 = arith.constant 40 : index
    %c0_270 = arith.constant 0 : index
    %397 = vector.load %arg3[%c5_268, %c40_269, %c0_270] : memref<10x192x128xf32, #tpu.memory_space<vmem>>, vector<1x8x128xf32>
    %398 = vector.shape_cast %397 : vector<1x8x128xf32> to vector<8x128xf32>
    %399 = arith.mulf %364, %398 : vector<8x128xf32>
    %400 = arith.addf %336, %399 : vector<8x128xf32>
    %401 = arith.mulf %366, %398 : vector<8x128xf32>
    %402 = arith.addf %338, %401 : vector<8x128xf32>
    %c6_271 = arith.constant 6 : index
    %c40_272 = arith.constant 40 : index
    %c0_273 = arith.constant 0 : index
    %403 = vector.load %arg3[%c6_271, %c40_272, %c0_273] : memref<10x192x128xf32, #tpu.memory_space<vmem>>, vector<1x8x128xf32>
    %404 = vector.shape_cast %403 : vector<1x8x128xf32> to vector<8x128xf32>
    %405 = arith.mulf %364, %404 : vector<8x128xf32>
    %406 = arith.addf %342, %405 : vector<8x128xf32>
    %407 = arith.mulf %366, %404 : vector<8x128xf32>
    %408 = arith.addf %344, %407 : vector<8x128xf32>
    %c7_274 = arith.constant 7 : index
    %c40_275 = arith.constant 40 : index
    %c0_276 = arith.constant 0 : index
    %409 = vector.load %arg3[%c7_274, %c40_275, %c0_276] : memref<10x192x128xf32, #tpu.memory_space<vmem>>, vector<1x8x128xf32>
    %410 = vector.shape_cast %409 : vector<1x8x128xf32> to vector<8x128xf32>
    %411 = arith.mulf %364, %410 : vector<8x128xf32>
    %412 = arith.addf %348, %411 : vector<8x128xf32>
    %413 = arith.mulf %366, %410 : vector<8x128xf32>
    %414 = arith.addf %350, %413 : vector<8x128xf32>
    %c8_277 = arith.constant 8 : index
    %c40_278 = arith.constant 40 : index
    %c0_279 = arith.constant 0 : index
    %415 = vector.load %arg3[%c8_277, %c40_278, %c0_279] : memref<10x192x128xf32, #tpu.memory_space<vmem>>, vector<1x8x128xf32>
    %416 = vector.shape_cast %415 : vector<1x8x128xf32> to vector<8x128xf32>
    %417 = arith.mulf %364, %416 : vector<8x128xf32>
    %418 = arith.addf %354, %417 : vector<8x128xf32>
    %419 = arith.mulf %366, %416 : vector<8x128xf32>
    %420 = arith.addf %356, %419 : vector<8x128xf32>
    %c9_280 = arith.constant 9 : index
    %c40_281 = arith.constant 40 : index
    %c0_282 = arith.constant 0 : index
    %421 = vector.load %arg3[%c9_280, %c40_281, %c0_282] : memref<10x192x128xf32, #tpu.memory_space<vmem>>, vector<1x8x128xf32>
    %422 = vector.shape_cast %421 : vector<1x8x128xf32> to vector<8x128xf32>
    %423 = arith.mulf %364, %422 : vector<8x128xf32>
    %424 = arith.addf %360, %423 : vector<8x128xf32>
    %425 = arith.mulf %366, %422 : vector<8x128xf32>
    %426 = arith.addf %362, %425 : vector<8x128xf32>
    %c0_283 = arith.constant 0 : index
    %c48 = arith.constant 48 : index
    %c0_284 = arith.constant 0 : index
    %427 = vector.load %arg2[%c0_283, %c48, %c0_284] : memref<2x192x128xf32, #tpu.memory_space<vmem>>, vector<1x8x128xf32>
    %428 = vector.shape_cast %427 : vector<1x8x128xf32> to vector<8x128xf32>
    %c1_285 = arith.constant 1 : index
    %c48_286 = arith.constant 48 : index
    %c0_287 = arith.constant 0 : index
    %429 = vector.load %arg2[%c1_285, %c48_286, %c0_287] : memref<2x192x128xf32, #tpu.memory_space<vmem>>, vector<1x8x128xf32>
    %430 = vector.shape_cast %429 : vector<1x8x128xf32> to vector<8x128xf32>
    %c0_288 = arith.constant 0 : index
    %c48_289 = arith.constant 48 : index
    %c0_290 = arith.constant 0 : index
    %431 = vector.load %arg3[%c0_288, %c48_289, %c0_290] : memref<10x192x128xf32, #tpu.memory_space<vmem>>, vector<1x8x128xf32>
    %432 = vector.shape_cast %431 : vector<1x8x128xf32> to vector<8x128xf32>
    %433 = arith.mulf %428, %432 : vector<8x128xf32>
    %434 = arith.addf %370, %433 : vector<8x128xf32>
    %435 = arith.mulf %430, %432 : vector<8x128xf32>
    %436 = arith.addf %372, %435 : vector<8x128xf32>
    %c1_291 = arith.constant 1 : index
    %c48_292 = arith.constant 48 : index
    %c0_293 = arith.constant 0 : index
    %437 = vector.load %arg3[%c1_291, %c48_292, %c0_293] : memref<10x192x128xf32, #tpu.memory_space<vmem>>, vector<1x8x128xf32>
    %438 = vector.shape_cast %437 : vector<1x8x128xf32> to vector<8x128xf32>
    %439 = arith.mulf %428, %438 : vector<8x128xf32>
    %440 = arith.addf %376, %439 : vector<8x128xf32>
    %441 = arith.mulf %430, %438 : vector<8x128xf32>
    %442 = arith.addf %378, %441 : vector<8x128xf32>
    %c2_294 = arith.constant 2 : index
    %c48_295 = arith.constant 48 : index
    %c0_296 = arith.constant 0 : index
    %443 = vector.load %arg3[%c2_294, %c48_295, %c0_296] : memref<10x192x128xf32, #tpu.memory_space<vmem>>, vector<1x8x128xf32>
    %444 = vector.shape_cast %443 : vector<1x8x128xf32> to vector<8x128xf32>
    %445 = arith.mulf %428, %444 : vector<8x128xf32>
    %446 = arith.addf %382, %445 : vector<8x128xf32>
    %447 = arith.mulf %430, %444 : vector<8x128xf32>
    %448 = arith.addf %384, %447 : vector<8x128xf32>
    %c3_297 = arith.constant 3 : index
    %c48_298 = arith.constant 48 : index
    %c0_299 = arith.constant 0 : index
    %449 = vector.load %arg3[%c3_297, %c48_298, %c0_299] : memref<10x192x128xf32, #tpu.memory_space<vmem>>, vector<1x8x128xf32>
    %450 = vector.shape_cast %449 : vector<1x8x128xf32> to vector<8x128xf32>
    %451 = arith.mulf %428, %450 : vector<8x128xf32>
    %452 = arith.addf %388, %451 : vector<8x128xf32>
    %453 = arith.mulf %430, %450 : vector<8x128xf32>
    %454 = arith.addf %390, %453 : vector<8x128xf32>
    %c4_300 = arith.constant 4 : index
    %c48_301 = arith.constant 48 : index
    %c0_302 = arith.constant 0 : index
    %455 = vector.load %arg3[%c4_300, %c48_301, %c0_302] : memref<10x192x128xf32, #tpu.memory_space<vmem>>, vector<1x8x128xf32>
    %456 = vector.shape_cast %455 : vector<1x8x128xf32> to vector<8x128xf32>
    %457 = arith.mulf %428, %456 : vector<8x128xf32>
    %458 = arith.addf %394, %457 : vector<8x128xf32>
    %459 = arith.mulf %430, %456 : vector<8x128xf32>
    %460 = arith.addf %396, %459 : vector<8x128xf32>
    %c5_303 = arith.constant 5 : index
    %c48_304 = arith.constant 48 : index
    %c0_305 = arith.constant 0 : index
    %461 = vector.load %arg3[%c5_303, %c48_304, %c0_305] : memref<10x192x128xf32, #tpu.memory_space<vmem>>, vector<1x8x128xf32>
    %462 = vector.shape_cast %461 : vector<1x8x128xf32> to vector<8x128xf32>
    %463 = arith.mulf %428, %462 : vector<8x128xf32>
    %464 = arith.addf %400, %463 : vector<8x128xf32>
    %465 = arith.mulf %430, %462 : vector<8x128xf32>
    %466 = arith.addf %402, %465 : vector<8x128xf32>
    %c6_306 = arith.constant 6 : index
    %c48_307 = arith.constant 48 : index
    %c0_308 = arith.constant 0 : index
    %467 = vector.load %arg3[%c6_306, %c48_307, %c0_308] : memref<10x192x128xf32, #tpu.memory_space<vmem>>, vector<1x8x128xf32>
    %468 = vector.shape_cast %467 : vector<1x8x128xf32> to vector<8x128xf32>
    %469 = arith.mulf %428, %468 : vector<8x128xf32>
    %470 = arith.addf %406, %469 : vector<8x128xf32>
    %471 = arith.mulf %430, %468 : vector<8x128xf32>
    %472 = arith.addf %408, %471 : vector<8x128xf32>
    %c7_309 = arith.constant 7 : index
    %c48_310 = arith.constant 48 : index
    %c0_311 = arith.constant 0 : index
    %473 = vector.load %arg3[%c7_309, %c48_310, %c0_311] : memref<10x192x128xf32, #tpu.memory_space<vmem>>, vector<1x8x128xf32>
    %474 = vector.shape_cast %473 : vector<1x8x128xf32> to vector<8x128xf32>
    %475 = arith.mulf %428, %474 : vector<8x128xf32>
    %476 = arith.addf %412, %475 : vector<8x128xf32>
    %477 = arith.mulf %430, %474 : vector<8x128xf32>
    %478 = arith.addf %414, %477 : vector<8x128xf32>
    %c8_312 = arith.constant 8 : index
    %c48_313 = arith.constant 48 : index
    %c0_314 = arith.constant 0 : index
    %479 = vector.load %arg3[%c8_312, %c48_313, %c0_314] : memref<10x192x128xf32, #tpu.memory_space<vmem>>, vector<1x8x128xf32>
    %480 = vector.shape_cast %479 : vector<1x8x128xf32> to vector<8x128xf32>
    %481 = arith.mulf %428, %480 : vector<8x128xf32>
    %482 = arith.addf %418, %481 : vector<8x128xf32>
    %483 = arith.mulf %430, %480 : vector<8x128xf32>
    %484 = arith.addf %420, %483 : vector<8x128xf32>
    %c9_315 = arith.constant 9 : index
    %c48_316 = arith.constant 48 : index
    %c0_317 = arith.constant 0 : index
    %485 = vector.load %arg3[%c9_315, %c48_316, %c0_317] : memref<10x192x128xf32, #tpu.memory_space<vmem>>, vector<1x8x128xf32>
    %486 = vector.shape_cast %485 : vector<1x8x128xf32> to vector<8x128xf32>
    %487 = arith.mulf %428, %486 : vector<8x128xf32>
    %488 = arith.addf %424, %487 : vector<8x128xf32>
    %489 = arith.mulf %430, %486 : vector<8x128xf32>
    %490 = arith.addf %426, %489 : vector<8x128xf32>
    %c0_318 = arith.constant 0 : index
    %c56 = arith.constant 56 : index
    %c0_319 = arith.constant 0 : index
    %491 = vector.load %arg2[%c0_318, %c56, %c0_319] : memref<2x192x128xf32, #tpu.memory_space<vmem>>, vector<1x8x128xf32>
    %492 = vector.shape_cast %491 : vector<1x8x128xf32> to vector<8x128xf32>
    %c1_320 = arith.constant 1 : index
    %c56_321 = arith.constant 56 : index
    %c0_322 = arith.constant 0 : index
    %493 = vector.load %arg2[%c1_320, %c56_321, %c0_322] : memref<2x192x128xf32, #tpu.memory_space<vmem>>, vector<1x8x128xf32>
    %494 = vector.shape_cast %493 : vector<1x8x128xf32> to vector<8x128xf32>
    %c0_323 = arith.constant 0 : index
    %c56_324 = arith.constant 56 : index
    %c0_325 = arith.constant 0 : index
    %495 = vector.load %arg3[%c0_323, %c56_324, %c0_325] : memref<10x192x128xf32, #tpu.memory_space<vmem>>, vector<1x8x128xf32>
    %496 = vector.shape_cast %495 : vector<1x8x128xf32> to vector<8x128xf32>
    %497 = arith.mulf %492, %496 : vector<8x128xf32>
    %498 = arith.addf %434, %497 : vector<8x128xf32>
    %499 = arith.mulf %494, %496 : vector<8x128xf32>
    %500 = arith.addf %436, %499 : vector<8x128xf32>
    %c1_326 = arith.constant 1 : index
    %c56_327 = arith.constant 56 : index
    %c0_328 = arith.constant 0 : index
    %501 = vector.load %arg3[%c1_326, %c56_327, %c0_328] : memref<10x192x128xf32, #tpu.memory_space<vmem>>, vector<1x8x128xf32>
    %502 = vector.shape_cast %501 : vector<1x8x128xf32> to vector<8x128xf32>
    %503 = arith.mulf %492, %502 : vector<8x128xf32>
    %504 = arith.addf %440, %503 : vector<8x128xf32>
    %505 = arith.mulf %494, %502 : vector<8x128xf32>
    %506 = arith.addf %442, %505 : vector<8x128xf32>
    %c2_329 = arith.constant 2 : index
    %c56_330 = arith.constant 56 : index
    %c0_331 = arith.constant 0 : index
    %507 = vector.load %arg3[%c2_329, %c56_330, %c0_331] : memref<10x192x128xf32, #tpu.memory_space<vmem>>, vector<1x8x128xf32>
    %508 = vector.shape_cast %507 : vector<1x8x128xf32> to vector<8x128xf32>
    %509 = arith.mulf %492, %508 : vector<8x128xf32>
    %510 = arith.addf %446, %509 : vector<8x128xf32>
    %511 = arith.mulf %494, %508 : vector<8x128xf32>
    %512 = arith.addf %448, %511 : vector<8x128xf32>
    %c3_332 = arith.constant 3 : index
    %c56_333 = arith.constant 56 : index
    %c0_334 = arith.constant 0 : index
    %513 = vector.load %arg3[%c3_332, %c56_333, %c0_334] : memref<10x192x128xf32, #tpu.memory_space<vmem>>, vector<1x8x128xf32>
    %514 = vector.shape_cast %513 : vector<1x8x128xf32> to vector<8x128xf32>
    %515 = arith.mulf %492, %514 : vector<8x128xf32>
    %516 = arith.addf %452, %515 : vector<8x128xf32>
    %517 = arith.mulf %494, %514 : vector<8x128xf32>
    %518 = arith.addf %454, %517 : vector<8x128xf32>
    %c4_335 = arith.constant 4 : index
    %c56_336 = arith.constant 56 : index
    %c0_337 = arith.constant 0 : index
    %519 = vector.load %arg3[%c4_335, %c56_336, %c0_337] : memref<10x192x128xf32, #tpu.memory_space<vmem>>, vector<1x8x128xf32>
    %520 = vector.shape_cast %519 : vector<1x8x128xf32> to vector<8x128xf32>
    %521 = arith.mulf %492, %520 : vector<8x128xf32>
    %522 = arith.addf %458, %521 : vector<8x128xf32>
    %523 = arith.mulf %494, %520 : vector<8x128xf32>
    %524 = arith.addf %460, %523 : vector<8x128xf32>
    %c5_338 = arith.constant 5 : index
    %c56_339 = arith.constant 56 : index
    %c0_340 = arith.constant 0 : index
    %525 = vector.load %arg3[%c5_338, %c56_339, %c0_340] : memref<10x192x128xf32, #tpu.memory_space<vmem>>, vector<1x8x128xf32>
    %526 = vector.shape_cast %525 : vector<1x8x128xf32> to vector<8x128xf32>
    %527 = arith.mulf %492, %526 : vector<8x128xf32>
    %528 = arith.addf %464, %527 : vector<8x128xf32>
    %529 = arith.mulf %494, %526 : vector<8x128xf32>
    %530 = arith.addf %466, %529 : vector<8x128xf32>
    %c6_341 = arith.constant 6 : index
    %c56_342 = arith.constant 56 : index
    %c0_343 = arith.constant 0 : index
    %531 = vector.load %arg3[%c6_341, %c56_342, %c0_343] : memref<10x192x128xf32, #tpu.memory_space<vmem>>, vector<1x8x128xf32>
    %532 = vector.shape_cast %531 : vector<1x8x128xf32> to vector<8x128xf32>
    %533 = arith.mulf %492, %532 : vector<8x128xf32>
    %534 = arith.addf %470, %533 : vector<8x128xf32>
    %535 = arith.mulf %494, %532 : vector<8x128xf32>
    %536 = arith.addf %472, %535 : vector<8x128xf32>
    %c7_344 = arith.constant 7 : index
    %c56_345 = arith.constant 56 : index
    %c0_346 = arith.constant 0 : index
    %537 = vector.load %arg3[%c7_344, %c56_345, %c0_346] : memref<10x192x128xf32, #tpu.memory_space<vmem>>, vector<1x8x128xf32>
    %538 = vector.shape_cast %537 : vector<1x8x128xf32> to vector<8x128xf32>
    %539 = arith.mulf %492, %538 : vector<8x128xf32>
    %540 = arith.addf %476, %539 : vector<8x128xf32>
    %541 = arith.mulf %494, %538 : vector<8x128xf32>
    %542 = arith.addf %478, %541 : vector<8x128xf32>
    %c8_347 = arith.constant 8 : index
    %c56_348 = arith.constant 56 : index
    %c0_349 = arith.constant 0 : index
    %543 = vector.load %arg3[%c8_347, %c56_348, %c0_349] : memref<10x192x128xf32, #tpu.memory_space<vmem>>, vector<1x8x128xf32>
    %544 = vector.shape_cast %543 : vector<1x8x128xf32> to vector<8x128xf32>
    %545 = arith.mulf %492, %544 : vector<8x128xf32>
    %546 = arith.addf %482, %545 : vector<8x128xf32>
    %547 = arith.mulf %494, %544 : vector<8x128xf32>
    %548 = arith.addf %484, %547 : vector<8x128xf32>
    %c9_350 = arith.constant 9 : index
    %c56_351 = arith.constant 56 : index
    %c0_352 = arith.constant 0 : index
    %549 = vector.load %arg3[%c9_350, %c56_351, %c0_352] : memref<10x192x128xf32, #tpu.memory_space<vmem>>, vector<1x8x128xf32>
    %550 = vector.shape_cast %549 : vector<1x8x128xf32> to vector<8x128xf32>
    %551 = arith.mulf %492, %550 : vector<8x128xf32>
    %552 = arith.addf %488, %551 : vector<8x128xf32>
    %553 = arith.mulf %494, %550 : vector<8x128xf32>
    %554 = arith.addf %490, %553 : vector<8x128xf32>
    %c0_353 = arith.constant 0 : index
    %c64 = arith.constant 64 : index
    %c0_354 = arith.constant 0 : index
    %555 = vector.load %arg2[%c0_353, %c64, %c0_354] : memref<2x192x128xf32, #tpu.memory_space<vmem>>, vector<1x8x128xf32>
    %556 = vector.shape_cast %555 : vector<1x8x128xf32> to vector<8x128xf32>
    %c1_355 = arith.constant 1 : index
    %c64_356 = arith.constant 64 : index
    %c0_357 = arith.constant 0 : index
    %557 = vector.load %arg2[%c1_355, %c64_356, %c0_357] : memref<2x192x128xf32, #tpu.memory_space<vmem>>, vector<1x8x128xf32>
    %558 = vector.shape_cast %557 : vector<1x8x128xf32> to vector<8x128xf32>
    %c0_358 = arith.constant 0 : index
    %c64_359 = arith.constant 64 : index
    %c0_360 = arith.constant 0 : index
    %559 = vector.load %arg3[%c0_358, %c64_359, %c0_360] : memref<10x192x128xf32, #tpu.memory_space<vmem>>, vector<1x8x128xf32>
    %560 = vector.shape_cast %559 : vector<1x8x128xf32> to vector<8x128xf32>
    %561 = arith.mulf %556, %560 : vector<8x128xf32>
    %562 = arith.addf %498, %561 : vector<8x128xf32>
    %563 = arith.mulf %558, %560 : vector<8x128xf32>
    %564 = arith.addf %500, %563 : vector<8x128xf32>
    %c1_361 = arith.constant 1 : index
    %c64_362 = arith.constant 64 : index
    %c0_363 = arith.constant 0 : index
    %565 = vector.load %arg3[%c1_361, %c64_362, %c0_363] : memref<10x192x128xf32, #tpu.memory_space<vmem>>, vector<1x8x128xf32>
    %566 = vector.shape_cast %565 : vector<1x8x128xf32> to vector<8x128xf32>
    %567 = arith.mulf %556, %566 : vector<8x128xf32>
    %568 = arith.addf %504, %567 : vector<8x128xf32>
    %569 = arith.mulf %558, %566 : vector<8x128xf32>
    %570 = arith.addf %506, %569 : vector<8x128xf32>
    %c2_364 = arith.constant 2 : index
    %c64_365 = arith.constant 64 : index
    %c0_366 = arith.constant 0 : index
    %571 = vector.load %arg3[%c2_364, %c64_365, %c0_366] : memref<10x192x128xf32, #tpu.memory_space<vmem>>, vector<1x8x128xf32>
    %572 = vector.shape_cast %571 : vector<1x8x128xf32> to vector<8x128xf32>
    %573 = arith.mulf %556, %572 : vector<8x128xf32>
    %574 = arith.addf %510, %573 : vector<8x128xf32>
    %575 = arith.mulf %558, %572 : vector<8x128xf32>
    %576 = arith.addf %512, %575 : vector<8x128xf32>
    %c3_367 = arith.constant 3 : index
    %c64_368 = arith.constant 64 : index
    %c0_369 = arith.constant 0 : index
    %577 = vector.load %arg3[%c3_367, %c64_368, %c0_369] : memref<10x192x128xf32, #tpu.memory_space<vmem>>, vector<1x8x128xf32>
    %578 = vector.shape_cast %577 : vector<1x8x128xf32> to vector<8x128xf32>
    %579 = arith.mulf %556, %578 : vector<8x128xf32>
    %580 = arith.addf %516, %579 : vector<8x128xf32>
    %581 = arith.mulf %558, %578 : vector<8x128xf32>
    %582 = arith.addf %518, %581 : vector<8x128xf32>
    %c4_370 = arith.constant 4 : index
    %c64_371 = arith.constant 64 : index
    %c0_372 = arith.constant 0 : index
    %583 = vector.load %arg3[%c4_370, %c64_371, %c0_372] : memref<10x192x128xf32, #tpu.memory_space<vmem>>, vector<1x8x128xf32>
    %584 = vector.shape_cast %583 : vector<1x8x128xf32> to vector<8x128xf32>
    %585 = arith.mulf %556, %584 : vector<8x128xf32>
    %586 = arith.addf %522, %585 : vector<8x128xf32>
    %587 = arith.mulf %558, %584 : vector<8x128xf32>
    %588 = arith.addf %524, %587 : vector<8x128xf32>
    %c5_373 = arith.constant 5 : index
    %c64_374 = arith.constant 64 : index
    %c0_375 = arith.constant 0 : index
    %589 = vector.load %arg3[%c5_373, %c64_374, %c0_375] : memref<10x192x128xf32, #tpu.memory_space<vmem>>, vector<1x8x128xf32>
    %590 = vector.shape_cast %589 : vector<1x8x128xf32> to vector<8x128xf32>
    %591 = arith.mulf %556, %590 : vector<8x128xf32>
    %592 = arith.addf %528, %591 : vector<8x128xf32>
    %593 = arith.mulf %558, %590 : vector<8x128xf32>
    %594 = arith.addf %530, %593 : vector<8x128xf32>
    %c6_376 = arith.constant 6 : index
    %c64_377 = arith.constant 64 : index
    %c0_378 = arith.constant 0 : index
    %595 = vector.load %arg3[%c6_376, %c64_377, %c0_378] : memref<10x192x128xf32, #tpu.memory_space<vmem>>, vector<1x8x128xf32>
    %596 = vector.shape_cast %595 : vector<1x8x128xf32> to vector<8x128xf32>
    %597 = arith.mulf %556, %596 : vector<8x128xf32>
    %598 = arith.addf %534, %597 : vector<8x128xf32>
    %599 = arith.mulf %558, %596 : vector<8x128xf32>
    %600 = arith.addf %536, %599 : vector<8x128xf32>
    %c7_379 = arith.constant 7 : index
    %c64_380 = arith.constant 64 : index
    %c0_381 = arith.constant 0 : index
    %601 = vector.load %arg3[%c7_379, %c64_380, %c0_381] : memref<10x192x128xf32, #tpu.memory_space<vmem>>, vector<1x8x128xf32>
    %602 = vector.shape_cast %601 : vector<1x8x128xf32> to vector<8x128xf32>
    %603 = arith.mulf %556, %602 : vector<8x128xf32>
    %604 = arith.addf %540, %603 : vector<8x128xf32>
    %605 = arith.mulf %558, %602 : vector<8x128xf32>
    %606 = arith.addf %542, %605 : vector<8x128xf32>
    %c8_382 = arith.constant 8 : index
    %c64_383 = arith.constant 64 : index
    %c0_384 = arith.constant 0 : index
    %607 = vector.load %arg3[%c8_382, %c64_383, %c0_384] : memref<10x192x128xf32, #tpu.memory_space<vmem>>, vector<1x8x128xf32>
    %608 = vector.shape_cast %607 : vector<1x8x128xf32> to vector<8x128xf32>
    %609 = arith.mulf %556, %608 : vector<8x128xf32>
    %610 = arith.addf %546, %609 : vector<8x128xf32>
    %611 = arith.mulf %558, %608 : vector<8x128xf32>
    %612 = arith.addf %548, %611 : vector<8x128xf32>
    %c9_385 = arith.constant 9 : index
    %c64_386 = arith.constant 64 : index
    %c0_387 = arith.constant 0 : index
    %613 = vector.load %arg3[%c9_385, %c64_386, %c0_387] : memref<10x192x128xf32, #tpu.memory_space<vmem>>, vector<1x8x128xf32>
    %614 = vector.shape_cast %613 : vector<1x8x128xf32> to vector<8x128xf32>
    %615 = arith.mulf %556, %614 : vector<8x128xf32>
    %616 = arith.addf %552, %615 : vector<8x128xf32>
    %617 = arith.mulf %558, %614 : vector<8x128xf32>
    %618 = arith.addf %554, %617 : vector<8x128xf32>
    %c0_388 = arith.constant 0 : index
    %c72 = arith.constant 72 : index
    %c0_389 = arith.constant 0 : index
    %619 = vector.load %arg2[%c0_388, %c72, %c0_389] : memref<2x192x128xf32, #tpu.memory_space<vmem>>, vector<1x8x128xf32>
    %620 = vector.shape_cast %619 : vector<1x8x128xf32> to vector<8x128xf32>
    %c1_390 = arith.constant 1 : index
    %c72_391 = arith.constant 72 : index
    %c0_392 = arith.constant 0 : index
    %621 = vector.load %arg2[%c1_390, %c72_391, %c0_392] : memref<2x192x128xf32, #tpu.memory_space<vmem>>, vector<1x8x128xf32>
    %622 = vector.shape_cast %621 : vector<1x8x128xf32> to vector<8x128xf32>
    %c0_393 = arith.constant 0 : index
    %c72_394 = arith.constant 72 : index
    %c0_395 = arith.constant 0 : index
    %623 = vector.load %arg3[%c0_393, %c72_394, %c0_395] : memref<10x192x128xf32, #tpu.memory_space<vmem>>, vector<1x8x128xf32>
    %624 = vector.shape_cast %623 : vector<1x8x128xf32> to vector<8x128xf32>
    %625 = arith.mulf %620, %624 : vector<8x128xf32>
    %626 = arith.addf %562, %625 : vector<8x128xf32>
    %627 = arith.mulf %622, %624 : vector<8x128xf32>
    %628 = arith.addf %564, %627 : vector<8x128xf32>
    %c1_396 = arith.constant 1 : index
    %c72_397 = arith.constant 72 : index
    %c0_398 = arith.constant 0 : index
    %629 = vector.load %arg3[%c1_396, %c72_397, %c0_398] : memref<10x192x128xf32, #tpu.memory_space<vmem>>, vector<1x8x128xf32>
    %630 = vector.shape_cast %629 : vector<1x8x128xf32> to vector<8x128xf32>
    %631 = arith.mulf %620, %630 : vector<8x128xf32>
    %632 = arith.addf %568, %631 : vector<8x128xf32>
    %633 = arith.mulf %622, %630 : vector<8x128xf32>
    %634 = arith.addf %570, %633 : vector<8x128xf32>
    %c2_399 = arith.constant 2 : index
    %c72_400 = arith.constant 72 : index
    %c0_401 = arith.constant 0 : index
    %635 = vector.load %arg3[%c2_399, %c72_400, %c0_401] : memref<10x192x128xf32, #tpu.memory_space<vmem>>, vector<1x8x128xf32>
    %636 = vector.shape_cast %635 : vector<1x8x128xf32> to vector<8x128xf32>
    %637 = arith.mulf %620, %636 : vector<8x128xf32>
    %638 = arith.addf %574, %637 : vector<8x128xf32>
    %639 = arith.mulf %622, %636 : vector<8x128xf32>
    %640 = arith.addf %576, %639 : vector<8x128xf32>
    %c3_402 = arith.constant 3 : index
    %c72_403 = arith.constant 72 : index
    %c0_404 = arith.constant 0 : index
    %641 = vector.load %arg3[%c3_402, %c72_403, %c0_404] : memref<10x192x128xf32, #tpu.memory_space<vmem>>, vector<1x8x128xf32>
    %642 = vector.shape_cast %641 : vector<1x8x128xf32> to vector<8x128xf32>
    %643 = arith.mulf %620, %642 : vector<8x128xf32>
    %644 = arith.addf %580, %643 : vector<8x128xf32>
    %645 = arith.mulf %622, %642 : vector<8x128xf32>
    %646 = arith.addf %582, %645 : vector<8x128xf32>
    %c4_405 = arith.constant 4 : index
    %c72_406 = arith.constant 72 : index
    %c0_407 = arith.constant 0 : index
    %647 = vector.load %arg3[%c4_405, %c72_406, %c0_407] : memref<10x192x128xf32, #tpu.memory_space<vmem>>, vector<1x8x128xf32>
    %648 = vector.shape_cast %647 : vector<1x8x128xf32> to vector<8x128xf32>
    %649 = arith.mulf %620, %648 : vector<8x128xf32>
    %650 = arith.addf %586, %649 : vector<8x128xf32>
    %651 = arith.mulf %622, %648 : vector<8x128xf32>
    %652 = arith.addf %588, %651 : vector<8x128xf32>
    %c5_408 = arith.constant 5 : index
    %c72_409 = arith.constant 72 : index
    %c0_410 = arith.constant 0 : index
    %653 = vector.load %arg3[%c5_408, %c72_409, %c0_410] : memref<10x192x128xf32, #tpu.memory_space<vmem>>, vector<1x8x128xf32>
    %654 = vector.shape_cast %653 : vector<1x8x128xf32> to vector<8x128xf32>
    %655 = arith.mulf %620, %654 : vector<8x128xf32>
    %656 = arith.addf %592, %655 : vector<8x128xf32>
    %657 = arith.mulf %622, %654 : vector<8x128xf32>
    %658 = arith.addf %594, %657 : vector<8x128xf32>
    %c6_411 = arith.constant 6 : index
    %c72_412 = arith.constant 72 : index
    %c0_413 = arith.constant 0 : index
    %659 = vector.load %arg3[%c6_411, %c72_412, %c0_413] : memref<10x192x128xf32, #tpu.memory_space<vmem>>, vector<1x8x128xf32>
    %660 = vector.shape_cast %659 : vector<1x8x128xf32> to vector<8x128xf32>
    %661 = arith.mulf %620, %660 : vector<8x128xf32>
    %662 = arith.addf %598, %661 : vector<8x128xf32>
    %663 = arith.mulf %622, %660 : vector<8x128xf32>
    %664 = arith.addf %600, %663 : vector<8x128xf32>
    %c7_414 = arith.constant 7 : index
    %c72_415 = arith.constant 72 : index
    %c0_416 = arith.constant 0 : index
    %665 = vector.load %arg3[%c7_414, %c72_415, %c0_416] : memref<10x192x128xf32, #tpu.memory_space<vmem>>, vector<1x8x128xf32>
    %666 = vector.shape_cast %665 : vector<1x8x128xf32> to vector<8x128xf32>
    %667 = arith.mulf %620, %666 : vector<8x128xf32>
    %668 = arith.addf %604, %667 : vector<8x128xf32>
    %669 = arith.mulf %622, %666 : vector<8x128xf32>
    %670 = arith.addf %606, %669 : vector<8x128xf32>
    %c8_417 = arith.constant 8 : index
    %c72_418 = arith.constant 72 : index
    %c0_419 = arith.constant 0 : index
    %671 = vector.load %arg3[%c8_417, %c72_418, %c0_419] : memref<10x192x128xf32, #tpu.memory_space<vmem>>, vector<1x8x128xf32>
    %672 = vector.shape_cast %671 : vector<1x8x128xf32> to vector<8x128xf32>
    %673 = arith.mulf %620, %672 : vector<8x128xf32>
    %674 = arith.addf %610, %673 : vector<8x128xf32>
    %675 = arith.mulf %622, %672 : vector<8x128xf32>
    %676 = arith.addf %612, %675 : vector<8x128xf32>
    %c9_420 = arith.constant 9 : index
    %c72_421 = arith.constant 72 : index
    %c0_422 = arith.constant 0 : index
    %677 = vector.load %arg3[%c9_420, %c72_421, %c0_422] : memref<10x192x128xf32, #tpu.memory_space<vmem>>, vector<1x8x128xf32>
    %678 = vector.shape_cast %677 : vector<1x8x128xf32> to vector<8x128xf32>
    %679 = arith.mulf %620, %678 : vector<8x128xf32>
    %680 = arith.addf %616, %679 : vector<8x128xf32>
    %681 = arith.mulf %622, %678 : vector<8x128xf32>
    %682 = arith.addf %618, %681 : vector<8x128xf32>
    %c0_423 = arith.constant 0 : index
    %c80 = arith.constant 80 : index
    %c0_424 = arith.constant 0 : index
    %683 = vector.load %arg2[%c0_423, %c80, %c0_424] : memref<2x192x128xf32, #tpu.memory_space<vmem>>, vector<1x8x128xf32>
    %684 = vector.shape_cast %683 : vector<1x8x128xf32> to vector<8x128xf32>
    %c1_425 = arith.constant 1 : index
    %c80_426 = arith.constant 80 : index
    %c0_427 = arith.constant 0 : index
    %685 = vector.load %arg2[%c1_425, %c80_426, %c0_427] : memref<2x192x128xf32, #tpu.memory_space<vmem>>, vector<1x8x128xf32>
    %686 = vector.shape_cast %685 : vector<1x8x128xf32> to vector<8x128xf32>
    %c0_428 = arith.constant 0 : index
    %c80_429 = arith.constant 80 : index
    %c0_430 = arith.constant 0 : index
    %687 = vector.load %arg3[%c0_428, %c80_429, %c0_430] : memref<10x192x128xf32, #tpu.memory_space<vmem>>, vector<1x8x128xf32>
    %688 = vector.shape_cast %687 : vector<1x8x128xf32> to vector<8x128xf32>
    %689 = arith.mulf %684, %688 : vector<8x128xf32>
    %690 = arith.addf %626, %689 : vector<8x128xf32>
    %691 = arith.mulf %686, %688 : vector<8x128xf32>
    %692 = arith.addf %628, %691 : vector<8x128xf32>
    %c1_431 = arith.constant 1 : index
    %c80_432 = arith.constant 80 : index
    %c0_433 = arith.constant 0 : index
    %693 = vector.load %arg3[%c1_431, %c80_432, %c0_433] : memref<10x192x128xf32, #tpu.memory_space<vmem>>, vector<1x8x128xf32>
    %694 = vector.shape_cast %693 : vector<1x8x128xf32> to vector<8x128xf32>
    %695 = arith.mulf %684, %694 : vector<8x128xf32>
    %696 = arith.addf %632, %695 : vector<8x128xf32>
    %697 = arith.mulf %686, %694 : vector<8x128xf32>
    %698 = arith.addf %634, %697 : vector<8x128xf32>
    %c2_434 = arith.constant 2 : index
    %c80_435 = arith.constant 80 : index
    %c0_436 = arith.constant 0 : index
    %699 = vector.load %arg3[%c2_434, %c80_435, %c0_436] : memref<10x192x128xf32, #tpu.memory_space<vmem>>, vector<1x8x128xf32>
    %700 = vector.shape_cast %699 : vector<1x8x128xf32> to vector<8x128xf32>
    %701 = arith.mulf %684, %700 : vector<8x128xf32>
    %702 = arith.addf %638, %701 : vector<8x128xf32>
    %703 = arith.mulf %686, %700 : vector<8x128xf32>
    %704 = arith.addf %640, %703 : vector<8x128xf32>
    %c3_437 = arith.constant 3 : index
    %c80_438 = arith.constant 80 : index
    %c0_439 = arith.constant 0 : index
    %705 = vector.load %arg3[%c3_437, %c80_438, %c0_439] : memref<10x192x128xf32, #tpu.memory_space<vmem>>, vector<1x8x128xf32>
    %706 = vector.shape_cast %705 : vector<1x8x128xf32> to vector<8x128xf32>
    %707 = arith.mulf %684, %706 : vector<8x128xf32>
    %708 = arith.addf %644, %707 : vector<8x128xf32>
    %709 = arith.mulf %686, %706 : vector<8x128xf32>
    %710 = arith.addf %646, %709 : vector<8x128xf32>
    %c4_440 = arith.constant 4 : index
    %c80_441 = arith.constant 80 : index
    %c0_442 = arith.constant 0 : index
    %711 = vector.load %arg3[%c4_440, %c80_441, %c0_442] : memref<10x192x128xf32, #tpu.memory_space<vmem>>, vector<1x8x128xf32>
    %712 = vector.shape_cast %711 : vector<1x8x128xf32> to vector<8x128xf32>
    %713 = arith.mulf %684, %712 : vector<8x128xf32>
    %714 = arith.addf %650, %713 : vector<8x128xf32>
    %715 = arith.mulf %686, %712 : vector<8x128xf32>
    %716 = arith.addf %652, %715 : vector<8x128xf32>
    %c5_443 = arith.constant 5 : index
    %c80_444 = arith.constant 80 : index
    %c0_445 = arith.constant 0 : index
    %717 = vector.load %arg3[%c5_443, %c80_444, %c0_445] : memref<10x192x128xf32, #tpu.memory_space<vmem>>, vector<1x8x128xf32>
    %718 = vector.shape_cast %717 : vector<1x8x128xf32> to vector<8x128xf32>
    %719 = arith.mulf %684, %718 : vector<8x128xf32>
    %720 = arith.addf %656, %719 : vector<8x128xf32>
    %721 = arith.mulf %686, %718 : vector<8x128xf32>
    %722 = arith.addf %658, %721 : vector<8x128xf32>
    %c6_446 = arith.constant 6 : index
    %c80_447 = arith.constant 80 : index
    %c0_448 = arith.constant 0 : index
    %723 = vector.load %arg3[%c6_446, %c80_447, %c0_448] : memref<10x192x128xf32, #tpu.memory_space<vmem>>, vector<1x8x128xf32>
    %724 = vector.shape_cast %723 : vector<1x8x128xf32> to vector<8x128xf32>
    %725 = arith.mulf %684, %724 : vector<8x128xf32>
    %726 = arith.addf %662, %725 : vector<8x128xf32>
    %727 = arith.mulf %686, %724 : vector<8x128xf32>
    %728 = arith.addf %664, %727 : vector<8x128xf32>
    %c7_449 = arith.constant 7 : index
    %c80_450 = arith.constant 80 : index
    %c0_451 = arith.constant 0 : index
    %729 = vector.load %arg3[%c7_449, %c80_450, %c0_451] : memref<10x192x128xf32, #tpu.memory_space<vmem>>, vector<1x8x128xf32>
    %730 = vector.shape_cast %729 : vector<1x8x128xf32> to vector<8x128xf32>
    %731 = arith.mulf %684, %730 : vector<8x128xf32>
    %732 = arith.addf %668, %731 : vector<8x128xf32>
    %733 = arith.mulf %686, %730 : vector<8x128xf32>
    %734 = arith.addf %670, %733 : vector<8x128xf32>
    %c8_452 = arith.constant 8 : index
    %c80_453 = arith.constant 80 : index
    %c0_454 = arith.constant 0 : index
    %735 = vector.load %arg3[%c8_452, %c80_453, %c0_454] : memref<10x192x128xf32, #tpu.memory_space<vmem>>, vector<1x8x128xf32>
    %736 = vector.shape_cast %735 : vector<1x8x128xf32> to vector<8x128xf32>
    %737 = arith.mulf %684, %736 : vector<8x128xf32>
    %738 = arith.addf %674, %737 : vector<8x128xf32>
    %739 = arith.mulf %686, %736 : vector<8x128xf32>
    %740 = arith.addf %676, %739 : vector<8x128xf32>
    %c9_455 = arith.constant 9 : index
    %c80_456 = arith.constant 80 : index
    %c0_457 = arith.constant 0 : index
    %741 = vector.load %arg3[%c9_455, %c80_456, %c0_457] : memref<10x192x128xf32, #tpu.memory_space<vmem>>, vector<1x8x128xf32>
    %742 = vector.shape_cast %741 : vector<1x8x128xf32> to vector<8x128xf32>
    %743 = arith.mulf %684, %742 : vector<8x128xf32>
    %744 = arith.addf %680, %743 : vector<8x128xf32>
    %745 = arith.mulf %686, %742 : vector<8x128xf32>
    %746 = arith.addf %682, %745 : vector<8x128xf32>
    %c0_458 = arith.constant 0 : index
    %c88 = arith.constant 88 : index
    %c0_459 = arith.constant 0 : index
    %747 = vector.load %arg2[%c0_458, %c88, %c0_459] : memref<2x192x128xf32, #tpu.memory_space<vmem>>, vector<1x8x128xf32>
    %748 = vector.shape_cast %747 : vector<1x8x128xf32> to vector<8x128xf32>
    %c1_460 = arith.constant 1 : index
    %c88_461 = arith.constant 88 : index
    %c0_462 = arith.constant 0 : index
    %749 = vector.load %arg2[%c1_460, %c88_461, %c0_462] : memref<2x192x128xf32, #tpu.memory_space<vmem>>, vector<1x8x128xf32>
    %750 = vector.shape_cast %749 : vector<1x8x128xf32> to vector<8x128xf32>
    %c0_463 = arith.constant 0 : index
    %c88_464 = arith.constant 88 : index
    %c0_465 = arith.constant 0 : index
    %751 = vector.load %arg3[%c0_463, %c88_464, %c0_465] : memref<10x192x128xf32, #tpu.memory_space<vmem>>, vector<1x8x128xf32>
    %752 = vector.shape_cast %751 : vector<1x8x128xf32> to vector<8x128xf32>
    %753 = arith.mulf %748, %752 : vector<8x128xf32>
    %754 = arith.addf %690, %753 : vector<8x128xf32>
    %755 = arith.mulf %750, %752 : vector<8x128xf32>
    %756 = arith.addf %692, %755 : vector<8x128xf32>
    %c1_466 = arith.constant 1 : index
    %c88_467 = arith.constant 88 : index
    %c0_468 = arith.constant 0 : index
    %757 = vector.load %arg3[%c1_466, %c88_467, %c0_468] : memref<10x192x128xf32, #tpu.memory_space<vmem>>, vector<1x8x128xf32>
    %758 = vector.shape_cast %757 : vector<1x8x128xf32> to vector<8x128xf32>
    %759 = arith.mulf %748, %758 : vector<8x128xf32>
    %760 = arith.addf %696, %759 : vector<8x128xf32>
    %761 = arith.mulf %750, %758 : vector<8x128xf32>
    %762 = arith.addf %698, %761 : vector<8x128xf32>
    %c2_469 = arith.constant 2 : index
    %c88_470 = arith.constant 88 : index
    %c0_471 = arith.constant 0 : index
    %763 = vector.load %arg3[%c2_469, %c88_470, %c0_471] : memref<10x192x128xf32, #tpu.memory_space<vmem>>, vector<1x8x128xf32>
    %764 = vector.shape_cast %763 : vector<1x8x128xf32> to vector<8x128xf32>
    %765 = arith.mulf %748, %764 : vector<8x128xf32>
    %766 = arith.addf %702, %765 : vector<8x128xf32>
    %767 = arith.mulf %750, %764 : vector<8x128xf32>
    %768 = arith.addf %704, %767 : vector<8x128xf32>
    %c3_472 = arith.constant 3 : index
    %c88_473 = arith.constant 88 : index
    %c0_474 = arith.constant 0 : index
    %769 = vector.load %arg3[%c3_472, %c88_473, %c0_474] : memref<10x192x128xf32, #tpu.memory_space<vmem>>, vector<1x8x128xf32>
    %770 = vector.shape_cast %769 : vector<1x8x128xf32> to vector<8x128xf32>
    %771 = arith.mulf %748, %770 : vector<8x128xf32>
    %772 = arith.addf %708, %771 : vector<8x128xf32>
    %773 = arith.mulf %750, %770 : vector<8x128xf32>
    %774 = arith.addf %710, %773 : vector<8x128xf32>
    %c4_475 = arith.constant 4 : index
    %c88_476 = arith.constant 88 : index
    %c0_477 = arith.constant 0 : index
    %775 = vector.load %arg3[%c4_475, %c88_476, %c0_477] : memref<10x192x128xf32, #tpu.memory_space<vmem>>, vector<1x8x128xf32>
    %776 = vector.shape_cast %775 : vector<1x8x128xf32> to vector<8x128xf32>
    %777 = arith.mulf %748, %776 : vector<8x128xf32>
    %778 = arith.addf %714, %777 : vector<8x128xf32>
    %779 = arith.mulf %750, %776 : vector<8x128xf32>
    %780 = arith.addf %716, %779 : vector<8x128xf32>
    %c5_478 = arith.constant 5 : index
    %c88_479 = arith.constant 88 : index
    %c0_480 = arith.constant 0 : index
    %781 = vector.load %arg3[%c5_478, %c88_479, %c0_480] : memref<10x192x128xf32, #tpu.memory_space<vmem>>, vector<1x8x128xf32>
    %782 = vector.shape_cast %781 : vector<1x8x128xf32> to vector<8x128xf32>
    %783 = arith.mulf %748, %782 : vector<8x128xf32>
    %784 = arith.addf %720, %783 : vector<8x128xf32>
    %785 = arith.mulf %750, %782 : vector<8x128xf32>
    %786 = arith.addf %722, %785 : vector<8x128xf32>
    %c6_481 = arith.constant 6 : index
    %c88_482 = arith.constant 88 : index
    %c0_483 = arith.constant 0 : index
    %787 = vector.load %arg3[%c6_481, %c88_482, %c0_483] : memref<10x192x128xf32, #tpu.memory_space<vmem>>, vector<1x8x128xf32>
    %788 = vector.shape_cast %787 : vector<1x8x128xf32> to vector<8x128xf32>
    %789 = arith.mulf %748, %788 : vector<8x128xf32>
    %790 = arith.addf %726, %789 : vector<8x128xf32>
    %791 = arith.mulf %750, %788 : vector<8x128xf32>
    %792 = arith.addf %728, %791 : vector<8x128xf32>
    %c7_484 = arith.constant 7 : index
    %c88_485 = arith.constant 88 : index
    %c0_486 = arith.constant 0 : index
    %793 = vector.load %arg3[%c7_484, %c88_485, %c0_486] : memref<10x192x128xf32, #tpu.memory_space<vmem>>, vector<1x8x128xf32>
    %794 = vector.shape_cast %793 : vector<1x8x128xf32> to vector<8x128xf32>
    %795 = arith.mulf %748, %794 : vector<8x128xf32>
    %796 = arith.addf %732, %795 : vector<8x128xf32>
    %797 = arith.mulf %750, %794 : vector<8x128xf32>
    %798 = arith.addf %734, %797 : vector<8x128xf32>
    %c8_487 = arith.constant 8 : index
    %c88_488 = arith.constant 88 : index
    %c0_489 = arith.constant 0 : index
    %799 = vector.load %arg3[%c8_487, %c88_488, %c0_489] : memref<10x192x128xf32, #tpu.memory_space<vmem>>, vector<1x8x128xf32>
    %800 = vector.shape_cast %799 : vector<1x8x128xf32> to vector<8x128xf32>
    %801 = arith.mulf %748, %800 : vector<8x128xf32>
    %802 = arith.addf %738, %801 : vector<8x128xf32>
    %803 = arith.mulf %750, %800 : vector<8x128xf32>
    %804 = arith.addf %740, %803 : vector<8x128xf32>
    %c9_490 = arith.constant 9 : index
    %c88_491 = arith.constant 88 : index
    %c0_492 = arith.constant 0 : index
    %805 = vector.load %arg3[%c9_490, %c88_491, %c0_492] : memref<10x192x128xf32, #tpu.memory_space<vmem>>, vector<1x8x128xf32>
    %806 = vector.shape_cast %805 : vector<1x8x128xf32> to vector<8x128xf32>
    %807 = arith.mulf %748, %806 : vector<8x128xf32>
    %808 = arith.addf %744, %807 : vector<8x128xf32>
    %809 = arith.mulf %750, %806 : vector<8x128xf32>
    %810 = arith.addf %746, %809 : vector<8x128xf32>
    %c0_493 = arith.constant 0 : index
    %c96 = arith.constant 96 : index
    %c0_494 = arith.constant 0 : index
    %811 = vector.load %arg2[%c0_493, %c96, %c0_494] : memref<2x192x128xf32, #tpu.memory_space<vmem>>, vector<1x8x128xf32>
    %812 = vector.shape_cast %811 : vector<1x8x128xf32> to vector<8x128xf32>
    %c1_495 = arith.constant 1 : index
    %c96_496 = arith.constant 96 : index
    %c0_497 = arith.constant 0 : index
    %813 = vector.load %arg2[%c1_495, %c96_496, %c0_497] : memref<2x192x128xf32, #tpu.memory_space<vmem>>, vector<1x8x128xf32>
    %814 = vector.shape_cast %813 : vector<1x8x128xf32> to vector<8x128xf32>
    %c0_498 = arith.constant 0 : index
    %c96_499 = arith.constant 96 : index
    %c0_500 = arith.constant 0 : index
    %815 = vector.load %arg3[%c0_498, %c96_499, %c0_500] : memref<10x192x128xf32, #tpu.memory_space<vmem>>, vector<1x8x128xf32>
    %816 = vector.shape_cast %815 : vector<1x8x128xf32> to vector<8x128xf32>
    %817 = arith.mulf %812, %816 : vector<8x128xf32>
    %818 = arith.addf %754, %817 : vector<8x128xf32>
    %819 = arith.mulf %814, %816 : vector<8x128xf32>
    %820 = arith.addf %756, %819 : vector<8x128xf32>
    %c1_501 = arith.constant 1 : index
    %c96_502 = arith.constant 96 : index
    %c0_503 = arith.constant 0 : index
    %821 = vector.load %arg3[%c1_501, %c96_502, %c0_503] : memref<10x192x128xf32, #tpu.memory_space<vmem>>, vector<1x8x128xf32>
    %822 = vector.shape_cast %821 : vector<1x8x128xf32> to vector<8x128xf32>
    %823 = arith.mulf %812, %822 : vector<8x128xf32>
    %824 = arith.addf %760, %823 : vector<8x128xf32>
    %825 = arith.mulf %814, %822 : vector<8x128xf32>
    %826 = arith.addf %762, %825 : vector<8x128xf32>
    %c2_504 = arith.constant 2 : index
    %c96_505 = arith.constant 96 : index
    %c0_506 = arith.constant 0 : index
    %827 = vector.load %arg3[%c2_504, %c96_505, %c0_506] : memref<10x192x128xf32, #tpu.memory_space<vmem>>, vector<1x8x128xf32>
    %828 = vector.shape_cast %827 : vector<1x8x128xf32> to vector<8x128xf32>
    %829 = arith.mulf %812, %828 : vector<8x128xf32>
    %830 = arith.addf %766, %829 : vector<8x128xf32>
    %831 = arith.mulf %814, %828 : vector<8x128xf32>
    %832 = arith.addf %768, %831 : vector<8x128xf32>
    %c3_507 = arith.constant 3 : index
    %c96_508 = arith.constant 96 : index
    %c0_509 = arith.constant 0 : index
    %833 = vector.load %arg3[%c3_507, %c96_508, %c0_509] : memref<10x192x128xf32, #tpu.memory_space<vmem>>, vector<1x8x128xf32>
    %834 = vector.shape_cast %833 : vector<1x8x128xf32> to vector<8x128xf32>
    %835 = arith.mulf %812, %834 : vector<8x128xf32>
    %836 = arith.addf %772, %835 : vector<8x128xf32>
    %837 = arith.mulf %814, %834 : vector<8x128xf32>
    %838 = arith.addf %774, %837 : vector<8x128xf32>
    %c4_510 = arith.constant 4 : index
    %c96_511 = arith.constant 96 : index
    %c0_512 = arith.constant 0 : index
    %839 = vector.load %arg3[%c4_510, %c96_511, %c0_512] : memref<10x192x128xf32, #tpu.memory_space<vmem>>, vector<1x8x128xf32>
    %840 = vector.shape_cast %839 : vector<1x8x128xf32> to vector<8x128xf32>
    %841 = arith.mulf %812, %840 : vector<8x128xf32>
    %842 = arith.addf %778, %841 : vector<8x128xf32>
    %843 = arith.mulf %814, %840 : vector<8x128xf32>
    %844 = arith.addf %780, %843 : vector<8x128xf32>
    %c5_513 = arith.constant 5 : index
    %c96_514 = arith.constant 96 : index
    %c0_515 = arith.constant 0 : index
    %845 = vector.load %arg3[%c5_513, %c96_514, %c0_515] : memref<10x192x128xf32, #tpu.memory_space<vmem>>, vector<1x8x128xf32>
    %846 = vector.shape_cast %845 : vector<1x8x128xf32> to vector<8x128xf32>
    %847 = arith.mulf %812, %846 : vector<8x128xf32>
    %848 = arith.addf %784, %847 : vector<8x128xf32>
    %849 = arith.mulf %814, %846 : vector<8x128xf32>
    %850 = arith.addf %786, %849 : vector<8x128xf32>
    %c6_516 = arith.constant 6 : index
    %c96_517 = arith.constant 96 : index
    %c0_518 = arith.constant 0 : index
    %851 = vector.load %arg3[%c6_516, %c96_517, %c0_518] : memref<10x192x128xf32, #tpu.memory_space<vmem>>, vector<1x8x128xf32>
    %852 = vector.shape_cast %851 : vector<1x8x128xf32> to vector<8x128xf32>
    %853 = arith.mulf %812, %852 : vector<8x128xf32>
    %854 = arith.addf %790, %853 : vector<8x128xf32>
    %855 = arith.mulf %814, %852 : vector<8x128xf32>
    %856 = arith.addf %792, %855 : vector<8x128xf32>
    %c7_519 = arith.constant 7 : index
    %c96_520 = arith.constant 96 : index
    %c0_521 = arith.constant 0 : index
    %857 = vector.load %arg3[%c7_519, %c96_520, %c0_521] : memref<10x192x128xf32, #tpu.memory_space<vmem>>, vector<1x8x128xf32>
    %858 = vector.shape_cast %857 : vector<1x8x128xf32> to vector<8x128xf32>
    %859 = arith.mulf %812, %858 : vector<8x128xf32>
    %860 = arith.addf %796, %859 : vector<8x128xf32>
    %861 = arith.mulf %814, %858 : vector<8x128xf32>
    %862 = arith.addf %798, %861 : vector<8x128xf32>
    %c8_522 = arith.constant 8 : index
    %c96_523 = arith.constant 96 : index
    %c0_524 = arith.constant 0 : index
    %863 = vector.load %arg3[%c8_522, %c96_523, %c0_524] : memref<10x192x128xf32, #tpu.memory_space<vmem>>, vector<1x8x128xf32>
    %864 = vector.shape_cast %863 : vector<1x8x128xf32> to vector<8x128xf32>
    %865 = arith.mulf %812, %864 : vector<8x128xf32>
    %866 = arith.addf %802, %865 : vector<8x128xf32>
    %867 = arith.mulf %814, %864 : vector<8x128xf32>
    %868 = arith.addf %804, %867 : vector<8x128xf32>
    %c9_525 = arith.constant 9 : index
    %c96_526 = arith.constant 96 : index
    %c0_527 = arith.constant 0 : index
    %869 = vector.load %arg3[%c9_525, %c96_526, %c0_527] : memref<10x192x128xf32, #tpu.memory_space<vmem>>, vector<1x8x128xf32>
    %870 = vector.shape_cast %869 : vector<1x8x128xf32> to vector<8x128xf32>
    %871 = arith.mulf %812, %870 : vector<8x128xf32>
    %872 = arith.addf %808, %871 : vector<8x128xf32>
    %873 = arith.mulf %814, %870 : vector<8x128xf32>
    %874 = arith.addf %810, %873 : vector<8x128xf32>
    %c0_528 = arith.constant 0 : index
    %c104 = arith.constant 104 : index
    %c0_529 = arith.constant 0 : index
    %875 = vector.load %arg2[%c0_528, %c104, %c0_529] : memref<2x192x128xf32, #tpu.memory_space<vmem>>, vector<1x8x128xf32>
    %876 = vector.shape_cast %875 : vector<1x8x128xf32> to vector<8x128xf32>
    %c1_530 = arith.constant 1 : index
    %c104_531 = arith.constant 104 : index
    %c0_532 = arith.constant 0 : index
    %877 = vector.load %arg2[%c1_530, %c104_531, %c0_532] : memref<2x192x128xf32, #tpu.memory_space<vmem>>, vector<1x8x128xf32>
    %878 = vector.shape_cast %877 : vector<1x8x128xf32> to vector<8x128xf32>
    %c0_533 = arith.constant 0 : index
    %c104_534 = arith.constant 104 : index
    %c0_535 = arith.constant 0 : index
    %879 = vector.load %arg3[%c0_533, %c104_534, %c0_535] : memref<10x192x128xf32, #tpu.memory_space<vmem>>, vector<1x8x128xf32>
    %880 = vector.shape_cast %879 : vector<1x8x128xf32> to vector<8x128xf32>
    %881 = arith.mulf %876, %880 : vector<8x128xf32>
    %882 = arith.addf %818, %881 : vector<8x128xf32>
    %883 = arith.mulf %878, %880 : vector<8x128xf32>
    %884 = arith.addf %820, %883 : vector<8x128xf32>
    %c1_536 = arith.constant 1 : index
    %c104_537 = arith.constant 104 : index
    %c0_538 = arith.constant 0 : index
    %885 = vector.load %arg3[%c1_536, %c104_537, %c0_538] : memref<10x192x128xf32, #tpu.memory_space<vmem>>, vector<1x8x128xf32>
    %886 = vector.shape_cast %885 : vector<1x8x128xf32> to vector<8x128xf32>
    %887 = arith.mulf %876, %886 : vector<8x128xf32>
    %888 = arith.addf %824, %887 : vector<8x128xf32>
    %889 = arith.mulf %878, %886 : vector<8x128xf32>
    %890 = arith.addf %826, %889 : vector<8x128xf32>
    %c2_539 = arith.constant 2 : index
    %c104_540 = arith.constant 104 : index
    %c0_541 = arith.constant 0 : index
    %891 = vector.load %arg3[%c2_539, %c104_540, %c0_541] : memref<10x192x128xf32, #tpu.memory_space<vmem>>, vector<1x8x128xf32>
    %892 = vector.shape_cast %891 : vector<1x8x128xf32> to vector<8x128xf32>
    %893 = arith.mulf %876, %892 : vector<8x128xf32>
    %894 = arith.addf %830, %893 : vector<8x128xf32>
    %895 = arith.mulf %878, %892 : vector<8x128xf32>
    %896 = arith.addf %832, %895 : vector<8x128xf32>
    %c3_542 = arith.constant 3 : index
    %c104_543 = arith.constant 104 : index
    %c0_544 = arith.constant 0 : index
    %897 = vector.load %arg3[%c3_542, %c104_543, %c0_544] : memref<10x192x128xf32, #tpu.memory_space<vmem>>, vector<1x8x128xf32>
    %898 = vector.shape_cast %897 : vector<1x8x128xf32> to vector<8x128xf32>
    %899 = arith.mulf %876, %898 : vector<8x128xf32>
    %900 = arith.addf %836, %899 : vector<8x128xf32>
    %901 = arith.mulf %878, %898 : vector<8x128xf32>
    %902 = arith.addf %838, %901 : vector<8x128xf32>
    %c4_545 = arith.constant 4 : index
    %c104_546 = arith.constant 104 : index
    %c0_547 = arith.constant 0 : index
    %903 = vector.load %arg3[%c4_545, %c104_546, %c0_547] : memref<10x192x128xf32, #tpu.memory_space<vmem>>, vector<1x8x128xf32>
    %904 = vector.shape_cast %903 : vector<1x8x128xf32> to vector<8x128xf32>
    %905 = arith.mulf %876, %904 : vector<8x128xf32>
    %906 = arith.addf %842, %905 : vector<8x128xf32>
    %907 = arith.mulf %878, %904 : vector<8x128xf32>
    %908 = arith.addf %844, %907 : vector<8x128xf32>
    %c5_548 = arith.constant 5 : index
    %c104_549 = arith.constant 104 : index
    %c0_550 = arith.constant 0 : index
    %909 = vector.load %arg3[%c5_548, %c104_549, %c0_550] : memref<10x192x128xf32, #tpu.memory_space<vmem>>, vector<1x8x128xf32>
    %910 = vector.shape_cast %909 : vector<1x8x128xf32> to vector<8x128xf32>
    %911 = arith.mulf %876, %910 : vector<8x128xf32>
    %912 = arith.addf %848, %911 : vector<8x128xf32>
    %913 = arith.mulf %878, %910 : vector<8x128xf32>
    %914 = arith.addf %850, %913 : vector<8x128xf32>
    %c6_551 = arith.constant 6 : index
    %c104_552 = arith.constant 104 : index
    %c0_553 = arith.constant 0 : index
    %915 = vector.load %arg3[%c6_551, %c104_552, %c0_553] : memref<10x192x128xf32, #tpu.memory_space<vmem>>, vector<1x8x128xf32>
    %916 = vector.shape_cast %915 : vector<1x8x128xf32> to vector<8x128xf32>
    %917 = arith.mulf %876, %916 : vector<8x128xf32>
    %918 = arith.addf %854, %917 : vector<8x128xf32>
    %919 = arith.mulf %878, %916 : vector<8x128xf32>
    %920 = arith.addf %856, %919 : vector<8x128xf32>
    %c7_554 = arith.constant 7 : index
    %c104_555 = arith.constant 104 : index
    %c0_556 = arith.constant 0 : index
    %921 = vector.load %arg3[%c7_554, %c104_555, %c0_556] : memref<10x192x128xf32, #tpu.memory_space<vmem>>, vector<1x8x128xf32>
    %922 = vector.shape_cast %921 : vector<1x8x128xf32> to vector<8x128xf32>
    %923 = arith.mulf %876, %922 : vector<8x128xf32>
    %924 = arith.addf %860, %923 : vector<8x128xf32>
    %925 = arith.mulf %878, %922 : vector<8x128xf32>
    %926 = arith.addf %862, %925 : vector<8x128xf32>
    %c8_557 = arith.constant 8 : index
    %c104_558 = arith.constant 104 : index
    %c0_559 = arith.constant 0 : index
    %927 = vector.load %arg3[%c8_557, %c104_558, %c0_559] : memref<10x192x128xf32, #tpu.memory_space<vmem>>, vector<1x8x128xf32>
    %928 = vector.shape_cast %927 : vector<1x8x128xf32> to vector<8x128xf32>
    %929 = arith.mulf %876, %928 : vector<8x128xf32>
    %930 = arith.addf %866, %929 : vector<8x128xf32>
    %931 = arith.mulf %878, %928 : vector<8x128xf32>
    %932 = arith.addf %868, %931 : vector<8x128xf32>
    %c9_560 = arith.constant 9 : index
    %c104_561 = arith.constant 104 : index
    %c0_562 = arith.constant 0 : index
    %933 = vector.load %arg3[%c9_560, %c104_561, %c0_562] : memref<10x192x128xf32, #tpu.memory_space<vmem>>, vector<1x8x128xf32>
    %934 = vector.shape_cast %933 : vector<1x8x128xf32> to vector<8x128xf32>
    %935 = arith.mulf %876, %934 : vector<8x128xf32>
    %936 = arith.addf %872, %935 : vector<8x128xf32>
    %937 = arith.mulf %878, %934 : vector<8x128xf32>
    %938 = arith.addf %874, %937 : vector<8x128xf32>
    %c0_563 = arith.constant 0 : index
    %c112 = arith.constant 112 : index
    %c0_564 = arith.constant 0 : index
    %939 = vector.load %arg2[%c0_563, %c112, %c0_564] : memref<2x192x128xf32, #tpu.memory_space<vmem>>, vector<1x8x128xf32>
    %940 = vector.shape_cast %939 : vector<1x8x128xf32> to vector<8x128xf32>
    %c1_565 = arith.constant 1 : index
    %c112_566 = arith.constant 112 : index
    %c0_567 = arith.constant 0 : index
    %941 = vector.load %arg2[%c1_565, %c112_566, %c0_567] : memref<2x192x128xf32, #tpu.memory_space<vmem>>, vector<1x8x128xf32>
    %942 = vector.shape_cast %941 : vector<1x8x128xf32> to vector<8x128xf32>
    %c0_568 = arith.constant 0 : index
    %c112_569 = arith.constant 112 : index
    %c0_570 = arith.constant 0 : index
    %943 = vector.load %arg3[%c0_568, %c112_569, %c0_570] : memref<10x192x128xf32, #tpu.memory_space<vmem>>, vector<1x8x128xf32>
    %944 = vector.shape_cast %943 : vector<1x8x128xf32> to vector<8x128xf32>
    %945 = arith.mulf %940, %944 : vector<8x128xf32>
    %946 = arith.addf %882, %945 : vector<8x128xf32>
    %947 = arith.mulf %942, %944 : vector<8x128xf32>
    %948 = arith.addf %884, %947 : vector<8x128xf32>
    %c1_571 = arith.constant 1 : index
    %c112_572 = arith.constant 112 : index
    %c0_573 = arith.constant 0 : index
    %949 = vector.load %arg3[%c1_571, %c112_572, %c0_573] : memref<10x192x128xf32, #tpu.memory_space<vmem>>, vector<1x8x128xf32>
    %950 = vector.shape_cast %949 : vector<1x8x128xf32> to vector<8x128xf32>
    %951 = arith.mulf %940, %950 : vector<8x128xf32>
    %952 = arith.addf %888, %951 : vector<8x128xf32>
    %953 = arith.mulf %942, %950 : vector<8x128xf32>
    %954 = arith.addf %890, %953 : vector<8x128xf32>
    %c2_574 = arith.constant 2 : index
    %c112_575 = arith.constant 112 : index
    %c0_576 = arith.constant 0 : index
    %955 = vector.load %arg3[%c2_574, %c112_575, %c0_576] : memref<10x192x128xf32, #tpu.memory_space<vmem>>, vector<1x8x128xf32>
    %956 = vector.shape_cast %955 : vector<1x8x128xf32> to vector<8x128xf32>
    %957 = arith.mulf %940, %956 : vector<8x128xf32>
    %958 = arith.addf %894, %957 : vector<8x128xf32>
    %959 = arith.mulf %942, %956 : vector<8x128xf32>
    %960 = arith.addf %896, %959 : vector<8x128xf32>
    %c3_577 = arith.constant 3 : index
    %c112_578 = arith.constant 112 : index
    %c0_579 = arith.constant 0 : index
    %961 = vector.load %arg3[%c3_577, %c112_578, %c0_579] : memref<10x192x128xf32, #tpu.memory_space<vmem>>, vector<1x8x128xf32>
    %962 = vector.shape_cast %961 : vector<1x8x128xf32> to vector<8x128xf32>
    %963 = arith.mulf %940, %962 : vector<8x128xf32>
    %964 = arith.addf %900, %963 : vector<8x128xf32>
    %965 = arith.mulf %942, %962 : vector<8x128xf32>
    %966 = arith.addf %902, %965 : vector<8x128xf32>
    %c4_580 = arith.constant 4 : index
    %c112_581 = arith.constant 112 : index
    %c0_582 = arith.constant 0 : index
    %967 = vector.load %arg3[%c4_580, %c112_581, %c0_582] : memref<10x192x128xf32, #tpu.memory_space<vmem>>, vector<1x8x128xf32>
    %968 = vector.shape_cast %967 : vector<1x8x128xf32> to vector<8x128xf32>
    %969 = arith.mulf %940, %968 : vector<8x128xf32>
    %970 = arith.addf %906, %969 : vector<8x128xf32>
    %971 = arith.mulf %942, %968 : vector<8x128xf32>
    %972 = arith.addf %908, %971 : vector<8x128xf32>
    %c5_583 = arith.constant 5 : index
    %c112_584 = arith.constant 112 : index
    %c0_585 = arith.constant 0 : index
    %973 = vector.load %arg3[%c5_583, %c112_584, %c0_585] : memref<10x192x128xf32, #tpu.memory_space<vmem>>, vector<1x8x128xf32>
    %974 = vector.shape_cast %973 : vector<1x8x128xf32> to vector<8x128xf32>
    %975 = arith.mulf %940, %974 : vector<8x128xf32>
    %976 = arith.addf %912, %975 : vector<8x128xf32>
    %977 = arith.mulf %942, %974 : vector<8x128xf32>
    %978 = arith.addf %914, %977 : vector<8x128xf32>
    %c6_586 = arith.constant 6 : index
    %c112_587 = arith.constant 112 : index
    %c0_588 = arith.constant 0 : index
    %979 = vector.load %arg3[%c6_586, %c112_587, %c0_588] : memref<10x192x128xf32, #tpu.memory_space<vmem>>, vector<1x8x128xf32>
    %980 = vector.shape_cast %979 : vector<1x8x128xf32> to vector<8x128xf32>
    %981 = arith.mulf %940, %980 : vector<8x128xf32>
    %982 = arith.addf %918, %981 : vector<8x128xf32>
    %983 = arith.mulf %942, %980 : vector<8x128xf32>
    %984 = arith.addf %920, %983 : vector<8x128xf32>
    %c7_589 = arith.constant 7 : index
    %c112_590 = arith.constant 112 : index
    %c0_591 = arith.constant 0 : index
    %985 = vector.load %arg3[%c7_589, %c112_590, %c0_591] : memref<10x192x128xf32, #tpu.memory_space<vmem>>, vector<1x8x128xf32>
    %986 = vector.shape_cast %985 : vector<1x8x128xf32> to vector<8x128xf32>
    %987 = arith.mulf %940, %986 : vector<8x128xf32>
    %988 = arith.addf %924, %987 : vector<8x128xf32>
    %989 = arith.mulf %942, %986 : vector<8x128xf32>
    %990 = arith.addf %926, %989 : vector<8x128xf32>
    %c8_592 = arith.constant 8 : index
    %c112_593 = arith.constant 112 : index
    %c0_594 = arith.constant 0 : index
    %991 = vector.load %arg3[%c8_592, %c112_593, %c0_594] : memref<10x192x128xf32, #tpu.memory_space<vmem>>, vector<1x8x128xf32>
    %992 = vector.shape_cast %991 : vector<1x8x128xf32> to vector<8x128xf32>
    %993 = arith.mulf %940, %992 : vector<8x128xf32>
    %994 = arith.addf %930, %993 : vector<8x128xf32>
    %995 = arith.mulf %942, %992 : vector<8x128xf32>
    %996 = arith.addf %932, %995 : vector<8x128xf32>
    %c9_595 = arith.constant 9 : index
    %c112_596 = arith.constant 112 : index
    %c0_597 = arith.constant 0 : index
    %997 = vector.load %arg3[%c9_595, %c112_596, %c0_597] : memref<10x192x128xf32, #tpu.memory_space<vmem>>, vector<1x8x128xf32>
    %998 = vector.shape_cast %997 : vector<1x8x128xf32> to vector<8x128xf32>
    %999 = arith.mulf %940, %998 : vector<8x128xf32>
    %1000 = arith.addf %936, %999 : vector<8x128xf32>
    %1001 = arith.mulf %942, %998 : vector<8x128xf32>
    %1002 = arith.addf %938, %1001 : vector<8x128xf32>
    %c0_598 = arith.constant 0 : index
    %c120 = arith.constant 120 : index
    %c0_599 = arith.constant 0 : index
    %1003 = vector.load %arg2[%c0_598, %c120, %c0_599] : memref<2x192x128xf32, #tpu.memory_space<vmem>>, vector<1x8x128xf32>
    %1004 = vector.shape_cast %1003 : vector<1x8x128xf32> to vector<8x128xf32>
    %c1_600 = arith.constant 1 : index
    %c120_601 = arith.constant 120 : index
    %c0_602 = arith.constant 0 : index
    %1005 = vector.load %arg2[%c1_600, %c120_601, %c0_602] : memref<2x192x128xf32, #tpu.memory_space<vmem>>, vector<1x8x128xf32>
    %1006 = vector.shape_cast %1005 : vector<1x8x128xf32> to vector<8x128xf32>
    %c0_603 = arith.constant 0 : index
    %c120_604 = arith.constant 120 : index
    %c0_605 = arith.constant 0 : index
    %1007 = vector.load %arg3[%c0_603, %c120_604, %c0_605] : memref<10x192x128xf32, #tpu.memory_space<vmem>>, vector<1x8x128xf32>
    %1008 = vector.shape_cast %1007 : vector<1x8x128xf32> to vector<8x128xf32>
    %1009 = arith.mulf %1004, %1008 : vector<8x128xf32>
    %1010 = arith.addf %946, %1009 : vector<8x128xf32>
    %1011 = arith.mulf %1006, %1008 : vector<8x128xf32>
    %1012 = arith.addf %948, %1011 : vector<8x128xf32>
    %c1_606 = arith.constant 1 : index
    %c120_607 = arith.constant 120 : index
    %c0_608 = arith.constant 0 : index
    %1013 = vector.load %arg3[%c1_606, %c120_607, %c0_608] : memref<10x192x128xf32, #tpu.memory_space<vmem>>, vector<1x8x128xf32>
    %1014 = vector.shape_cast %1013 : vector<1x8x128xf32> to vector<8x128xf32>
    %1015 = arith.mulf %1004, %1014 : vector<8x128xf32>
    %1016 = arith.addf %952, %1015 : vector<8x128xf32>
    %1017 = arith.mulf %1006, %1014 : vector<8x128xf32>
    %1018 = arith.addf %954, %1017 : vector<8x128xf32>
    %c2_609 = arith.constant 2 : index
    %c120_610 = arith.constant 120 : index
    %c0_611 = arith.constant 0 : index
    %1019 = vector.load %arg3[%c2_609, %c120_610, %c0_611] : memref<10x192x128xf32, #tpu.memory_space<vmem>>, vector<1x8x128xf32>
    %1020 = vector.shape_cast %1019 : vector<1x8x128xf32> to vector<8x128xf32>
    %1021 = arith.mulf %1004, %1020 : vector<8x128xf32>
    %1022 = arith.addf %958, %1021 : vector<8x128xf32>
    %1023 = arith.mulf %1006, %1020 : vector<8x128xf32>
    %1024 = arith.addf %960, %1023 : vector<8x128xf32>
    %c3_612 = arith.constant 3 : index
    %c120_613 = arith.constant 120 : index
    %c0_614 = arith.constant 0 : index
    %1025 = vector.load %arg3[%c3_612, %c120_613, %c0_614] : memref<10x192x128xf32, #tpu.memory_space<vmem>>, vector<1x8x128xf32>
    %1026 = vector.shape_cast %1025 : vector<1x8x128xf32> to vector<8x128xf32>
    %1027 = arith.mulf %1004, %1026 : vector<8x128xf32>
    %1028 = arith.addf %964, %1027 : vector<8x128xf32>
    %1029 = arith.mulf %1006, %1026 : vector<8x128xf32>
    %1030 = arith.addf %966, %1029 : vector<8x128xf32>
    %c4_615 = arith.constant 4 : index
    %c120_616 = arith.constant 120 : index
    %c0_617 = arith.constant 0 : index
    %1031 = vector.load %arg3[%c4_615, %c120_616, %c0_617] : memref<10x192x128xf32, #tpu.memory_space<vmem>>, vector<1x8x128xf32>
    %1032 = vector.shape_cast %1031 : vector<1x8x128xf32> to vector<8x128xf32>
    %1033 = arith.mulf %1004, %1032 : vector<8x128xf32>
    %1034 = arith.addf %970, %1033 : vector<8x128xf32>
    %1035 = arith.mulf %1006, %1032 : vector<8x128xf32>
    %1036 = arith.addf %972, %1035 : vector<8x128xf32>
    %c5_618 = arith.constant 5 : index
    %c120_619 = arith.constant 120 : index
    %c0_620 = arith.constant 0 : index
    %1037 = vector.load %arg3[%c5_618, %c120_619, %c0_620] : memref<10x192x128xf32, #tpu.memory_space<vmem>>, vector<1x8x128xf32>
    %1038 = vector.shape_cast %1037 : vector<1x8x128xf32> to vector<8x128xf32>
    %1039 = arith.mulf %1004, %1038 : vector<8x128xf32>
    %1040 = arith.addf %976, %1039 : vector<8x128xf32>
    %1041 = arith.mulf %1006, %1038 : vector<8x128xf32>
    %1042 = arith.addf %978, %1041 : vector<8x128xf32>
    %c6_621 = arith.constant 6 : index
    %c120_622 = arith.constant 120 : index
    %c0_623 = arith.constant 0 : index
    %1043 = vector.load %arg3[%c6_621, %c120_622, %c0_623] : memref<10x192x128xf32, #tpu.memory_space<vmem>>, vector<1x8x128xf32>
    %1044 = vector.shape_cast %1043 : vector<1x8x128xf32> to vector<8x128xf32>
    %1045 = arith.mulf %1004, %1044 : vector<8x128xf32>
    %1046 = arith.addf %982, %1045 : vector<8x128xf32>
    %1047 = arith.mulf %1006, %1044 : vector<8x128xf32>
    %1048 = arith.addf %984, %1047 : vector<8x128xf32>
    %c7_624 = arith.constant 7 : index
    %c120_625 = arith.constant 120 : index
    %c0_626 = arith.constant 0 : index
    %1049 = vector.load %arg3[%c7_624, %c120_625, %c0_626] : memref<10x192x128xf32, #tpu.memory_space<vmem>>, vector<1x8x128xf32>
    %1050 = vector.shape_cast %1049 : vector<1x8x128xf32> to vector<8x128xf32>
    %1051 = arith.mulf %1004, %1050 : vector<8x128xf32>
    %1052 = arith.addf %988, %1051 : vector<8x128xf32>
    %1053 = arith.mulf %1006, %1050 : vector<8x128xf32>
    %1054 = arith.addf %990, %1053 : vector<8x128xf32>
    %c8_627 = arith.constant 8 : index
    %c120_628 = arith.constant 120 : index
    %c0_629 = arith.constant 0 : index
    %1055 = vector.load %arg3[%c8_627, %c120_628, %c0_629] : memref<10x192x128xf32, #tpu.memory_space<vmem>>, vector<1x8x128xf32>
    %1056 = vector.shape_cast %1055 : vector<1x8x128xf32> to vector<8x128xf32>
    %1057 = arith.mulf %1004, %1056 : vector<8x128xf32>
    %1058 = arith.addf %994, %1057 : vector<8x128xf32>
    %1059 = arith.mulf %1006, %1056 : vector<8x128xf32>
    %1060 = arith.addf %996, %1059 : vector<8x128xf32>
    %c9_630 = arith.constant 9 : index
    %c120_631 = arith.constant 120 : index
    %c0_632 = arith.constant 0 : index
    %1061 = vector.load %arg3[%c9_630, %c120_631, %c0_632] : memref<10x192x128xf32, #tpu.memory_space<vmem>>, vector<1x8x128xf32>
    %1062 = vector.shape_cast %1061 : vector<1x8x128xf32> to vector<8x128xf32>
    %1063 = arith.mulf %1004, %1062 : vector<8x128xf32>
    %1064 = arith.addf %1000, %1063 : vector<8x128xf32>
    %1065 = arith.mulf %1006, %1062 : vector<8x128xf32>
    %1066 = arith.addf %1002, %1065 : vector<8x128xf32>
    %c0_633 = arith.constant 0 : index
    %c128 = arith.constant 128 : index
    %c0_634 = arith.constant 0 : index
    %1067 = vector.load %arg2[%c0_633, %c128, %c0_634] : memref<2x192x128xf32, #tpu.memory_space<vmem>>, vector<1x8x128xf32>
    %1068 = vector.shape_cast %1067 : vector<1x8x128xf32> to vector<8x128xf32>
    %c1_635 = arith.constant 1 : index
    %c128_636 = arith.constant 128 : index
    %c0_637 = arith.constant 0 : index
    %1069 = vector.load %arg2[%c1_635, %c128_636, %c0_637] : memref<2x192x128xf32, #tpu.memory_space<vmem>>, vector<1x8x128xf32>
    %1070 = vector.shape_cast %1069 : vector<1x8x128xf32> to vector<8x128xf32>
    %c0_638 = arith.constant 0 : index
    %c128_639 = arith.constant 128 : index
    %c0_640 = arith.constant 0 : index
    %1071 = vector.load %arg3[%c0_638, %c128_639, %c0_640] : memref<10x192x128xf32, #tpu.memory_space<vmem>>, vector<1x8x128xf32>
    %1072 = vector.shape_cast %1071 : vector<1x8x128xf32> to vector<8x128xf32>
    %1073 = arith.mulf %1068, %1072 : vector<8x128xf32>
    %1074 = arith.addf %1010, %1073 : vector<8x128xf32>
    %1075 = arith.mulf %1070, %1072 : vector<8x128xf32>
    %1076 = arith.addf %1012, %1075 : vector<8x128xf32>
    %c1_641 = arith.constant 1 : index
    %c128_642 = arith.constant 128 : index
    %c0_643 = arith.constant 0 : index
    %1077 = vector.load %arg3[%c1_641, %c128_642, %c0_643] : memref<10x192x128xf32, #tpu.memory_space<vmem>>, vector<1x8x128xf32>
    %1078 = vector.shape_cast %1077 : vector<1x8x128xf32> to vector<8x128xf32>
    %1079 = arith.mulf %1068, %1078 : vector<8x128xf32>
    %1080 = arith.addf %1016, %1079 : vector<8x128xf32>
    %1081 = arith.mulf %1070, %1078 : vector<8x128xf32>
    %1082 = arith.addf %1018, %1081 : vector<8x128xf32>
    %c2_644 = arith.constant 2 : index
    %c128_645 = arith.constant 128 : index
    %c0_646 = arith.constant 0 : index
    %1083 = vector.load %arg3[%c2_644, %c128_645, %c0_646] : memref<10x192x128xf32, #tpu.memory_space<vmem>>, vector<1x8x128xf32>
    %1084 = vector.shape_cast %1083 : vector<1x8x128xf32> to vector<8x128xf32>
    %1085 = arith.mulf %1068, %1084 : vector<8x128xf32>
    %1086 = arith.addf %1022, %1085 : vector<8x128xf32>
    %1087 = arith.mulf %1070, %1084 : vector<8x128xf32>
    %1088 = arith.addf %1024, %1087 : vector<8x128xf32>
    %c3_647 = arith.constant 3 : index
    %c128_648 = arith.constant 128 : index
    %c0_649 = arith.constant 0 : index
    %1089 = vector.load %arg3[%c3_647, %c128_648, %c0_649] : memref<10x192x128xf32, #tpu.memory_space<vmem>>, vector<1x8x128xf32>
    %1090 = vector.shape_cast %1089 : vector<1x8x128xf32> to vector<8x128xf32>
    %1091 = arith.mulf %1068, %1090 : vector<8x128xf32>
    %1092 = arith.addf %1028, %1091 : vector<8x128xf32>
    %1093 = arith.mulf %1070, %1090 : vector<8x128xf32>
    %1094 = arith.addf %1030, %1093 : vector<8x128xf32>
    %c4_650 = arith.constant 4 : index
    %c128_651 = arith.constant 128 : index
    %c0_652 = arith.constant 0 : index
    %1095 = vector.load %arg3[%c4_650, %c128_651, %c0_652] : memref<10x192x128xf32, #tpu.memory_space<vmem>>, vector<1x8x128xf32>
    %1096 = vector.shape_cast %1095 : vector<1x8x128xf32> to vector<8x128xf32>
    %1097 = arith.mulf %1068, %1096 : vector<8x128xf32>
    %1098 = arith.addf %1034, %1097 : vector<8x128xf32>
    %1099 = arith.mulf %1070, %1096 : vector<8x128xf32>
    %1100 = arith.addf %1036, %1099 : vector<8x128xf32>
    %c5_653 = arith.constant 5 : index
    %c128_654 = arith.constant 128 : index
    %c0_655 = arith.constant 0 : index
    %1101 = vector.load %arg3[%c5_653, %c128_654, %c0_655] : memref<10x192x128xf32, #tpu.memory_space<vmem>>, vector<1x8x128xf32>
    %1102 = vector.shape_cast %1101 : vector<1x8x128xf32> to vector<8x128xf32>
    %1103 = arith.mulf %1068, %1102 : vector<8x128xf32>
    %1104 = arith.addf %1040, %1103 : vector<8x128xf32>
    %1105 = arith.mulf %1070, %1102 : vector<8x128xf32>
    %1106 = arith.addf %1042, %1105 : vector<8x128xf32>
    %c6_656 = arith.constant 6 : index
    %c128_657 = arith.constant 128 : index
    %c0_658 = arith.constant 0 : index
    %1107 = vector.load %arg3[%c6_656, %c128_657, %c0_658] : memref<10x192x128xf32, #tpu.memory_space<vmem>>, vector<1x8x128xf32>
    %1108 = vector.shape_cast %1107 : vector<1x8x128xf32> to vector<8x128xf32>
    %1109 = arith.mulf %1068, %1108 : vector<8x128xf32>
    %1110 = arith.addf %1046, %1109 : vector<8x128xf32>
    %1111 = arith.mulf %1070, %1108 : vector<8x128xf32>
    %1112 = arith.addf %1048, %1111 : vector<8x128xf32>
    %c7_659 = arith.constant 7 : index
    %c128_660 = arith.constant 128 : index
    %c0_661 = arith.constant 0 : index
    %1113 = vector.load %arg3[%c7_659, %c128_660, %c0_661] : memref<10x192x128xf32, #tpu.memory_space<vmem>>, vector<1x8x128xf32>
    %1114 = vector.shape_cast %1113 : vector<1x8x128xf32> to vector<8x128xf32>
    %1115 = arith.mulf %1068, %1114 : vector<8x128xf32>
    %1116 = arith.addf %1052, %1115 : vector<8x128xf32>
    %1117 = arith.mulf %1070, %1114 : vector<8x128xf32>
    %1118 = arith.addf %1054, %1117 : vector<8x128xf32>
    %c8_662 = arith.constant 8 : index
    %c128_663 = arith.constant 128 : index
    %c0_664 = arith.constant 0 : index
    %1119 = vector.load %arg3[%c8_662, %c128_663, %c0_664] : memref<10x192x128xf32, #tpu.memory_space<vmem>>, vector<1x8x128xf32>
    %1120 = vector.shape_cast %1119 : vector<1x8x128xf32> to vector<8x128xf32>
    %1121 = arith.mulf %1068, %1120 : vector<8x128xf32>
    %1122 = arith.addf %1058, %1121 : vector<8x128xf32>
    %1123 = arith.mulf %1070, %1120 : vector<8x128xf32>
    %1124 = arith.addf %1060, %1123 : vector<8x128xf32>
    %c9_665 = arith.constant 9 : index
    %c128_666 = arith.constant 128 : index
    %c0_667 = arith.constant 0 : index
    %1125 = vector.load %arg3[%c9_665, %c128_666, %c0_667] : memref<10x192x128xf32, #tpu.memory_space<vmem>>, vector<1x8x128xf32>
    %1126 = vector.shape_cast %1125 : vector<1x8x128xf32> to vector<8x128xf32>
    %1127 = arith.mulf %1068, %1126 : vector<8x128xf32>
    %1128 = arith.addf %1064, %1127 : vector<8x128xf32>
    %1129 = arith.mulf %1070, %1126 : vector<8x128xf32>
    %1130 = arith.addf %1066, %1129 : vector<8x128xf32>
    %c0_668 = arith.constant 0 : index
    %c136 = arith.constant 136 : index
    %c0_669 = arith.constant 0 : index
    %1131 = vector.load %arg2[%c0_668, %c136, %c0_669] : memref<2x192x128xf32, #tpu.memory_space<vmem>>, vector<1x8x128xf32>
    %1132 = vector.shape_cast %1131 : vector<1x8x128xf32> to vector<8x128xf32>
    %c1_670 = arith.constant 1 : index
    %c136_671 = arith.constant 136 : index
    %c0_672 = arith.constant 0 : index
    %1133 = vector.load %arg2[%c1_670, %c136_671, %c0_672] : memref<2x192x128xf32, #tpu.memory_space<vmem>>, vector<1x8x128xf32>
    %1134 = vector.shape_cast %1133 : vector<1x8x128xf32> to vector<8x128xf32>
    %c0_673 = arith.constant 0 : index
    %c136_674 = arith.constant 136 : index
    %c0_675 = arith.constant 0 : index
    %1135 = vector.load %arg3[%c0_673, %c136_674, %c0_675] : memref<10x192x128xf32, #tpu.memory_space<vmem>>, vector<1x8x128xf32>
    %1136 = vector.shape_cast %1135 : vector<1x8x128xf32> to vector<8x128xf32>
    %1137 = arith.mulf %1132, %1136 : vector<8x128xf32>
    %1138 = arith.addf %1074, %1137 : vector<8x128xf32>
    %1139 = arith.mulf %1134, %1136 : vector<8x128xf32>
    %1140 = arith.addf %1076, %1139 : vector<8x128xf32>
    %c1_676 = arith.constant 1 : index
    %c136_677 = arith.constant 136 : index
    %c0_678 = arith.constant 0 : index
    %1141 = vector.load %arg3[%c1_676, %c136_677, %c0_678] : memref<10x192x128xf32, #tpu.memory_space<vmem>>, vector<1x8x128xf32>
    %1142 = vector.shape_cast %1141 : vector<1x8x128xf32> to vector<8x128xf32>
    %1143 = arith.mulf %1132, %1142 : vector<8x128xf32>
    %1144 = arith.addf %1080, %1143 : vector<8x128xf32>
    %1145 = arith.mulf %1134, %1142 : vector<8x128xf32>
    %1146 = arith.addf %1082, %1145 : vector<8x128xf32>
    %c2_679 = arith.constant 2 : index
    %c136_680 = arith.constant 136 : index
    %c0_681 = arith.constant 0 : index
    %1147 = vector.load %arg3[%c2_679, %c136_680, %c0_681] : memref<10x192x128xf32, #tpu.memory_space<vmem>>, vector<1x8x128xf32>
    %1148 = vector.shape_cast %1147 : vector<1x8x128xf32> to vector<8x128xf32>
    %1149 = arith.mulf %1132, %1148 : vector<8x128xf32>
    %1150 = arith.addf %1086, %1149 : vector<8x128xf32>
    %1151 = arith.mulf %1134, %1148 : vector<8x128xf32>
    %1152 = arith.addf %1088, %1151 : vector<8x128xf32>
    %c3_682 = arith.constant 3 : index
    %c136_683 = arith.constant 136 : index
    %c0_684 = arith.constant 0 : index
    %1153 = vector.load %arg3[%c3_682, %c136_683, %c0_684] : memref<10x192x128xf32, #tpu.memory_space<vmem>>, vector<1x8x128xf32>
    %1154 = vector.shape_cast %1153 : vector<1x8x128xf32> to vector<8x128xf32>
    %1155 = arith.mulf %1132, %1154 : vector<8x128xf32>
    %1156 = arith.addf %1092, %1155 : vector<8x128xf32>
    %1157 = arith.mulf %1134, %1154 : vector<8x128xf32>
    %1158 = arith.addf %1094, %1157 : vector<8x128xf32>
    %c4_685 = arith.constant 4 : index
    %c136_686 = arith.constant 136 : index
    %c0_687 = arith.constant 0 : index
    %1159 = vector.load %arg3[%c4_685, %c136_686, %c0_687] : memref<10x192x128xf32, #tpu.memory_space<vmem>>, vector<1x8x128xf32>
    %1160 = vector.shape_cast %1159 : vector<1x8x128xf32> to vector<8x128xf32>
    %1161 = arith.mulf %1132, %1160 : vector<8x128xf32>
    %1162 = arith.addf %1098, %1161 : vector<8x128xf32>
    %1163 = arith.mulf %1134, %1160 : vector<8x128xf32>
    %1164 = arith.addf %1100, %1163 : vector<8x128xf32>
    %c5_688 = arith.constant 5 : index
    %c136_689 = arith.constant 136 : index
    %c0_690 = arith.constant 0 : index
    %1165 = vector.load %arg3[%c5_688, %c136_689, %c0_690] : memref<10x192x128xf32, #tpu.memory_space<vmem>>, vector<1x8x128xf32>
    %1166 = vector.shape_cast %1165 : vector<1x8x128xf32> to vector<8x128xf32>
    %1167 = arith.mulf %1132, %1166 : vector<8x128xf32>
    %1168 = arith.addf %1104, %1167 : vector<8x128xf32>
    %1169 = arith.mulf %1134, %1166 : vector<8x128xf32>
    %1170 = arith.addf %1106, %1169 : vector<8x128xf32>
    %c6_691 = arith.constant 6 : index
    %c136_692 = arith.constant 136 : index
    %c0_693 = arith.constant 0 : index
    %1171 = vector.load %arg3[%c6_691, %c136_692, %c0_693] : memref<10x192x128xf32, #tpu.memory_space<vmem>>, vector<1x8x128xf32>
    %1172 = vector.shape_cast %1171 : vector<1x8x128xf32> to vector<8x128xf32>
    %1173 = arith.mulf %1132, %1172 : vector<8x128xf32>
    %1174 = arith.addf %1110, %1173 : vector<8x128xf32>
    %1175 = arith.mulf %1134, %1172 : vector<8x128xf32>
    %1176 = arith.addf %1112, %1175 : vector<8x128xf32>
    %c7_694 = arith.constant 7 : index
    %c136_695 = arith.constant 136 : index
    %c0_696 = arith.constant 0 : index
    %1177 = vector.load %arg3[%c7_694, %c136_695, %c0_696] : memref<10x192x128xf32, #tpu.memory_space<vmem>>, vector<1x8x128xf32>
    %1178 = vector.shape_cast %1177 : vector<1x8x128xf32> to vector<8x128xf32>
    %1179 = arith.mulf %1132, %1178 : vector<8x128xf32>
    %1180 = arith.addf %1116, %1179 : vector<8x128xf32>
    %1181 = arith.mulf %1134, %1178 : vector<8x128xf32>
    %1182 = arith.addf %1118, %1181 : vector<8x128xf32>
    %c8_697 = arith.constant 8 : index
    %c136_698 = arith.constant 136 : index
    %c0_699 = arith.constant 0 : index
    %1183 = vector.load %arg3[%c8_697, %c136_698, %c0_699] : memref<10x192x128xf32, #tpu.memory_space<vmem>>, vector<1x8x128xf32>
    %1184 = vector.shape_cast %1183 : vector<1x8x128xf32> to vector<8x128xf32>
    %1185 = arith.mulf %1132, %1184 : vector<8x128xf32>
    %1186 = arith.addf %1122, %1185 : vector<8x128xf32>
    %1187 = arith.mulf %1134, %1184 : vector<8x128xf32>
    %1188 = arith.addf %1124, %1187 : vector<8x128xf32>
    %c9_700 = arith.constant 9 : index
    %c136_701 = arith.constant 136 : index
    %c0_702 = arith.constant 0 : index
    %1189 = vector.load %arg3[%c9_700, %c136_701, %c0_702] : memref<10x192x128xf32, #tpu.memory_space<vmem>>, vector<1x8x128xf32>
    %1190 = vector.shape_cast %1189 : vector<1x8x128xf32> to vector<8x128xf32>
    %1191 = arith.mulf %1132, %1190 : vector<8x128xf32>
    %1192 = arith.addf %1128, %1191 : vector<8x128xf32>
    %1193 = arith.mulf %1134, %1190 : vector<8x128xf32>
    %1194 = arith.addf %1130, %1193 : vector<8x128xf32>
    %c0_703 = arith.constant 0 : index
    %c144 = arith.constant 144 : index
    %c0_704 = arith.constant 0 : index
    %1195 = vector.load %arg2[%c0_703, %c144, %c0_704] : memref<2x192x128xf32, #tpu.memory_space<vmem>>, vector<1x8x128xf32>
    %1196 = vector.shape_cast %1195 : vector<1x8x128xf32> to vector<8x128xf32>
    %c1_705 = arith.constant 1 : index
    %c144_706 = arith.constant 144 : index
    %c0_707 = arith.constant 0 : index
    %1197 = vector.load %arg2[%c1_705, %c144_706, %c0_707] : memref<2x192x128xf32, #tpu.memory_space<vmem>>, vector<1x8x128xf32>
    %1198 = vector.shape_cast %1197 : vector<1x8x128xf32> to vector<8x128xf32>
    %c0_708 = arith.constant 0 : index
    %c144_709 = arith.constant 144 : index
    %c0_710 = arith.constant 0 : index
    %1199 = vector.load %arg3[%c0_708, %c144_709, %c0_710] : memref<10x192x128xf32, #tpu.memory_space<vmem>>, vector<1x8x128xf32>
    %1200 = vector.shape_cast %1199 : vector<1x8x128xf32> to vector<8x128xf32>
    %1201 = arith.mulf %1196, %1200 : vector<8x128xf32>
    %1202 = arith.addf %1138, %1201 : vector<8x128xf32>
    %1203 = arith.mulf %1198, %1200 : vector<8x128xf32>
    %1204 = arith.addf %1140, %1203 : vector<8x128xf32>
    %c1_711 = arith.constant 1 : index
    %c144_712 = arith.constant 144 : index
    %c0_713 = arith.constant 0 : index
    %1205 = vector.load %arg3[%c1_711, %c144_712, %c0_713] : memref<10x192x128xf32, #tpu.memory_space<vmem>>, vector<1x8x128xf32>
    %1206 = vector.shape_cast %1205 : vector<1x8x128xf32> to vector<8x128xf32>
    %1207 = arith.mulf %1196, %1206 : vector<8x128xf32>
    %1208 = arith.addf %1144, %1207 : vector<8x128xf32>
    %1209 = arith.mulf %1198, %1206 : vector<8x128xf32>
    %1210 = arith.addf %1146, %1209 : vector<8x128xf32>
    %c2_714 = arith.constant 2 : index
    %c144_715 = arith.constant 144 : index
    %c0_716 = arith.constant 0 : index
    %1211 = vector.load %arg3[%c2_714, %c144_715, %c0_716] : memref<10x192x128xf32, #tpu.memory_space<vmem>>, vector<1x8x128xf32>
    %1212 = vector.shape_cast %1211 : vector<1x8x128xf32> to vector<8x128xf32>
    %1213 = arith.mulf %1196, %1212 : vector<8x128xf32>
    %1214 = arith.addf %1150, %1213 : vector<8x128xf32>
    %1215 = arith.mulf %1198, %1212 : vector<8x128xf32>
    %1216 = arith.addf %1152, %1215 : vector<8x128xf32>
    %c3_717 = arith.constant 3 : index
    %c144_718 = arith.constant 144 : index
    %c0_719 = arith.constant 0 : index
    %1217 = vector.load %arg3[%c3_717, %c144_718, %c0_719] : memref<10x192x128xf32, #tpu.memory_space<vmem>>, vector<1x8x128xf32>
    %1218 = vector.shape_cast %1217 : vector<1x8x128xf32> to vector<8x128xf32>
    %1219 = arith.mulf %1196, %1218 : vector<8x128xf32>
    %1220 = arith.addf %1156, %1219 : vector<8x128xf32>
    %1221 = arith.mulf %1198, %1218 : vector<8x128xf32>
    %1222 = arith.addf %1158, %1221 : vector<8x128xf32>
    %c4_720 = arith.constant 4 : index
    %c144_721 = arith.constant 144 : index
    %c0_722 = arith.constant 0 : index
    %1223 = vector.load %arg3[%c4_720, %c144_721, %c0_722] : memref<10x192x128xf32, #tpu.memory_space<vmem>>, vector<1x8x128xf32>
    %1224 = vector.shape_cast %1223 : vector<1x8x128xf32> to vector<8x128xf32>
    %1225 = arith.mulf %1196, %1224 : vector<8x128xf32>
    %1226 = arith.addf %1162, %1225 : vector<8x128xf32>
    %1227 = arith.mulf %1198, %1224 : vector<8x128xf32>
    %1228 = arith.addf %1164, %1227 : vector<8x128xf32>
    %c5_723 = arith.constant 5 : index
    %c144_724 = arith.constant 144 : index
    %c0_725 = arith.constant 0 : index
    %1229 = vector.load %arg3[%c5_723, %c144_724, %c0_725] : memref<10x192x128xf32, #tpu.memory_space<vmem>>, vector<1x8x128xf32>
    %1230 = vector.shape_cast %1229 : vector<1x8x128xf32> to vector<8x128xf32>
    %1231 = arith.mulf %1196, %1230 : vector<8x128xf32>
    %1232 = arith.addf %1168, %1231 : vector<8x128xf32>
    %1233 = arith.mulf %1198, %1230 : vector<8x128xf32>
    %1234 = arith.addf %1170, %1233 : vector<8x128xf32>
    %c6_726 = arith.constant 6 : index
    %c144_727 = arith.constant 144 : index
    %c0_728 = arith.constant 0 : index
    %1235 = vector.load %arg3[%c6_726, %c144_727, %c0_728] : memref<10x192x128xf32, #tpu.memory_space<vmem>>, vector<1x8x128xf32>
    %1236 = vector.shape_cast %1235 : vector<1x8x128xf32> to vector<8x128xf32>
    %1237 = arith.mulf %1196, %1236 : vector<8x128xf32>
    %1238 = arith.addf %1174, %1237 : vector<8x128xf32>
    %1239 = arith.mulf %1198, %1236 : vector<8x128xf32>
    %1240 = arith.addf %1176, %1239 : vector<8x128xf32>
    %c7_729 = arith.constant 7 : index
    %c144_730 = arith.constant 144 : index
    %c0_731 = arith.constant 0 : index
    %1241 = vector.load %arg3[%c7_729, %c144_730, %c0_731] : memref<10x192x128xf32, #tpu.memory_space<vmem>>, vector<1x8x128xf32>
    %1242 = vector.shape_cast %1241 : vector<1x8x128xf32> to vector<8x128xf32>
    %1243 = arith.mulf %1196, %1242 : vector<8x128xf32>
    %1244 = arith.addf %1180, %1243 : vector<8x128xf32>
    %1245 = arith.mulf %1198, %1242 : vector<8x128xf32>
    %1246 = arith.addf %1182, %1245 : vector<8x128xf32>
    %c8_732 = arith.constant 8 : index
    %c144_733 = arith.constant 144 : index
    %c0_734 = arith.constant 0 : index
    %1247 = vector.load %arg3[%c8_732, %c144_733, %c0_734] : memref<10x192x128xf32, #tpu.memory_space<vmem>>, vector<1x8x128xf32>
    %1248 = vector.shape_cast %1247 : vector<1x8x128xf32> to vector<8x128xf32>
    %1249 = arith.mulf %1196, %1248 : vector<8x128xf32>
    %1250 = arith.addf %1186, %1249 : vector<8x128xf32>
    %1251 = arith.mulf %1198, %1248 : vector<8x128xf32>
    %1252 = arith.addf %1188, %1251 : vector<8x128xf32>
    %c9_735 = arith.constant 9 : index
    %c144_736 = arith.constant 144 : index
    %c0_737 = arith.constant 0 : index
    %1253 = vector.load %arg3[%c9_735, %c144_736, %c0_737] : memref<10x192x128xf32, #tpu.memory_space<vmem>>, vector<1x8x128xf32>
    %1254 = vector.shape_cast %1253 : vector<1x8x128xf32> to vector<8x128xf32>
    %1255 = arith.mulf %1196, %1254 : vector<8x128xf32>
    %1256 = arith.addf %1192, %1255 : vector<8x128xf32>
    %1257 = arith.mulf %1198, %1254 : vector<8x128xf32>
    %1258 = arith.addf %1194, %1257 : vector<8x128xf32>
    %c0_738 = arith.constant 0 : index
    %c152 = arith.constant 152 : index
    %c0_739 = arith.constant 0 : index
    %1259 = vector.load %arg2[%c0_738, %c152, %c0_739] : memref<2x192x128xf32, #tpu.memory_space<vmem>>, vector<1x8x128xf32>
    %1260 = vector.shape_cast %1259 : vector<1x8x128xf32> to vector<8x128xf32>
    %c1_740 = arith.constant 1 : index
    %c152_741 = arith.constant 152 : index
    %c0_742 = arith.constant 0 : index
    %1261 = vector.load %arg2[%c1_740, %c152_741, %c0_742] : memref<2x192x128xf32, #tpu.memory_space<vmem>>, vector<1x8x128xf32>
    %1262 = vector.shape_cast %1261 : vector<1x8x128xf32> to vector<8x128xf32>
    %c0_743 = arith.constant 0 : index
    %c152_744 = arith.constant 152 : index
    %c0_745 = arith.constant 0 : index
    %1263 = vector.load %arg3[%c0_743, %c152_744, %c0_745] : memref<10x192x128xf32, #tpu.memory_space<vmem>>, vector<1x8x128xf32>
    %1264 = vector.shape_cast %1263 : vector<1x8x128xf32> to vector<8x128xf32>
    %1265 = arith.mulf %1260, %1264 : vector<8x128xf32>
    %1266 = arith.addf %1202, %1265 : vector<8x128xf32>
    %1267 = arith.mulf %1262, %1264 : vector<8x128xf32>
    %1268 = arith.addf %1204, %1267 : vector<8x128xf32>
    %c1_746 = arith.constant 1 : index
    %c152_747 = arith.constant 152 : index
    %c0_748 = arith.constant 0 : index
    %1269 = vector.load %arg3[%c1_746, %c152_747, %c0_748] : memref<10x192x128xf32, #tpu.memory_space<vmem>>, vector<1x8x128xf32>
    %1270 = vector.shape_cast %1269 : vector<1x8x128xf32> to vector<8x128xf32>
    %1271 = arith.mulf %1260, %1270 : vector<8x128xf32>
    %1272 = arith.addf %1208, %1271 : vector<8x128xf32>
    %1273 = arith.mulf %1262, %1270 : vector<8x128xf32>
    %1274 = arith.addf %1210, %1273 : vector<8x128xf32>
    %c2_749 = arith.constant 2 : index
    %c152_750 = arith.constant 152 : index
    %c0_751 = arith.constant 0 : index
    %1275 = vector.load %arg3[%c2_749, %c152_750, %c0_751] : memref<10x192x128xf32, #tpu.memory_space<vmem>>, vector<1x8x128xf32>
    %1276 = vector.shape_cast %1275 : vector<1x8x128xf32> to vector<8x128xf32>
    %1277 = arith.mulf %1260, %1276 : vector<8x128xf32>
    %1278 = arith.addf %1214, %1277 : vector<8x128xf32>
    %1279 = arith.mulf %1262, %1276 : vector<8x128xf32>
    %1280 = arith.addf %1216, %1279 : vector<8x128xf32>
    %c3_752 = arith.constant 3 : index
    %c152_753 = arith.constant 152 : index
    %c0_754 = arith.constant 0 : index
    %1281 = vector.load %arg3[%c3_752, %c152_753, %c0_754] : memref<10x192x128xf32, #tpu.memory_space<vmem>>, vector<1x8x128xf32>
    %1282 = vector.shape_cast %1281 : vector<1x8x128xf32> to vector<8x128xf32>
    %1283 = arith.mulf %1260, %1282 : vector<8x128xf32>
    %1284 = arith.addf %1220, %1283 : vector<8x128xf32>
    %1285 = arith.mulf %1262, %1282 : vector<8x128xf32>
    %1286 = arith.addf %1222, %1285 : vector<8x128xf32>
    %c4_755 = arith.constant 4 : index
    %c152_756 = arith.constant 152 : index
    %c0_757 = arith.constant 0 : index
    %1287 = vector.load %arg3[%c4_755, %c152_756, %c0_757] : memref<10x192x128xf32, #tpu.memory_space<vmem>>, vector<1x8x128xf32>
    %1288 = vector.shape_cast %1287 : vector<1x8x128xf32> to vector<8x128xf32>
    %1289 = arith.mulf %1260, %1288 : vector<8x128xf32>
    %1290 = arith.addf %1226, %1289 : vector<8x128xf32>
    %1291 = arith.mulf %1262, %1288 : vector<8x128xf32>
    %1292 = arith.addf %1228, %1291 : vector<8x128xf32>
    %c5_758 = arith.constant 5 : index
    %c152_759 = arith.constant 152 : index
    %c0_760 = arith.constant 0 : index
    %1293 = vector.load %arg3[%c5_758, %c152_759, %c0_760] : memref<10x192x128xf32, #tpu.memory_space<vmem>>, vector<1x8x128xf32>
    %1294 = vector.shape_cast %1293 : vector<1x8x128xf32> to vector<8x128xf32>
    %1295 = arith.mulf %1260, %1294 : vector<8x128xf32>
    %1296 = arith.addf %1232, %1295 : vector<8x128xf32>
    %1297 = arith.mulf %1262, %1294 : vector<8x128xf32>
    %1298 = arith.addf %1234, %1297 : vector<8x128xf32>
    %c6_761 = arith.constant 6 : index
    %c152_762 = arith.constant 152 : index
    %c0_763 = arith.constant 0 : index
    %1299 = vector.load %arg3[%c6_761, %c152_762, %c0_763] : memref<10x192x128xf32, #tpu.memory_space<vmem>>, vector<1x8x128xf32>
    %1300 = vector.shape_cast %1299 : vector<1x8x128xf32> to vector<8x128xf32>
    %1301 = arith.mulf %1260, %1300 : vector<8x128xf32>
    %1302 = arith.addf %1238, %1301 : vector<8x128xf32>
    %1303 = arith.mulf %1262, %1300 : vector<8x128xf32>
    %1304 = arith.addf %1240, %1303 : vector<8x128xf32>
    %c7_764 = arith.constant 7 : index
    %c152_765 = arith.constant 152 : index
    %c0_766 = arith.constant 0 : index
    %1305 = vector.load %arg3[%c7_764, %c152_765, %c0_766] : memref<10x192x128xf32, #tpu.memory_space<vmem>>, vector<1x8x128xf32>
    %1306 = vector.shape_cast %1305 : vector<1x8x128xf32> to vector<8x128xf32>
    %1307 = arith.mulf %1260, %1306 : vector<8x128xf32>
    %1308 = arith.addf %1244, %1307 : vector<8x128xf32>
    %1309 = arith.mulf %1262, %1306 : vector<8x128xf32>
    %1310 = arith.addf %1246, %1309 : vector<8x128xf32>
    %c8_767 = arith.constant 8 : index
    %c152_768 = arith.constant 152 : index
    %c0_769 = arith.constant 0 : index
    %1311 = vector.load %arg3[%c8_767, %c152_768, %c0_769] : memref<10x192x128xf32, #tpu.memory_space<vmem>>, vector<1x8x128xf32>
    %1312 = vector.shape_cast %1311 : vector<1x8x128xf32> to vector<8x128xf32>
    %1313 = arith.mulf %1260, %1312 : vector<8x128xf32>
    %1314 = arith.addf %1250, %1313 : vector<8x128xf32>
    %1315 = arith.mulf %1262, %1312 : vector<8x128xf32>
    %1316 = arith.addf %1252, %1315 : vector<8x128xf32>
    %c9_770 = arith.constant 9 : index
    %c152_771 = arith.constant 152 : index
    %c0_772 = arith.constant 0 : index
    %1317 = vector.load %arg3[%c9_770, %c152_771, %c0_772] : memref<10x192x128xf32, #tpu.memory_space<vmem>>, vector<1x8x128xf32>
    %1318 = vector.shape_cast %1317 : vector<1x8x128xf32> to vector<8x128xf32>
    %1319 = arith.mulf %1260, %1318 : vector<8x128xf32>
    %1320 = arith.addf %1256, %1319 : vector<8x128xf32>
    %1321 = arith.mulf %1262, %1318 : vector<8x128xf32>
    %1322 = arith.addf %1258, %1321 : vector<8x128xf32>
    %c0_773 = arith.constant 0 : index
    %c160 = arith.constant 160 : index
    %c0_774 = arith.constant 0 : index
    %1323 = vector.load %arg2[%c0_773, %c160, %c0_774] : memref<2x192x128xf32, #tpu.memory_space<vmem>>, vector<1x8x128xf32>
    %1324 = vector.shape_cast %1323 : vector<1x8x128xf32> to vector<8x128xf32>
    %c1_775 = arith.constant 1 : index
    %c160_776 = arith.constant 160 : index
    %c0_777 = arith.constant 0 : index
    %1325 = vector.load %arg2[%c1_775, %c160_776, %c0_777] : memref<2x192x128xf32, #tpu.memory_space<vmem>>, vector<1x8x128xf32>
    %1326 = vector.shape_cast %1325 : vector<1x8x128xf32> to vector<8x128xf32>
    %c0_778 = arith.constant 0 : index
    %c160_779 = arith.constant 160 : index
    %c0_780 = arith.constant 0 : index
    %1327 = vector.load %arg3[%c0_778, %c160_779, %c0_780] : memref<10x192x128xf32, #tpu.memory_space<vmem>>, vector<1x8x128xf32>
    %1328 = vector.shape_cast %1327 : vector<1x8x128xf32> to vector<8x128xf32>
    %1329 = arith.mulf %1324, %1328 : vector<8x128xf32>
    %1330 = arith.addf %1266, %1329 : vector<8x128xf32>
    %1331 = arith.mulf %1326, %1328 : vector<8x128xf32>
    %1332 = arith.addf %1268, %1331 : vector<8x128xf32>
    %c1_781 = arith.constant 1 : index
    %c160_782 = arith.constant 160 : index
    %c0_783 = arith.constant 0 : index
    %1333 = vector.load %arg3[%c1_781, %c160_782, %c0_783] : memref<10x192x128xf32, #tpu.memory_space<vmem>>, vector<1x8x128xf32>
    %1334 = vector.shape_cast %1333 : vector<1x8x128xf32> to vector<8x128xf32>
    %1335 = arith.mulf %1324, %1334 : vector<8x128xf32>
    %1336 = arith.addf %1272, %1335 : vector<8x128xf32>
    %1337 = arith.mulf %1326, %1334 : vector<8x128xf32>
    %1338 = arith.addf %1274, %1337 : vector<8x128xf32>
    %c2_784 = arith.constant 2 : index
    %c160_785 = arith.constant 160 : index
    %c0_786 = arith.constant 0 : index
    %1339 = vector.load %arg3[%c2_784, %c160_785, %c0_786] : memref<10x192x128xf32, #tpu.memory_space<vmem>>, vector<1x8x128xf32>
    %1340 = vector.shape_cast %1339 : vector<1x8x128xf32> to vector<8x128xf32>
    %1341 = arith.mulf %1324, %1340 : vector<8x128xf32>
    %1342 = arith.addf %1278, %1341 : vector<8x128xf32>
    %1343 = arith.mulf %1326, %1340 : vector<8x128xf32>
    %1344 = arith.addf %1280, %1343 : vector<8x128xf32>
    %c3_787 = arith.constant 3 : index
    %c160_788 = arith.constant 160 : index
    %c0_789 = arith.constant 0 : index
    %1345 = vector.load %arg3[%c3_787, %c160_788, %c0_789] : memref<10x192x128xf32, #tpu.memory_space<vmem>>, vector<1x8x128xf32>
    %1346 = vector.shape_cast %1345 : vector<1x8x128xf32> to vector<8x128xf32>
    %1347 = arith.mulf %1324, %1346 : vector<8x128xf32>
    %1348 = arith.addf %1284, %1347 : vector<8x128xf32>
    %1349 = arith.mulf %1326, %1346 : vector<8x128xf32>
    %1350 = arith.addf %1286, %1349 : vector<8x128xf32>
    %c4_790 = arith.constant 4 : index
    %c160_791 = arith.constant 160 : index
    %c0_792 = arith.constant 0 : index
    %1351 = vector.load %arg3[%c4_790, %c160_791, %c0_792] : memref<10x192x128xf32, #tpu.memory_space<vmem>>, vector<1x8x128xf32>
    %1352 = vector.shape_cast %1351 : vector<1x8x128xf32> to vector<8x128xf32>
    %1353 = arith.mulf %1324, %1352 : vector<8x128xf32>
    %1354 = arith.addf %1290, %1353 : vector<8x128xf32>
    %1355 = arith.mulf %1326, %1352 : vector<8x128xf32>
    %1356 = arith.addf %1292, %1355 : vector<8x128xf32>
    %c5_793 = arith.constant 5 : index
    %c160_794 = arith.constant 160 : index
    %c0_795 = arith.constant 0 : index
    %1357 = vector.load %arg3[%c5_793, %c160_794, %c0_795] : memref<10x192x128xf32, #tpu.memory_space<vmem>>, vector<1x8x128xf32>
    %1358 = vector.shape_cast %1357 : vector<1x8x128xf32> to vector<8x128xf32>
    %1359 = arith.mulf %1324, %1358 : vector<8x128xf32>
    %1360 = arith.addf %1296, %1359 : vector<8x128xf32>
    %1361 = arith.mulf %1326, %1358 : vector<8x128xf32>
    %1362 = arith.addf %1298, %1361 : vector<8x128xf32>
    %c6_796 = arith.constant 6 : index
    %c160_797 = arith.constant 160 : index
    %c0_798 = arith.constant 0 : index
    %1363 = vector.load %arg3[%c6_796, %c160_797, %c0_798] : memref<10x192x128xf32, #tpu.memory_space<vmem>>, vector<1x8x128xf32>
    %1364 = vector.shape_cast %1363 : vector<1x8x128xf32> to vector<8x128xf32>
    %1365 = arith.mulf %1324, %1364 : vector<8x128xf32>
    %1366 = arith.addf %1302, %1365 : vector<8x128xf32>
    %1367 = arith.mulf %1326, %1364 : vector<8x128xf32>
    %1368 = arith.addf %1304, %1367 : vector<8x128xf32>
    %c7_799 = arith.constant 7 : index
    %c160_800 = arith.constant 160 : index
    %c0_801 = arith.constant 0 : index
    %1369 = vector.load %arg3[%c7_799, %c160_800, %c0_801] : memref<10x192x128xf32, #tpu.memory_space<vmem>>, vector<1x8x128xf32>
    %1370 = vector.shape_cast %1369 : vector<1x8x128xf32> to vector<8x128xf32>
    %1371 = arith.mulf %1324, %1370 : vector<8x128xf32>
    %1372 = arith.addf %1308, %1371 : vector<8x128xf32>
    %1373 = arith.mulf %1326, %1370 : vector<8x128xf32>
    %1374 = arith.addf %1310, %1373 : vector<8x128xf32>
    %c8_802 = arith.constant 8 : index
    %c160_803 = arith.constant 160 : index
    %c0_804 = arith.constant 0 : index
    %1375 = vector.load %arg3[%c8_802, %c160_803, %c0_804] : memref<10x192x128xf32, #tpu.memory_space<vmem>>, vector<1x8x128xf32>
    %1376 = vector.shape_cast %1375 : vector<1x8x128xf32> to vector<8x128xf32>
    %1377 = arith.mulf %1324, %1376 : vector<8x128xf32>
    %1378 = arith.addf %1314, %1377 : vector<8x128xf32>
    %1379 = arith.mulf %1326, %1376 : vector<8x128xf32>
    %1380 = arith.addf %1316, %1379 : vector<8x128xf32>
    %c9_805 = arith.constant 9 : index
    %c160_806 = arith.constant 160 : index
    %c0_807 = arith.constant 0 : index
    %1381 = vector.load %arg3[%c9_805, %c160_806, %c0_807] : memref<10x192x128xf32, #tpu.memory_space<vmem>>, vector<1x8x128xf32>
    %1382 = vector.shape_cast %1381 : vector<1x8x128xf32> to vector<8x128xf32>
    %1383 = arith.mulf %1324, %1382 : vector<8x128xf32>
    %1384 = arith.addf %1320, %1383 : vector<8x128xf32>
    %1385 = arith.mulf %1326, %1382 : vector<8x128xf32>
    %1386 = arith.addf %1322, %1385 : vector<8x128xf32>
    %c0_808 = arith.constant 0 : index
    %c168 = arith.constant 168 : index
    %c0_809 = arith.constant 0 : index
    %1387 = vector.load %arg2[%c0_808, %c168, %c0_809] : memref<2x192x128xf32, #tpu.memory_space<vmem>>, vector<1x8x128xf32>
    %1388 = vector.shape_cast %1387 : vector<1x8x128xf32> to vector<8x128xf32>
    %c1_810 = arith.constant 1 : index
    %c168_811 = arith.constant 168 : index
    %c0_812 = arith.constant 0 : index
    %1389 = vector.load %arg2[%c1_810, %c168_811, %c0_812] : memref<2x192x128xf32, #tpu.memory_space<vmem>>, vector<1x8x128xf32>
    %1390 = vector.shape_cast %1389 : vector<1x8x128xf32> to vector<8x128xf32>
    %c0_813 = arith.constant 0 : index
    %c168_814 = arith.constant 168 : index
    %c0_815 = arith.constant 0 : index
    %1391 = vector.load %arg3[%c0_813, %c168_814, %c0_815] : memref<10x192x128xf32, #tpu.memory_space<vmem>>, vector<1x8x128xf32>
    %1392 = vector.shape_cast %1391 : vector<1x8x128xf32> to vector<8x128xf32>
    %1393 = arith.mulf %1388, %1392 : vector<8x128xf32>
    %1394 = arith.addf %1330, %1393 : vector<8x128xf32>
    %1395 = arith.mulf %1390, %1392 : vector<8x128xf32>
    %1396 = arith.addf %1332, %1395 : vector<8x128xf32>
    %c1_816 = arith.constant 1 : index
    %c168_817 = arith.constant 168 : index
    %c0_818 = arith.constant 0 : index
    %1397 = vector.load %arg3[%c1_816, %c168_817, %c0_818] : memref<10x192x128xf32, #tpu.memory_space<vmem>>, vector<1x8x128xf32>
    %1398 = vector.shape_cast %1397 : vector<1x8x128xf32> to vector<8x128xf32>
    %1399 = arith.mulf %1388, %1398 : vector<8x128xf32>
    %1400 = arith.addf %1336, %1399 : vector<8x128xf32>
    %1401 = arith.mulf %1390, %1398 : vector<8x128xf32>
    %1402 = arith.addf %1338, %1401 : vector<8x128xf32>
    %c2_819 = arith.constant 2 : index
    %c168_820 = arith.constant 168 : index
    %c0_821 = arith.constant 0 : index
    %1403 = vector.load %arg3[%c2_819, %c168_820, %c0_821] : memref<10x192x128xf32, #tpu.memory_space<vmem>>, vector<1x8x128xf32>
    %1404 = vector.shape_cast %1403 : vector<1x8x128xf32> to vector<8x128xf32>
    %1405 = arith.mulf %1388, %1404 : vector<8x128xf32>
    %1406 = arith.addf %1342, %1405 : vector<8x128xf32>
    %1407 = arith.mulf %1390, %1404 : vector<8x128xf32>
    %1408 = arith.addf %1344, %1407 : vector<8x128xf32>
    %c3_822 = arith.constant 3 : index
    %c168_823 = arith.constant 168 : index
    %c0_824 = arith.constant 0 : index
    %1409 = vector.load %arg3[%c3_822, %c168_823, %c0_824] : memref<10x192x128xf32, #tpu.memory_space<vmem>>, vector<1x8x128xf32>
    %1410 = vector.shape_cast %1409 : vector<1x8x128xf32> to vector<8x128xf32>
    %1411 = arith.mulf %1388, %1410 : vector<8x128xf32>
    %1412 = arith.addf %1348, %1411 : vector<8x128xf32>
    %1413 = arith.mulf %1390, %1410 : vector<8x128xf32>
    %1414 = arith.addf %1350, %1413 : vector<8x128xf32>
    %c4_825 = arith.constant 4 : index
    %c168_826 = arith.constant 168 : index
    %c0_827 = arith.constant 0 : index
    %1415 = vector.load %arg3[%c4_825, %c168_826, %c0_827] : memref<10x192x128xf32, #tpu.memory_space<vmem>>, vector<1x8x128xf32>
    %1416 = vector.shape_cast %1415 : vector<1x8x128xf32> to vector<8x128xf32>
    %1417 = arith.mulf %1388, %1416 : vector<8x128xf32>
    %1418 = arith.addf %1354, %1417 : vector<8x128xf32>
    %1419 = arith.mulf %1390, %1416 : vector<8x128xf32>
    %1420 = arith.addf %1356, %1419 : vector<8x128xf32>
    %c5_828 = arith.constant 5 : index
    %c168_829 = arith.constant 168 : index
    %c0_830 = arith.constant 0 : index
    %1421 = vector.load %arg3[%c5_828, %c168_829, %c0_830] : memref<10x192x128xf32, #tpu.memory_space<vmem>>, vector<1x8x128xf32>
    %1422 = vector.shape_cast %1421 : vector<1x8x128xf32> to vector<8x128xf32>
    %1423 = arith.mulf %1388, %1422 : vector<8x128xf32>
    %1424 = arith.addf %1360, %1423 : vector<8x128xf32>
    %1425 = arith.mulf %1390, %1422 : vector<8x128xf32>
    %1426 = arith.addf %1362, %1425 : vector<8x128xf32>
    %c6_831 = arith.constant 6 : index
    %c168_832 = arith.constant 168 : index
    %c0_833 = arith.constant 0 : index
    %1427 = vector.load %arg3[%c6_831, %c168_832, %c0_833] : memref<10x192x128xf32, #tpu.memory_space<vmem>>, vector<1x8x128xf32>
    %1428 = vector.shape_cast %1427 : vector<1x8x128xf32> to vector<8x128xf32>
    %1429 = arith.mulf %1388, %1428 : vector<8x128xf32>
    %1430 = arith.addf %1366, %1429 : vector<8x128xf32>
    %1431 = arith.mulf %1390, %1428 : vector<8x128xf32>
    %1432 = arith.addf %1368, %1431 : vector<8x128xf32>
    %c7_834 = arith.constant 7 : index
    %c168_835 = arith.constant 168 : index
    %c0_836 = arith.constant 0 : index
    %1433 = vector.load %arg3[%c7_834, %c168_835, %c0_836] : memref<10x192x128xf32, #tpu.memory_space<vmem>>, vector<1x8x128xf32>
    %1434 = vector.shape_cast %1433 : vector<1x8x128xf32> to vector<8x128xf32>
    %1435 = arith.mulf %1388, %1434 : vector<8x128xf32>
    %1436 = arith.addf %1372, %1435 : vector<8x128xf32>
    %1437 = arith.mulf %1390, %1434 : vector<8x128xf32>
    %1438 = arith.addf %1374, %1437 : vector<8x128xf32>
    %c8_837 = arith.constant 8 : index
    %c168_838 = arith.constant 168 : index
    %c0_839 = arith.constant 0 : index
    %1439 = vector.load %arg3[%c8_837, %c168_838, %c0_839] : memref<10x192x128xf32, #tpu.memory_space<vmem>>, vector<1x8x128xf32>
    %1440 = vector.shape_cast %1439 : vector<1x8x128xf32> to vector<8x128xf32>
    %1441 = arith.mulf %1388, %1440 : vector<8x128xf32>
    %1442 = arith.addf %1378, %1441 : vector<8x128xf32>
    %1443 = arith.mulf %1390, %1440 : vector<8x128xf32>
    %1444 = arith.addf %1380, %1443 : vector<8x128xf32>
    %c9_840 = arith.constant 9 : index
    %c168_841 = arith.constant 168 : index
    %c0_842 = arith.constant 0 : index
    %1445 = vector.load %arg3[%c9_840, %c168_841, %c0_842] : memref<10x192x128xf32, #tpu.memory_space<vmem>>, vector<1x8x128xf32>
    %1446 = vector.shape_cast %1445 : vector<1x8x128xf32> to vector<8x128xf32>
    %1447 = arith.mulf %1388, %1446 : vector<8x128xf32>
    %1448 = arith.addf %1384, %1447 : vector<8x128xf32>
    %1449 = arith.mulf %1390, %1446 : vector<8x128xf32>
    %1450 = arith.addf %1386, %1449 : vector<8x128xf32>
    %c0_843 = arith.constant 0 : index
    %c176 = arith.constant 176 : index
    %c0_844 = arith.constant 0 : index
    %1451 = vector.load %arg2[%c0_843, %c176, %c0_844] : memref<2x192x128xf32, #tpu.memory_space<vmem>>, vector<1x8x128xf32>
    %1452 = vector.shape_cast %1451 : vector<1x8x128xf32> to vector<8x128xf32>
    %c1_845 = arith.constant 1 : index
    %c176_846 = arith.constant 176 : index
    %c0_847 = arith.constant 0 : index
    %1453 = vector.load %arg2[%c1_845, %c176_846, %c0_847] : memref<2x192x128xf32, #tpu.memory_space<vmem>>, vector<1x8x128xf32>
    %1454 = vector.shape_cast %1453 : vector<1x8x128xf32> to vector<8x128xf32>
    %c0_848 = arith.constant 0 : index
    %c176_849 = arith.constant 176 : index
    %c0_850 = arith.constant 0 : index
    %1455 = vector.load %arg3[%c0_848, %c176_849, %c0_850] : memref<10x192x128xf32, #tpu.memory_space<vmem>>, vector<1x8x128xf32>
    %1456 = vector.shape_cast %1455 : vector<1x8x128xf32> to vector<8x128xf32>
    %1457 = arith.mulf %1452, %1456 : vector<8x128xf32>
    %1458 = arith.addf %1394, %1457 : vector<8x128xf32>
    %1459 = arith.mulf %1454, %1456 : vector<8x128xf32>
    %1460 = arith.addf %1396, %1459 : vector<8x128xf32>
    %c1_851 = arith.constant 1 : index
    %c176_852 = arith.constant 176 : index
    %c0_853 = arith.constant 0 : index
    %1461 = vector.load %arg3[%c1_851, %c176_852, %c0_853] : memref<10x192x128xf32, #tpu.memory_space<vmem>>, vector<1x8x128xf32>
    %1462 = vector.shape_cast %1461 : vector<1x8x128xf32> to vector<8x128xf32>
    %1463 = arith.mulf %1452, %1462 : vector<8x128xf32>
    %1464 = arith.addf %1400, %1463 : vector<8x128xf32>
    %1465 = arith.mulf %1454, %1462 : vector<8x128xf32>
    %1466 = arith.addf %1402, %1465 : vector<8x128xf32>
    %c2_854 = arith.constant 2 : index
    %c176_855 = arith.constant 176 : index
    %c0_856 = arith.constant 0 : index
    %1467 = vector.load %arg3[%c2_854, %c176_855, %c0_856] : memref<10x192x128xf32, #tpu.memory_space<vmem>>, vector<1x8x128xf32>
    %1468 = vector.shape_cast %1467 : vector<1x8x128xf32> to vector<8x128xf32>
    %1469 = arith.mulf %1452, %1468 : vector<8x128xf32>
    %1470 = arith.addf %1406, %1469 : vector<8x128xf32>
    %1471 = arith.mulf %1454, %1468 : vector<8x128xf32>
    %1472 = arith.addf %1408, %1471 : vector<8x128xf32>
    %c3_857 = arith.constant 3 : index
    %c176_858 = arith.constant 176 : index
    %c0_859 = arith.constant 0 : index
    %1473 = vector.load %arg3[%c3_857, %c176_858, %c0_859] : memref<10x192x128xf32, #tpu.memory_space<vmem>>, vector<1x8x128xf32>
    %1474 = vector.shape_cast %1473 : vector<1x8x128xf32> to vector<8x128xf32>
    %1475 = arith.mulf %1452, %1474 : vector<8x128xf32>
    %1476 = arith.addf %1412, %1475 : vector<8x128xf32>
    %1477 = arith.mulf %1454, %1474 : vector<8x128xf32>
    %1478 = arith.addf %1414, %1477 : vector<8x128xf32>
    %c4_860 = arith.constant 4 : index
    %c176_861 = arith.constant 176 : index
    %c0_862 = arith.constant 0 : index
    %1479 = vector.load %arg3[%c4_860, %c176_861, %c0_862] : memref<10x192x128xf32, #tpu.memory_space<vmem>>, vector<1x8x128xf32>
    %1480 = vector.shape_cast %1479 : vector<1x8x128xf32> to vector<8x128xf32>
    %1481 = arith.mulf %1452, %1480 : vector<8x128xf32>
    %1482 = arith.addf %1418, %1481 : vector<8x128xf32>
    %1483 = arith.mulf %1454, %1480 : vector<8x128xf32>
    %1484 = arith.addf %1420, %1483 : vector<8x128xf32>
    %c5_863 = arith.constant 5 : index
    %c176_864 = arith.constant 176 : index
    %c0_865 = arith.constant 0 : index
    %1485 = vector.load %arg3[%c5_863, %c176_864, %c0_865] : memref<10x192x128xf32, #tpu.memory_space<vmem>>, vector<1x8x128xf32>
    %1486 = vector.shape_cast %1485 : vector<1x8x128xf32> to vector<8x128xf32>
    %1487 = arith.mulf %1452, %1486 : vector<8x128xf32>
    %1488 = arith.addf %1424, %1487 : vector<8x128xf32>
    %1489 = arith.mulf %1454, %1486 : vector<8x128xf32>
    %1490 = arith.addf %1426, %1489 : vector<8x128xf32>
    %c6_866 = arith.constant 6 : index
    %c176_867 = arith.constant 176 : index
    %c0_868 = arith.constant 0 : index
    %1491 = vector.load %arg3[%c6_866, %c176_867, %c0_868] : memref<10x192x128xf32, #tpu.memory_space<vmem>>, vector<1x8x128xf32>
    %1492 = vector.shape_cast %1491 : vector<1x8x128xf32> to vector<8x128xf32>
    %1493 = arith.mulf %1452, %1492 : vector<8x128xf32>
    %1494 = arith.addf %1430, %1493 : vector<8x128xf32>
    %1495 = arith.mulf %1454, %1492 : vector<8x128xf32>
    %1496 = arith.addf %1432, %1495 : vector<8x128xf32>
    %c7_869 = arith.constant 7 : index
    %c176_870 = arith.constant 176 : index
    %c0_871 = arith.constant 0 : index
    %1497 = vector.load %arg3[%c7_869, %c176_870, %c0_871] : memref<10x192x128xf32, #tpu.memory_space<vmem>>, vector<1x8x128xf32>
    %1498 = vector.shape_cast %1497 : vector<1x8x128xf32> to vector<8x128xf32>
    %1499 = arith.mulf %1452, %1498 : vector<8x128xf32>
    %1500 = arith.addf %1436, %1499 : vector<8x128xf32>
    %1501 = arith.mulf %1454, %1498 : vector<8x128xf32>
    %1502 = arith.addf %1438, %1501 : vector<8x128xf32>
    %c8_872 = arith.constant 8 : index
    %c176_873 = arith.constant 176 : index
    %c0_874 = arith.constant 0 : index
    %1503 = vector.load %arg3[%c8_872, %c176_873, %c0_874] : memref<10x192x128xf32, #tpu.memory_space<vmem>>, vector<1x8x128xf32>
    %1504 = vector.shape_cast %1503 : vector<1x8x128xf32> to vector<8x128xf32>
    %1505 = arith.mulf %1452, %1504 : vector<8x128xf32>
    %1506 = arith.addf %1442, %1505 : vector<8x128xf32>
    %1507 = arith.mulf %1454, %1504 : vector<8x128xf32>
    %1508 = arith.addf %1444, %1507 : vector<8x128xf32>
    %c9_875 = arith.constant 9 : index
    %c176_876 = arith.constant 176 : index
    %c0_877 = arith.constant 0 : index
    %1509 = vector.load %arg3[%c9_875, %c176_876, %c0_877] : memref<10x192x128xf32, #tpu.memory_space<vmem>>, vector<1x8x128xf32>
    %1510 = vector.shape_cast %1509 : vector<1x8x128xf32> to vector<8x128xf32>
    %1511 = arith.mulf %1452, %1510 : vector<8x128xf32>
    %1512 = arith.addf %1448, %1511 : vector<8x128xf32>
    %1513 = arith.mulf %1454, %1510 : vector<8x128xf32>
    %1514 = arith.addf %1450, %1513 : vector<8x128xf32>
    %c0_878 = arith.constant 0 : index
    %c184 = arith.constant 184 : index
    %c0_879 = arith.constant 0 : index
    %1515 = vector.load %arg2[%c0_878, %c184, %c0_879] : memref<2x192x128xf32, #tpu.memory_space<vmem>>, vector<1x8x128xf32>
    %1516 = vector.shape_cast %1515 : vector<1x8x128xf32> to vector<8x128xf32>
    %c1_880 = arith.constant 1 : index
    %c184_881 = arith.constant 184 : index
    %c0_882 = arith.constant 0 : index
    %1517 = vector.load %arg2[%c1_880, %c184_881, %c0_882] : memref<2x192x128xf32, #tpu.memory_space<vmem>>, vector<1x8x128xf32>
    %1518 = vector.shape_cast %1517 : vector<1x8x128xf32> to vector<8x128xf32>
    %c0_883 = arith.constant 0 : index
    %c184_884 = arith.constant 184 : index
    %c0_885 = arith.constant 0 : index
    %1519 = vector.load %arg3[%c0_883, %c184_884, %c0_885] : memref<10x192x128xf32, #tpu.memory_space<vmem>>, vector<1x8x128xf32>
    %1520 = vector.shape_cast %1519 : vector<1x8x128xf32> to vector<8x128xf32>
    %1521 = arith.mulf %1516, %1520 : vector<8x128xf32>
    %1522 = arith.addf %1458, %1521 : vector<8x128xf32>
    %1523 = arith.mulf %1518, %1520 : vector<8x128xf32>
    %1524 = arith.addf %1460, %1523 : vector<8x128xf32>
    %c1_886 = arith.constant 1 : index
    %c184_887 = arith.constant 184 : index
    %c0_888 = arith.constant 0 : index
    %1525 = vector.load %arg3[%c1_886, %c184_887, %c0_888] : memref<10x192x128xf32, #tpu.memory_space<vmem>>, vector<1x8x128xf32>
    %1526 = vector.shape_cast %1525 : vector<1x8x128xf32> to vector<8x128xf32>
    %1527 = arith.mulf %1516, %1526 : vector<8x128xf32>
    %1528 = arith.addf %1464, %1527 : vector<8x128xf32>
    %1529 = arith.mulf %1518, %1526 : vector<8x128xf32>
    %1530 = arith.addf %1466, %1529 : vector<8x128xf32>
    %c2_889 = arith.constant 2 : index
    %c184_890 = arith.constant 184 : index
    %c0_891 = arith.constant 0 : index
    %1531 = vector.load %arg3[%c2_889, %c184_890, %c0_891] : memref<10x192x128xf32, #tpu.memory_space<vmem>>, vector<1x8x128xf32>
    %1532 = vector.shape_cast %1531 : vector<1x8x128xf32> to vector<8x128xf32>
    %1533 = arith.mulf %1516, %1532 : vector<8x128xf32>
    %1534 = arith.addf %1470, %1533 : vector<8x128xf32>
    %1535 = arith.mulf %1518, %1532 : vector<8x128xf32>
    %1536 = arith.addf %1472, %1535 : vector<8x128xf32>
    %c3_892 = arith.constant 3 : index
    %c184_893 = arith.constant 184 : index
    %c0_894 = arith.constant 0 : index
    %1537 = vector.load %arg3[%c3_892, %c184_893, %c0_894] : memref<10x192x128xf32, #tpu.memory_space<vmem>>, vector<1x8x128xf32>
    %1538 = vector.shape_cast %1537 : vector<1x8x128xf32> to vector<8x128xf32>
    %1539 = arith.mulf %1516, %1538 : vector<8x128xf32>
    %1540 = arith.addf %1476, %1539 : vector<8x128xf32>
    %1541 = arith.mulf %1518, %1538 : vector<8x128xf32>
    %1542 = arith.addf %1478, %1541 : vector<8x128xf32>
    %c4_895 = arith.constant 4 : index
    %c184_896 = arith.constant 184 : index
    %c0_897 = arith.constant 0 : index
    %1543 = vector.load %arg3[%c4_895, %c184_896, %c0_897] : memref<10x192x128xf32, #tpu.memory_space<vmem>>, vector<1x8x128xf32>
    %1544 = vector.shape_cast %1543 : vector<1x8x128xf32> to vector<8x128xf32>
    %1545 = arith.mulf %1516, %1544 : vector<8x128xf32>
    %1546 = arith.addf %1482, %1545 : vector<8x128xf32>
    %1547 = arith.mulf %1518, %1544 : vector<8x128xf32>
    %1548 = arith.addf %1484, %1547 : vector<8x128xf32>
    %c5_898 = arith.constant 5 : index
    %c184_899 = arith.constant 184 : index
    %c0_900 = arith.constant 0 : index
    %1549 = vector.load %arg3[%c5_898, %c184_899, %c0_900] : memref<10x192x128xf32, #tpu.memory_space<vmem>>, vector<1x8x128xf32>
    %1550 = vector.shape_cast %1549 : vector<1x8x128xf32> to vector<8x128xf32>
    %1551 = arith.mulf %1516, %1550 : vector<8x128xf32>
    %1552 = arith.addf %1488, %1551 : vector<8x128xf32>
    %1553 = arith.mulf %1518, %1550 : vector<8x128xf32>
    %1554 = arith.addf %1490, %1553 : vector<8x128xf32>
    %c6_901 = arith.constant 6 : index
    %c184_902 = arith.constant 184 : index
    %c0_903 = arith.constant 0 : index
    %1555 = vector.load %arg3[%c6_901, %c184_902, %c0_903] : memref<10x192x128xf32, #tpu.memory_space<vmem>>, vector<1x8x128xf32>
    %1556 = vector.shape_cast %1555 : vector<1x8x128xf32> to vector<8x128xf32>
    %1557 = arith.mulf %1516, %1556 : vector<8x128xf32>
    %1558 = arith.addf %1494, %1557 : vector<8x128xf32>
    %1559 = arith.mulf %1518, %1556 : vector<8x128xf32>
    %1560 = arith.addf %1496, %1559 : vector<8x128xf32>
    %c7_904 = arith.constant 7 : index
    %c184_905 = arith.constant 184 : index
    %c0_906 = arith.constant 0 : index
    %1561 = vector.load %arg3[%c7_904, %c184_905, %c0_906] : memref<10x192x128xf32, #tpu.memory_space<vmem>>, vector<1x8x128xf32>
    %1562 = vector.shape_cast %1561 : vector<1x8x128xf32> to vector<8x128xf32>
    %1563 = arith.mulf %1516, %1562 : vector<8x128xf32>
    %1564 = arith.addf %1500, %1563 : vector<8x128xf32>
    %1565 = arith.mulf %1518, %1562 : vector<8x128xf32>
    %1566 = arith.addf %1502, %1565 : vector<8x128xf32>
    %c8_907 = arith.constant 8 : index
    %c184_908 = arith.constant 184 : index
    %c0_909 = arith.constant 0 : index
    %1567 = vector.load %arg3[%c8_907, %c184_908, %c0_909] : memref<10x192x128xf32, #tpu.memory_space<vmem>>, vector<1x8x128xf32>
    %1568 = vector.shape_cast %1567 : vector<1x8x128xf32> to vector<8x128xf32>
    %1569 = arith.mulf %1516, %1568 : vector<8x128xf32>
    %1570 = arith.addf %1506, %1569 : vector<8x128xf32>
    %1571 = arith.mulf %1518, %1568 : vector<8x128xf32>
    %1572 = arith.addf %1508, %1571 : vector<8x128xf32>
    %c9_910 = arith.constant 9 : index
    %c184_911 = arith.constant 184 : index
    %c0_912 = arith.constant 0 : index
    %1573 = vector.load %arg3[%c9_910, %c184_911, %c0_912] : memref<10x192x128xf32, #tpu.memory_space<vmem>>, vector<1x8x128xf32>
    %1574 = vector.shape_cast %1573 : vector<1x8x128xf32> to vector<8x128xf32>
    %1575 = arith.mulf %1516, %1574 : vector<8x128xf32>
    %1576 = arith.addf %1512, %1575 : vector<8x128xf32>
    %1577 = arith.mulf %1518, %1574 : vector<8x128xf32>
    %1578 = arith.addf %1514, %1577 : vector<8x128xf32>
    %c0_913 = arith.constant 0 : index
    %c0_914 = arith.constant 0 : index
    %c0_915 = arith.constant 0 : index
    %c0_916 = arith.constant 0 : index
    %1579 = vector.load %arg6[%c0_913, %c0_914, %c0_915, %c0_916] : memref<2x10x8x128xf32, #tpu.memory_space<vmem>>, vector<1x1x8x128xf32>
    %1580 = vector.shape_cast %1579 : vector<1x1x8x128xf32> to vector<8x128xf32>
    %1581 = vector.shape_cast %1522 : vector<8x128xf32> to vector<1x1x8x128xf32>
    tpu.vector_store %arg6[%c0_913, %c0_914, %c0_915, %c0_916], %1581 {strides = array<i32>} : memref<2x10x8x128xf32, #tpu.memory_space<vmem>>, vector<1x1x8x128xf32>,
    %c0_917 = arith.constant 0 : index
    %c1_918 = arith.constant 1 : index
    %c0_919 = arith.constant 0 : index
    %c0_920 = arith.constant 0 : index
    %1582 = vector.load %arg6[%c0_917, %c1_918, %c0_919, %c0_920] : memref<2x10x8x128xf32, #tpu.memory_space<vmem>>, vector<1x1x8x128xf32>
    %1583 = vector.shape_cast %1582 : vector<1x1x8x128xf32> to vector<8x128xf32>
    %1584 = vector.shape_cast %1528 : vector<8x128xf32> to vector<1x1x8x128xf32>
    tpu.vector_store %arg6[%c0_917, %c1_918, %c0_919, %c0_920], %1584 {strides = array<i32>} : memref<2x10x8x128xf32, #tpu.memory_space<vmem>>, vector<1x1x8x128xf32>,
    %c0_921 = arith.constant 0 : index
    %c2_922 = arith.constant 2 : index
    %c0_923 = arith.constant 0 : index
    %c0_924 = arith.constant 0 : index
    %1585 = vector.load %arg6[%c0_921, %c2_922, %c0_923, %c0_924] : memref<2x10x8x128xf32, #tpu.memory_space<vmem>>, vector<1x1x8x128xf32>
    %1586 = vector.shape_cast %1585 : vector<1x1x8x128xf32> to vector<8x128xf32>
    %1587 = vector.shape_cast %1534 : vector<8x128xf32> to vector<1x1x8x128xf32>
    tpu.vector_store %arg6[%c0_921, %c2_922, %c0_923, %c0_924], %1587 {strides = array<i32>} : memref<2x10x8x128xf32, #tpu.memory_space<vmem>>, vector<1x1x8x128xf32>,
    %c0_925 = arith.constant 0 : index
    %c3_926 = arith.constant 3 : index
    %c0_927 = arith.constant 0 : index
    %c0_928 = arith.constant 0 : index
    %1588 = vector.load %arg6[%c0_925, %c3_926, %c0_927, %c0_928] : memref<2x10x8x128xf32, #tpu.memory_space<vmem>>, vector<1x1x8x128xf32>
    %1589 = vector.shape_cast %1588 : vector<1x1x8x128xf32> to vector<8x128xf32>
    %1590 = vector.shape_cast %1540 : vector<8x128xf32> to vector<1x1x8x128xf32>
    tpu.vector_store %arg6[%c0_925, %c3_926, %c0_927, %c0_928], %1590 {strides = array<i32>} : memref<2x10x8x128xf32, #tpu.memory_space<vmem>>, vector<1x1x8x128xf32>,
    %c0_929 = arith.constant 0 : index
    %c4_930 = arith.constant 4 : index
    %c0_931 = arith.constant 0 : index
    %c0_932 = arith.constant 0 : index
    %1591 = vector.load %arg6[%c0_929, %c4_930, %c0_931, %c0_932] : memref<2x10x8x128xf32, #tpu.memory_space<vmem>>, vector<1x1x8x128xf32>
    %1592 = vector.shape_cast %1591 : vector<1x1x8x128xf32> to vector<8x128xf32>
    %1593 = vector.shape_cast %1546 : vector<8x128xf32> to vector<1x1x8x128xf32>
    tpu.vector_store %arg6[%c0_929, %c4_930, %c0_931, %c0_932], %1593 {strides = array<i32>} : memref<2x10x8x128xf32, #tpu.memory_space<vmem>>, vector<1x1x8x128xf32>,
    %c0_933 = arith.constant 0 : index
    %c5_934 = arith.constant 5 : index
    %c0_935 = arith.constant 0 : index
    %c0_936 = arith.constant 0 : index
    %1594 = vector.load %arg6[%c0_933, %c5_934, %c0_935, %c0_936] : memref<2x10x8x128xf32, #tpu.memory_space<vmem>>, vector<1x1x8x128xf32>
    %1595 = vector.shape_cast %1594 : vector<1x1x8x128xf32> to vector<8x128xf32>
    %1596 = vector.shape_cast %1552 : vector<8x128xf32> to vector<1x1x8x128xf32>
    tpu.vector_store %arg6[%c0_933, %c5_934, %c0_935, %c0_936], %1596 {strides = array<i32>} : memref<2x10x8x128xf32, #tpu.memory_space<vmem>>, vector<1x1x8x128xf32>,
    %c0_937 = arith.constant 0 : index
    %c6_938 = arith.constant 6 : index
    %c0_939 = arith.constant 0 : index
    %c0_940 = arith.constant 0 : index
    %1597 = vector.load %arg6[%c0_937, %c6_938, %c0_939, %c0_940] : memref<2x10x8x128xf32, #tpu.memory_space<vmem>>, vector<1x1x8x128xf32>
    %1598 = vector.shape_cast %1597 : vector<1x1x8x128xf32> to vector<8x128xf32>
    %1599 = vector.shape_cast %1558 : vector<8x128xf32> to vector<1x1x8x128xf32>
    tpu.vector_store %arg6[%c0_937, %c6_938, %c0_939, %c0_940], %1599 {strides = array<i32>} : memref<2x10x8x128xf32, #tpu.memory_space<vmem>>, vector<1x1x8x128xf32>,
    %c0_941 = arith.constant 0 : index
    %c7_942 = arith.constant 7 : index
    %c0_943 = arith.constant 0 : index
    %c0_944 = arith.constant 0 : index
    %1600 = vector.load %arg6[%c0_941, %c7_942, %c0_943, %c0_944] : memref<2x10x8x128xf32, #tpu.memory_space<vmem>>, vector<1x1x8x128xf32>
    %1601 = vector.shape_cast %1600 : vector<1x1x8x128xf32> to vector<8x128xf32>
    %1602 = vector.shape_cast %1564 : vector<8x128xf32> to vector<1x1x8x128xf32>
    tpu.vector_store %arg6[%c0_941, %c7_942, %c0_943, %c0_944], %1602 {strides = array<i32>} : memref<2x10x8x128xf32, #tpu.memory_space<vmem>>, vector<1x1x8x128xf32>,
    %c0_945 = arith.constant 0 : index
    %c8_946 = arith.constant 8 : index
    %c0_947 = arith.constant 0 : index
    %c0_948 = arith.constant 0 : index
    %1603 = vector.load %arg6[%c0_945, %c8_946, %c0_947, %c0_948] : memref<2x10x8x128xf32, #tpu.memory_space<vmem>>, vector<1x1x8x128xf32>
    %1604 = vector.shape_cast %1603 : vector<1x1x8x128xf32> to vector<8x128xf32>
    %1605 = vector.shape_cast %1570 : vector<8x128xf32> to vector<1x1x8x128xf32>
    tpu.vector_store %arg6[%c0_945, %c8_946, %c0_947, %c0_948], %1605 {strides = array<i32>} : memref<2x10x8x128xf32, #tpu.memory_space<vmem>>, vector<1x1x8x128xf32>,
    %c0_949 = arith.constant 0 : index
    %c9_950 = arith.constant 9 : index
    %c0_951 = arith.constant 0 : index
    %c0_952 = arith.constant 0 : index
    %1606 = vector.load %arg6[%c0_949, %c9_950, %c0_951, %c0_952] : memref<2x10x8x128xf32, #tpu.memory_space<vmem>>, vector<1x1x8x128xf32>
    %1607 = vector.shape_cast %1606 : vector<1x1x8x128xf32> to vector<8x128xf32>
    %1608 = vector.shape_cast %1576 : vector<8x128xf32> to vector<1x1x8x128xf32>
    tpu.vector_store %arg6[%c0_949, %c9_950, %c0_951, %c0_952], %1608 {strides = array<i32>} : memref<2x10x8x128xf32, #tpu.memory_space<vmem>>, vector<1x1x8x128xf32>,
    %c1_953 = arith.constant 1 : index
    %c0_954 = arith.constant 0 : index
    %c0_955 = arith.constant 0 : index
    %c0_956 = arith.constant 0 : index
    %1609 = vector.load %arg6[%c1_953, %c0_954, %c0_955, %c0_956] : memref<2x10x8x128xf32, #tpu.memory_space<vmem>>, vector<1x1x8x128xf32>
    %1610 = vector.shape_cast %1609 : vector<1x1x8x128xf32> to vector<8x128xf32>
    %1611 = vector.shape_cast %1524 : vector<8x128xf32> to vector<1x1x8x128xf32>
    tpu.vector_store %arg6[%c1_953, %c0_954, %c0_955, %c0_956], %1611 {strides = array<i32>} : memref<2x10x8x128xf32, #tpu.memory_space<vmem>>, vector<1x1x8x128xf32>,
    %c1_957 = arith.constant 1 : index
    %c1_958 = arith.constant 1 : index
    %c0_959 = arith.constant 0 : index
    %c0_960 = arith.constant 0 : index
    %1612 = vector.load %arg6[%c1_957, %c1_958, %c0_959, %c0_960] : memref<2x10x8x128xf32, #tpu.memory_space<vmem>>, vector<1x1x8x128xf32>
    %1613 = vector.shape_cast %1612 : vector<1x1x8x128xf32> to vector<8x128xf32>
    %1614 = vector.shape_cast %1530 : vector<8x128xf32> to vector<1x1x8x128xf32>
    tpu.vector_store %arg6[%c1_957, %c1_958, %c0_959, %c0_960], %1614 {strides = array<i32>} : memref<2x10x8x128xf32, #tpu.memory_space<vmem>>, vector<1x1x8x128xf32>,
    %c1_961 = arith.constant 1 : index
    %c2_962 = arith.constant 2 : index
    %c0_963 = arith.constant 0 : index
    %c0_964 = arith.constant 0 : index
    %1615 = vector.load %arg6[%c1_961, %c2_962, %c0_963, %c0_964] : memref<2x10x8x128xf32, #tpu.memory_space<vmem>>, vector<1x1x8x128xf32>
    %1616 = vector.shape_cast %1615 : vector<1x1x8x128xf32> to vector<8x128xf32>
    %1617 = vector.shape_cast %1536 : vector<8x128xf32> to vector<1x1x8x128xf32>
    tpu.vector_store %arg6[%c1_961, %c2_962, %c0_963, %c0_964], %1617 {strides = array<i32>} : memref<2x10x8x128xf32, #tpu.memory_space<vmem>>, vector<1x1x8x128xf32>,
    %c1_965 = arith.constant 1 : index
    %c3_966 = arith.constant 3 : index
    %c0_967 = arith.constant 0 : index
    %c0_968 = arith.constant 0 : index
    %1618 = vector.load %arg6[%c1_965, %c3_966, %c0_967, %c0_968] : memref<2x10x8x128xf32, #tpu.memory_space<vmem>>, vector<1x1x8x128xf32>
    %1619 = vector.shape_cast %1618 : vector<1x1x8x128xf32> to vector<8x128xf32>
    %1620 = vector.shape_cast %1542 : vector<8x128xf32> to vector<1x1x8x128xf32>
    tpu.vector_store %arg6[%c1_965, %c3_966, %c0_967, %c0_968], %1620 {strides = array<i32>} : memref<2x10x8x128xf32, #tpu.memory_space<vmem>>, vector<1x1x8x128xf32>,
    %c1_969 = arith.constant 1 : index
    %c4_970 = arith.constant 4 : index
    %c0_971 = arith.constant 0 : index
    %c0_972 = arith.constant 0 : index
    %1621 = vector.load %arg6[%c1_969, %c4_970, %c0_971, %c0_972] : memref<2x10x8x128xf32, #tpu.memory_space<vmem>>, vector<1x1x8x128xf32>
    %1622 = vector.shape_cast %1621 : vector<1x1x8x128xf32> to vector<8x128xf32>
    %1623 = vector.shape_cast %1548 : vector<8x128xf32> to vector<1x1x8x128xf32>
    tpu.vector_store %arg6[%c1_969, %c4_970, %c0_971, %c0_972], %1623 {strides = array<i32>} : memref<2x10x8x128xf32, #tpu.memory_space<vmem>>, vector<1x1x8x128xf32>,
    %c1_973 = arith.constant 1 : index
    %c5_974 = arith.constant 5 : index
    %c0_975 = arith.constant 0 : index
    %c0_976 = arith.constant 0 : index
    %1624 = vector.load %arg6[%c1_973, %c5_974, %c0_975, %c0_976] : memref<2x10x8x128xf32, #tpu.memory_space<vmem>>, vector<1x1x8x128xf32>
    %1625 = vector.shape_cast %1624 : vector<1x1x8x128xf32> to vector<8x128xf32>
    %1626 = vector.shape_cast %1554 : vector<8x128xf32> to vector<1x1x8x128xf32>
    tpu.vector_store %arg6[%c1_973, %c5_974, %c0_975, %c0_976], %1626 {strides = array<i32>} : memref<2x10x8x128xf32, #tpu.memory_space<vmem>>, vector<1x1x8x128xf32>,
    %c1_977 = arith.constant 1 : index
    %c6_978 = arith.constant 6 : index
    %c0_979 = arith.constant 0 : index
    %c0_980 = arith.constant 0 : index
    %1627 = vector.load %arg6[%c1_977, %c6_978, %c0_979, %c0_980] : memref<2x10x8x128xf32, #tpu.memory_space<vmem>>, vector<1x1x8x128xf32>
    %1628 = vector.shape_cast %1627 : vector<1x1x8x128xf32> to vector<8x128xf32>
    %1629 = vector.shape_cast %1560 : vector<8x128xf32> to vector<1x1x8x128xf32>
    tpu.vector_store %arg6[%c1_977, %c6_978, %c0_979, %c0_980], %1629 {strides = array<i32>} : memref<2x10x8x128xf32, #tpu.memory_space<vmem>>, vector<1x1x8x128xf32>,
    %c1_981 = arith.constant 1 : index
    %c7_982 = arith.constant 7 : index
    %c0_983 = arith.constant 0 : index
    %c0_984 = arith.constant 0 : index
    %1630 = vector.load %arg6[%c1_981, %c7_982, %c0_983, %c0_984] : memref<2x10x8x128xf32, #tpu.memory_space<vmem>>, vector<1x1x8x128xf32>
    %1631 = vector.shape_cast %1630 : vector<1x1x8x128xf32> to vector<8x128xf32>
    %1632 = vector.shape_cast %1566 : vector<8x128xf32> to vector<1x1x8x128xf32>
    tpu.vector_store %arg6[%c1_981, %c7_982, %c0_983, %c0_984], %1632 {strides = array<i32>} : memref<2x10x8x128xf32, #tpu.memory_space<vmem>>, vector<1x1x8x128xf32>,
    %c1_985 = arith.constant 1 : index
    %c8_986 = arith.constant 8 : index
    %c0_987 = arith.constant 0 : index
    %c0_988 = arith.constant 0 : index
    %1633 = vector.load %arg6[%c1_985, %c8_986, %c0_987, %c0_988] : memref<2x10x8x128xf32, #tpu.memory_space<vmem>>, vector<1x1x8x128xf32>
    %1634 = vector.shape_cast %1633 : vector<1x1x8x128xf32> to vector<8x128xf32>
    %1635 = vector.shape_cast %1572 : vector<8x128xf32> to vector<1x1x8x128xf32>
    tpu.vector_store %arg6[%c1_985, %c8_986, %c0_987, %c0_988], %1635 {strides = array<i32>} : memref<2x10x8x128xf32, #tpu.memory_space<vmem>>, vector<1x1x8x128xf32>,
    %c1_989 = arith.constant 1 : index
    %c9_990 = arith.constant 9 : index
    %c0_991 = arith.constant 0 : index
    %c0_992 = arith.constant 0 : index
    %1636 = vector.load %arg6[%c1_989, %c9_990, %c0_991, %c0_992] : memref<2x10x8x128xf32, #tpu.memory_space<vmem>>, vector<1x1x8x128xf32>
    %1637 = vector.shape_cast %1636 : vector<1x1x8x128xf32> to vector<8x128xf32>
    %1638 = vector.shape_cast %1578 : vector<8x128xf32> to vector<1x1x8x128xf32>
    tpu.vector_store %arg6[%c1_989, %c9_990, %c0_991, %c0_992], %1638 {strides = array<i32>} : memref<2x10x8x128xf32, #tpu.memory_space<vmem>>, vector<1x1x8x128xf32>,
    %c7_i32 = arith.constant 7 : i32
    %1639 = arith.cmpi eq, %arg1, %c7_i32 : i32
    %1640 = arith.extui %1639 : i1 to i32
    %c0_i32_993 = arith.constant 0 : i32
    %1641 = arith.cmpi ne, %1640, %c0_i32_993 : i32
    scf.if %1641 {
      %c0_994 = arith.constant 0 : index
      %c0_995 = arith.constant 0 : index
      %c0_996 = arith.constant 0 : index
      %c0_997 = arith.constant 0 : index
      %1642 = vector.load %arg6[%c0_994, %c0_995, %c0_996, %c0_997] : memref<2x10x8x128xf32, #tpu.memory_space<vmem>>, vector<2x10x8x128xf32>
      %cst = arith.constant dense<0.000000e+00> : vector<2x10x128xf32>
      %1643 = vector.multi_reduction <add>, %1642, %cst [2] : vector<2x10x8x128xf32> to vector<2x10x128xf32>
      %cst_998 = arith.constant dense<0.000000e+00> : vector<2x10xf32>
      %1644 = vector.multi_reduction <add>, %1643, %cst_998 [2] : vector<2x10x128xf32> to vector<2x10xf32>
      %c0_i32_999 = arith.constant 0 : i32
      %1645 = arith.cmpi eq, %arg0, %c0_i32_999 : i32
      %1646 = arith.extui %1645 : i1 to i32
      %1647 = arith.sitofp %1646 : i32 to f32
      %c0_1000 = arith.constant 0 : index
      %c0_1001 = arith.constant 0 : index
      %1648 = vector.load %arg4[%c0_1000, %c0_1001] : memref<1x10xf32, #tpu.memory_space<vmem>>, vector<1x10xf32>
      %1649 = vector.broadcast %1647 : f32 to vector<1x10xf32>
      %1650 = arith.mulf %1649, %1648 : vector<1x10xf32>
      %1651 = vector.broadcast %1650 : vector<1x10xf32> to vector<2x10xf32>
      %1652 = arith.addf %1644, %1651 : vector<2x10xf32>
      %c0_1002 = arith.constant 0 : index
      %c0_1003 = arith.constant 0 : index
      %1653 = vector.load %arg5[%c0_1002, %c0_1003] : memref<2x10xf32, #tpu.memory_space<vmem>>, vector<2x10xf32>
      tpu.vector_store %arg5[%c0_1002, %c0_1003], %1652 {strides = array<i32>} : memref<2x10xf32, #tpu.memory_space<vmem>>, vector<2x10xf32>,
    } else {
    }
    return
  }
  func.func @transform_0(%arg0: i32, %arg1: i32) -> (i32, i32, i32) {
    %c8_i32 = arith.constant 8 : i32
    %0 = arith.muli %arg0, %c8_i32 : i32
    %1 = arith.addi %0, %arg1 : i32
    %c0_i32 = arith.constant 0 : i32
    %c0_i32_0 = arith.constant 0 : i32
    %c0_i32_1 = arith.constant 0 : i32
    return %c0_i32, %1, %c0_i32_0 : i32, i32, i32
  }
  func.func @transform_1(%arg0: i32, %arg1: i32) -> (i32, i32, i32) {
    %c8_i32 = arith.constant 8 : i32
    %0 = arith.muli %arg0, %c8_i32 : i32
    %1 = arith.addi %0, %arg1 : i32
    %c0_i32 = arith.constant 0 : i32
    %c0_i32_0 = arith.constant 0 : i32
    %c0_i32_1 = arith.constant 0 : i32
    return %c0_i32, %1, %c0_i32_0 : i32, i32, i32
  }
  func.func @transform_2(%arg0: i32, %arg1: i32) -> (i32, i32) {
    %c0_i32 = arith.constant 0 : i32
    %c0_i32_0 = arith.constant 0 : i32
    %c0_i32_1 = arith.constant 0 : i32
    return %c0_i32, %c0_i32_0 : i32, i32
  }
  func.func @transform_3(%arg0: i32, %arg1: i32) -> (i32, i32) {
    %c0_i32 = arith.constant 0 : i32
    %c0_i32_0 = arith.constant 0 : i32
    %c0_i32_1 = arith.constant 0 : i32
    return %c0_i32, %c0_i32_0 : i32, i32
  }
}

</mosaic_0001>

<llo_original>
// kernel: tpu_custom_call.1
$region0: #{tpu_custom_call.1}
  #allocation0 [shape = 'u32[]', space=smem, size = 0x4, offset = 0x4, fixed_abs, tag = 'smem constant byte address 0x4 - core index']
  #allocation1 [shape = 'u32[144,128]{1,0:T(1,128)}', space=vmem, size = 0x12000, scoped, tag = 'internal scratch']
  #allocation2 [shape = 'f32[2,10,8,128]{3,2,1,0:T(8,128)}', space=vmem, size = 0x14000, scoped, tag = 'scratch operand']
  #allocation10 [shape = 's32[]', space=sflag, size = 0x4, offset = 0, fixed_abs, tag = 'sflag constant byte address 0x0 - dummy sync flag']
  #allocation12 [shape = 's32[]', space=sflag, size = 0x4, offset = 0, fixed_abs, tag = 'sflag constant byte address 0x0 - dummy sync flag']
  %s0 = inlined_call_operand.hbm [shape: f32[2,1536,128], index: 0, kind: input, shape index: {}]
  %s1 = inlined_call_operand.hbm [shape: f32[10,1536,128], index: 1, kind: input, shape index: {}]
  %s2 = inlined_call_operand.hbm [shape: f32[1,10], index: 2, kind: input, shape index: {}]
  %s3 = inlined_call_operand.hbm [shape: f32[2,10], index: 3, kind: output, shape index: {}]
  %s4 = sld [smem:[#allocation0]]
  $region65: #{tpu_custom_call.1} parent=0
    _
  %s6 = ssub.s32 1, %s4
  %s7 = scalar_select 0, %s6, %s4
  $region1: #{tpu_custom_call.1} parent=0
    #allocation3 [shape = 'u8[393216]{0}', space=vmem, size = 0x60000, scoped, tag = 'input window, operand 0']
    #allocation4 [shape = 's32[2]{0}', space=sflag, size = 0x8, scoped, tag = 'scoped memory for tpu_custom_call.1']
    #allocation5 [shape = 's32[2]{0}', space=sflag, size = 0x8, scoped, tag = 'scoped memory for tpu_custom_call.1']
    #allocation6 [shape = 'u8[1966080]{0}', space=vmem, size = 0x1e0000, scoped, tag = 'input window, operand 1']
    #allocation7 [shape = 's32[2]{0}', space=sflag, size = 0x8, scoped, tag = 'scoped memory for tpu_custom_call.1']
    #allocation8 [shape = 'u8[512]{0}', space=vmem, size = 0x400, scoped, tag = 'input window, operand 2, single buffered']
    #allocation9 [shape = 'u8[1024]{0}', space=vmem, size = 0x400, scoped, tag = 'output window, operand 0, single buffered']
    %8 = vsyncpa [#allocation4], 0
    %s9 = scalar_lea.sflag [#allocation4], 1
    %10 = vsyncpa %s9, 0
    %11 = vsyncpa [#allocation7], 0
    %s12 = scalar_lea.sflag [#allocation7], 1
    %13 = vsyncpa %s12, 0
    %14 = vsyncpa [#allocation5], 0
    loop: start=0, step=1, limit=10
    $region2: #{tpu_custom_call.1} parent=1 // loop_pre_header
      _
    $region3: #{tpu_custom_call.1} parent=1 // loop_header
      %s16 = sphi 0, %s20
      %p17 = scmp.ge.s32.totalorder %s16, 10
      %s23 = sphi 0, %s35
      %s24 = sphi 0, %s31
      %s25 = sphi 0, %s23
      %s26 = sphi 0, %s24
      %s27 = sphi 0, %s25
      %s28 = sphi 0, %s26
      %s42 = sphi 0, %s44
      %s45 = sphi 0, %s42
      %s46 = sphi 0, %s45
      %s62 = sphi 0, %s46
      %s72 = sphi 0, %s74
      %s75 = sphi 0, %s72
      %s76 = sphi 0, %s75
      %s92 = sphi 0, %s76
      %s96 = sphi 0, %s96
      %s98 = sphi 0, %s96
      %s99 = sphi 0, %s98
      %s113 = sphi 0, %s99
      %s117 = sphi 0, %s117
      %s119 = sphi 0, %s117
      %s120 = sphi 0, %s119
      %s134 = sphi 0, %s120
    $region4: #{tpu_custom_call.1} parent=1 // loop_header_branch
      %19 = sbr.rel (%p17) target = $region8
    $region5: #{tpu_custom_call.1} parent=1 // loop_body
      %s21 = ssub.s32 %s16, 1
      %s22 = ssub.s32 %s16, 2
      %s29 = sadd.s32 1, %s24
      %p30 = scmp.ge.s32.totalorder %s29, 8
      %s31 = scalar_select %p30, 0, %s29
      %s32 = sadd.s32 1, %s23
      %s33 = scalar_select %p30, %s32, %s23
      %p34 = scmp.ge.s32.totalorder %s33, 1
      %s35 = scalar_select %p34, 0, %s33
      %s36 = smul.u32 %s23, 8
      %s37 = sadd.s32 %s36, %s24
      %s38 = smul.u32 %s35, 8
      %s39 = sadd.s32 %s38, %s31
      %s40 = ssub.s32 %s37, %s39
      %p41 = scmp.eq.s32.totalorder %s40, 0
      %s43 = sadd.s32 %s42, 1
      %s44 = scalar_select %p41, %s42, %s43
      %p47 = pneg %p41
      %p48 = scmp.eq.s32.totalorder %s16, 7
      %p49 = por %p47, %p48
      %p50 = scmp.ne.s32.totalorder %s42, %s45
      %p51 = scmp.eq.s32.totalorder %s16, 0
      %p52 = por %p50, %p51
      %p53 = scmp.ne.s32.totalorder %s42, %s45
      %p54 = scmp.eq.s32.totalorder %s21, 7
      %p55 = por %p53, %p54
      %p56 = scmp.ne.s32.totalorder %s45, %s46
      %p57 = scmp.eq.s32.totalorder %s21, 0
      %p58 = por %p56, %p57
      %p59 = scmp.ne.s32.totalorder %s45, %s46
      %p60 = scmp.eq.s32.totalorder %s22, 7
      %p61 = por %p59, %p60
      %p63 = scmp.ne.s32.totalorder %s46, %s62
      %p64 = scmp.eq.s32.totalorder %s22, 0
      %p65 = por %p63, %p64
      %s66 = smul.u32 %s23, 8
      %s67 = sadd.s32 %s66, %s24
      %s68 = smul.u32 %s35, 8
      %s69 = sadd.s32 %s68, %s31
      %s70 = ssub.s32 %s67, %s69
      %p71 = scmp.eq.s32.totalorder %s70, 0
      %s73 = sadd.s32 %s72, 1
      %s74 = scalar_select %p71, %s72, %s73
      %p77 = pneg %p71
      %p78 = scmp.eq.s32.totalorder %s16, 7
      %p79 = por %p77, %p78
      %p80 = scmp.ne.s32.totalorder %s72, %s75
      %p81 = scmp.eq.s32.totalorder %s16, 0
      %p82 = por %p80, %p81
      %p83 = scmp.ne.s32.totalorder %s72, %s75
      %p84 = scmp.eq.s32.totalorder %s21, 7
      %p85 = por %p83, %p84
      %p86 = scmp.ne.s32.totalorder %s75, %s76
      %p87 = scmp.eq.s32.totalorder %s21, 0
      %p88 = por %p86, %p87
      %p89 = scmp.ne.s32.totalorder %s75, %s76
      %p90 = scmp.eq.s32.totalorder %s22, 7
      %p91 = por %p89, %p90
      %p93 = scmp.ne.s32.totalorder %s76, %s92
      %p94 = scmp.eq.s32.totalorder %s22, 0
      %p95 = por %p93, %p94
      %s97 = sadd.s32 %s96, 1
      %p100 = scmp.eq.s32.totalorder %s16, 7
      %p101 = scmp.ne.s32.totalorder %s96, %s98
      %p102 = scmp.eq.s32.totalorder %s16, 0
      %p103 = por %p101, %p102
      %p104 = scmp.ne.s32.totalorder %s96, %s98
      %p105 = scmp.eq.s32.totalorder %s21, 7
      %p106 = por %p104, %p105
      %p107 = scmp.ne.s32.totalorder %s98, %s99
      %p108 = scmp.eq.s32.totalorder %s21, 0
      %p109 = por %p107, %p108
      %p110 = scmp.ne.s32.totalorder %s98, %s99
      %p111 = scmp.eq.s32.totalorder %s22, 7
      %p112 = por %p110, %p111
      %p114 = scmp.ne.s32.totalorder %s99, %s113
      %p115 = scmp.eq.s32.totalorder %s22, 0
      %p116 = por %p114, %p115
      %s118 = sadd.s32 %s117, 1
      %p121 = scmp.eq.s32.totalorder %s16, 7
      %p122 = scmp.ne.s32.totalorder %s117, %s119
      %p123 = scmp.eq.s32.totalorder %s16, 0
      %p124 = por %p122, %p123
      %p125 = scmp.ne.s32.totalorder %s117, %s119
      %p126 = scmp.eq.s32.totalorder %s21, 7
      %p127 = por %p125, %p126
      %p128 = scmp.ne.s32.totalorder %s119, %s120
      %p129 = scmp.eq.s32.totalorder %s21, 0
      %p130 = por %p128, %p129
      %p131 = scmp.ne.s32.totalorder %s119, %s120
      %p132 = scmp.eq.s32.totalorder %s22, 7
      %p133 = por %p131, %p132
      %p135 = scmp.ne.s32.totalorder %s120, %s134
      %p136 = scmp.eq.s32.totalorder %s22, 0
      %p137 = por %p135, %p136
      %p138 = scmp.le.s32.totalorder 1, %s16
      %p139 = scmp.lt.s32.totalorder %s16, 9
      %p140 = pnand %p138, %p139
      %p141 = pneg %p140
      // Predicated region
      $region9: #{tpu_custom_call.1} parent=5 // pred_check
        _
      $region10: #{tpu_custom_call.1} parent=5 // pred_check_branch
        %143 = sbr.rel (%p140) target = $region12
      $region11: #{tpu_custom_call.1} parent=5 // pred_region
        %s144 = ssub.s32 %s16, 1
        // Predicated region
        $region13: #{tpu_custom_call.1} parent=11 // pred_check
          %p145 = pneg %p109
        $region14: #{tpu_custom_call.1} parent=11 // pred_check_branch
          %147 = sbr.rel (%p145) target = $region16
        $region15: #{tpu_custom_call.1} parent=11 // pred_region
          %s149 = ssub.s32 16, 16
          %150 = vsyncadd [#allocation7], %s149
          %s152 = sshll.u32 [#allocation8], 4
          %s153 = int_to_ptr.vmem [resolvable:$true] %s152
          %155 = dma.hbm_to_vmem [thread:$0]  %s2, 16, %s153, [#allocation7]
        $region16: #{tpu_custom_call.1} parent=11 // pred_fallthru
          _
      $region12: #{tpu_custom_call.1} parent=5 // pred_fallthru
        _
      %p156 = scmp.lt.s32.totalorder %s16, 8
      // Predicated region
      $region17: #{tpu_custom_call.1} parent=5 // pred_check
        %p157 = pneg %p156
      $region18: #{tpu_custom_call.1} parent=5 // pred_check_branch
        %159 = sbr.rel (%p157) target = $region20
      $region19: #{tpu_custom_call.1} parent=5 // pred_region
        // Predicated region
        $region21: #{tpu_custom_call.1} parent=19 // pred_check
          %p160 = pneg %p52
        $region22: #{tpu_custom_call.1} parent=19 // pred_check_branch
          %162 = sbr.rel (%p160) target = $region24
        $region23: #{tpu_custom_call.1} parent=19 // pred_region
          #allocation11 [shape = 'u32[6]{0}', space=smem, size = 0x18, scoped, tag = 'DMA stride descriptor']
          %s163 = sand.u32 %s42, 1
          %s164 = scalar_lea.sflag [#allocation4], %s163
          %s165 = sand.u32 %s42, 1
          %s166 = smul.addr %s165, 384
          %s167 = scalar_lea.vmem [#allocation3], %s166
          %s168 = smul.u32 %s23, 8
          %s169 = sadd.s32 %s168, %s24
          %s170 = smul.u32 24, %s169
          %s172 = ssub.s32 6144, 6144
          %173 = vsyncadd %s164, %s172
          %s174 = smul.addr %s170, 128
          %s175 = scalar_lea.hbm %s0, %s174
          %s177 = sshll.u32 1, 14
          %s178 = sxor.u32 4294967295, %s177
          %s180 = sld [smem:[#allocation0]]
          %s181 = sadd.s32 2, %s180
          %s183 = sshll.u32 7, 26
          %s184 = sxor.u32 4294967295, %s183
          %s185 = sand.u32 0, %s184
          %s186 = sshll.u32 %s181, 26
          %s187 = sor.u32 %s185, %s186
          %s188 = sshll.u32 %s167, 4
          %s189 = int_to_ptr.vmem [resolvable:$true] %s188
          %195 = sst [smem:[#allocation11]] 24576
          %s196 = scalar_lea.smem [#allocation11], 1
          %197 = sst [smem:[%s196]] 3072
          %s198 = scalar_lea.smem [#allocation11], 2
          %199 = sst [smem:[%s198]] 24
          %s200 = scalar_lea.smem [#allocation11], 3
          %201 = sst [smem:[%s200]] 128
          %s202 = scalar_lea.smem [#allocation11], 4
          %203 = sst [smem:[%s202]] 128
          %s204 = scalar_lea.smem [#allocation11], 5
          %205 = sst [smem:[%s204]] 8
          %207 = dma.general %s175, 6144, %s189, %s164, [#allocation10], [#allocation11], %s187, 0
        $region24: #{tpu_custom_call.1} parent=19 // pred_fallthru
          _
        // Predicated region
        $region25: #{tpu_custom_call.1} parent=19 // pred_check
          %p208 = pneg %p82
        $region26: #{tpu_custom_call.1} parent=19 // pred_check_branch
          %210 = sbr.rel (%p208) target = $region28
        $region27: #{tpu_custom_call.1} parent=19 // pred_region
          #allocation13 [shape = 'u32[6]{0}', space=smem, size = 0x18, scoped, tag = 'DMA stride descriptor']
          %s211 = sand.u32 %s16, 1
          %s212 = scalar_lea.sflag [#allocation7], %s211
          %s213 = sand.u32 %s72, 1
          %s214 = smul.addr %s213, 1920
          %s215 = scalar_lea.vmem [#allocation6], %s214
          %s216 = smul.u32 %s23, 8
          %s217 = sadd.s32 %s216, %s24
          %s218 = smul.u32 24, %s217
          %s220 = ssub.s32 30720, 30720
          %221 = vsyncadd %s212, %s220
          %s222 = smul.addr %s218, 128
          %s223 = scalar_lea.hbm %s1, %s222
          %s225 = sshll.u32 1, 14
          %s226 = sxor.u32 4294967295, %s225
          %s228 = sld [smem:[#allocation0]]
          %s229 = sadd.s32 2, %s228
          %s231 = sshll.u32 7, 26
          %s232 = sxor.u32 4294967295, %s231
          %s233 = sand.u32 0, %s232
          %s234 = sshll.u32 %s229, 26
          %s235 = sor.u32 %s233, %s234
          %s236 = sshll.u32 %s215, 4
          %s237 = int_to_ptr.vmem [resolvable:$true] %s236
          %243 = sst [smem:[#allocation13]] 24576
          %s244 = scalar_lea.smem [#allocation13], 1
          %245 = sst [smem:[%s244]] 3072
          %s246 = scalar_lea.smem [#allocation13], 2
          %247 = sst [smem:[%s246]] 24
          %s248 = scalar_lea.smem [#allocation13], 3
          %249 = sst [smem:[%s248]] 128
          %s250 = scalar_lea.smem [#allocation13], 4
          %251 = sst [smem:[%s250]] 128
          %s252 = scalar_lea.smem [#allocation13], 5
          %253 = sst [smem:[%s252]] 8
          %255 = dma.general %s223, 30720, %s237, %s212, [#allocation12], [#allocation13], %s235, 0
        $region28: #{tpu_custom_call.1} parent=19 // pred_fallthru
          _
      $region20: #{tpu_custom_call.1} parent=5 // pred_fallthru
        _
      %p256 = scmp.le.s32.totalorder 1, %s16
      %p257 = scmp.lt.s32.totalorder %s16, 9
      %p258 = pnand %p256, %p257
      %p259 = pneg %p258
      // Predicated region
      $region29: #{tpu_custom_call.1} parent=5 // pred_check
        _
      $region30: #{tpu_custom_call.1} parent=5 // pred_check_branch
        %261 = sbr.rel (%p258) target = $region32
      $region31: #{tpu_custom_call.1} parent=5 // pred_region
        %s262 = ssub.s32 %s16, 1
        %s263 = sand.u32 %s45, 1
        %s264 = scalar_lea.sflag [#allocation4], %s263
        %s265 = sand.u32 %s45, 1
        %s266 = smul.addr %s265, 384
        %s267 = scalar_lea.vmem [#allocation3], %s266
        // Predicated region
        $region33: #{tpu_custom_call.1} parent=31 // pred_check
          %p268 = pneg %p58
        $region34: #{tpu_custom_call.1} parent=31 // pred_check_branch
          %270 = sbr.rel (%p268) target = $region36
        $region35: #{tpu_custom_call.1} parent=31 // pred_region
          %271 = dma.done %s264, 6144
        $region36: #{tpu_custom_call.1} parent=31 // pred_fallthru
          _
        %s272 = sand.u32 %s21, 1
        %s273 = scalar_lea.sflag [#allocation7], %s272
        %s274 = sand.u32 %s75, 1
        %s275 = smul.addr %s274, 1920
        %s276 = scalar_lea.vmem [#allocation6], %s275
        // Predicated region
        $region37: #{tpu_custom_call.1} parent=31 // pred_check
          %p277 = pneg %p88
        $region38: #{tpu_custom_call.1} parent=31 // pred_check_branch
          %279 = sbr.rel (%p277) target = $region40
        $region39: #{tpu_custom_call.1} parent=31 // pred_region
          %280 = dma.done %s273, 30720
        $region40: #{tpu_custom_call.1} parent=31 // pred_fallthru
          _
        // Predicated region
        $region41: #{tpu_custom_call.1} parent=31 // pred_check
          %p281 = pneg %p109
        $region42: #{tpu_custom_call.1} parent=31 // pred_check_branch
          %283 = sbr.rel (%p281) target = $region44
        $region43: #{tpu_custom_call.1} parent=31 // pred_region
          %284 = dma.done [#allocation7], 16
        $region44: #{tpu_custom_call.1} parent=31 // pred_fallthru
          _
        %s285 = sand.u32 %s45, 1
        %s286 = scalar_lea.sflag [#allocation4], %s285
        %s287 = sand.u32 %s45, 1
        %s288 = smul.addr %s287, 384
        %s289 = scalar_lea.vmem [#allocation3], %s288
        %p290 = pneg %p58
        %p291 = pneg %p55
        %s292 = sand.u32 %s21, 1
        %s293 = scalar_lea.sflag [#allocation7], %s292
        %s294 = sand.u32 %s75, 1
        %s295 = smul.addr %s294, 1920
        %s296 = scalar_lea.vmem [#allocation6], %s295
        %p297 = pneg %p88
        %p298 = pneg %p85
        %p299 = pneg %p109
        %p300 = pneg %p106
        %p301 = pneg %p130
        %p302 = pneg %p127
        %s303 = smul.u32 %s25, 8
        %s304 = sadd.s32 %s303, %s26
        %s305 = smul.u32 24, %s304
        %s306 = smul.u32 %s25, 8
        %s307 = sadd.s32 %s306, %s26
        %s308 = smul.u32 24, %s307
        %p309 = scmp.eq.s32.totalorder %s26, 0
        // Predicated region
        $region45: #{tpu_custom_call.1} parent=31 // pred_check
          %p310 = pneg %p309
        $region46: #{tpu_custom_call.1} parent=31 // pred_check_branch
          %312 = sbr.rel (%p310) target = $region48
        $region47: #{tpu_custom_call.1} parent=31 // pred_region
          %313 = vst [vmem:[#allocation2] sm:$0xff] 0.0
          %314 = vst [vmem:[#allocation2 + $0x8] sm:$0xff] 0.0
          %315 = vst [vmem:[#allocation2 + $0x10] sm:$0xff] 0.0
          %316 = vst [vmem:[#allocation2 + $0x18] sm:$0xff] 0.0
          %317 = vst [vmem:[#allocation2 + $0x20] sm:$0xff] 0.0
          %318 = vst [vmem:[#allocation2 + $0x28] sm:$0xff] 0.0
          %319 = vst [vmem:[#allocation2 + $0x30] sm:$0xff] 0.0
          %320 = vst [vmem:[#allocation2 + $0x38] sm:$0xff] 0.0
          %321 = vst [vmem:[#allocation2 + $0x40] sm:$0xff] 0.0
          %322 = vst [vmem:[#allocation2 + $0x48] sm:$0xff] 0.0
          %323 = vst [vmem:[#allocation2 + $0x50] sm:$0xff] 0.0
          %324 = vst [vmem:[#allocation2 + $0x58] sm:$0xff] 0.0
          %325 = vst [vmem:[#allocation2 + $0x60] sm:$0xff] 0.0
          %326 = vst [vmem:[#allocation2 + $0x68] sm:$0xff] 0.0
          %327 = vst [vmem:[#allocation2 + $0x70] sm:$0xff] 0.0
          %328 = vst [vmem:[#allocation2 + $0x78] sm:$0xff] 0.0
          %329 = vst [vmem:[#allocation2 + $0x80] sm:$0xff] 0.0
          %330 = vst [vmem:[#allocation2 + $0x88] sm:$0xff] 0.0
          %331 = vst [vmem:[#allocation2 + $0x90] sm:$0xff] 0.0
          %332 = vst [vmem:[#allocation2 + $0x98] sm:$0xff] 0.0
        $region48: #{tpu_custom_call.1} parent=31 // pred_fallthru
          _
        %v333 = vld [vmem:[#allocation2] sm:$0xff]
        %s334 = scalar_lea.vmem [#allocation2], 8
        %v335 = vld [vmem:[%s334] sm:$0xff]
        %s336 = scalar_lea.vmem [#allocation2], 16
        %v337 = vld [vmem:[%s336] sm:$0xff]
        %s338 = scalar_lea.vmem [#allocation2], 24
        %v339 = vld [vmem:[%s338] sm:$0xff]
        %s340 = scalar_lea.vmem [#allocation2], 32
        %v341 = vld [vmem:[%s340] sm:$0xff]
        %s342 = scalar_lea.vmem [#allocation2], 40
        %v343 = vld [vmem:[%s342] sm:$0xff]
        %s344 = scalar_lea.vmem [#allocation2], 48
        %v345 = vld [vmem:[%s344] sm:$0xff]
        %s346 = scalar_lea.vmem [#allocation2], 56
        %v347 = vld [vmem:[%s346] sm:$0xff]
        %s348 = scalar_lea.vmem [#allocation2], 64
        %v349 = vld [vmem:[%s348] sm:$0xff]
        %s350 = scalar_lea.vmem [#allocation2], 72
        %v351 = vld [vmem:[%s350] sm:$0xff]
        %s352 = scalar_lea.vmem [#allocation2], 80
        %v353 = vld [vmem:[%s352] sm:$0xff]
        %s354 = scalar_lea.vmem [#allocation2], 88
        %v355 = vld [vmem:[%s354] sm:$0xff]
        %s356 = scalar_lea.vmem [#allocation2], 96
        %v357 = vld [vmem:[%s356] sm:$0xff]
        %s358 = scalar_lea.vmem [#allocation2], 104
        %v359 = vld [vmem:[%s358] sm:$0xff]
        %s360 = scalar_lea.vmem [#allocation2], 112
        %v361 = vld [vmem:[%s360] sm:$0xff]
        %s362 = scalar_lea.vmem [#allocation2], 120
        %v363 = vld [vmem:[%s362] sm:$0xff]
        %s364 = scalar_lea.vmem [#allocation2], 128
        %v365 = vld [vmem:[%s364] sm:$0xff]
        %s366 = scalar_lea.vmem [#allocation2], 136
        %v367 = vld [vmem:[%s366] sm:$0xff]
        %s368 = scalar_lea.vmem [#allocation2], 144
        %v369 = vld [vmem:[%s368] sm:$0xff]
        %s370 = scalar_lea.vmem [#allocation2], 152
        %v371 = vld [vmem:[%s370] sm:$0xff]
        %v372 = vld [vmem:[%s267] sm:$0xff]
        %s373 = scalar_lea.vmem %s267, 192 [#allocation3]
        %v374 = vld [vmem:[%s373] sm:$0xff]
        %v375 = vld [vmem:[%s276] sm:$0xff]
        %v376 = vmul.f32 %v372, %v375
        %v377 = vadd.f32 %v333, %v376
        %v378 = vmul.f32 %v374, %v375
        %v379 = vadd.f32 %v353, %v378
        %s380 = scalar_lea.vmem %s276, 192 [#allocation6]
        %v381 = vld [vmem:[%s380] sm:$0xff]
        %v382 = vmul.f32 %v372, %v381
        %v383 = vadd.f32 %v335, %v382
        %v384 = vmul.f32 %v374, %v381
        %v385 = vadd.f32 %v355, %v384
        %s386 = scalar_lea.vmem %s276, 384 [#allocation6]
        %v387 = vld [vmem:[%s386] sm:$0xff]
        %v388 = vmul.f32 %v372, %v387
        %v389 = vadd.f32 %v337, %v388
        %v390 = vmul.f32 %v374, %v387
        %v391 = vadd.f32 %v357, %v390
        %s392 = scalar_lea.vmem %s276, 576 [#allocation6]
        %v393 = vld [vmem:[%s392] sm:$0xff]
        %v394 = vmul.f32 %v372, %v393
        %v395 = vadd.f32 %v339, %v394
        %v396 = vmul.f32 %v374, %v393
        %v397 = vadd.f32 %v359, %v396
        %s398 = scalar_lea.vmem %s276, 768 [#allocation6]
        %v399 = vld [vmem:[%s398] sm:$0xff]
        %v400 = vmul.f32 %v372, %v399
        %v401 = vadd.f32 %v341, %v400
        %v402 = vmul.f32 %v374, %v399
        %v403 = vadd.f32 %v361, %v402
        %s404 = scalar_lea.vmem %s276, 960 [#allocation6]
        %v405 = vld [vmem:[%s404] sm:$0xff]
        %v406 = vmul.f32 %v372, %v405
        %v407 = vadd.f32 %v343, %v406
        %v408 = vmul.f32 %v374, %v405
        %v409 = vadd.f32 %v363, %v408
        %s410 = scalar_lea.vmem %s276, 1152 [#allocation6]
        %v411 = vld [vmem:[%s410] sm:$0xff]
        %v412 = vmul.f32 %v372, %v411
        %v413 = vadd.f32 %v345, %v412
        %v414 = vmul.f32 %v374, %v411
        %v415 = vadd.f32 %v365, %v414
        %s416 = scalar_lea.vmem %s276, 1344 [#allocation6]
        %v417 = vld [vmem:[%s416] sm:$0xff]
        %v418 = vmul.f32 %v372, %v417
        %v419 = vadd.f32 %v347, %v418
        %v420 = vmul.f32 %v374, %v417
        %v421 = vadd.f32 %v367, %v420
        %s422 = scalar_lea.vmem %s276, 1536 [#allocation6]
        %v423 = vld [vmem:[%s422] sm:$0xff]
        %v424 = vmul.f32 %v372, %v423
        %v425 = vadd.f32 %v349, %v424
        %v426 = vmul.f32 %v374, %v423
        %v427 = vadd.f32 %v369, %v426
        %s428 = scalar_lea.vmem %s276, 1728 [#allocation6]
        %v429 = vld [vmem:[%s428] sm:$0xff]
        %v430 = vmul.f32 %v372, %v429
        %v431 = vadd.f32 %v351, %v430
        %v432 = vmul.f32 %v374, %v429
        %v433 = vadd.f32 %v371, %v432
        %v434 = vld [vmem:[%s267 + $0x8] sm:$0xff]
        %v435 = vld [vmem:[%s373 + $0x8] sm:$0xff]
        %v436 = vld [vmem:[%s276 + $0x8] sm:$0xff]
        %v437 = vmul.f32 %v434, %v436
        %v438 = vadd.f32 %v377, %v437
        %v439 = vmul.f32 %v435, %v436
        %v440 = vadd.f32 %v379, %v439
        %v441 = vld [vmem:[%s380 + $0x8] sm:$0xff]
        %v442 = vmul.f32 %v434, %v441
        %v443 = vadd.f32 %v383, %v442
        %v444 = vmul.f32 %v435, %v441
        %v445 = vadd.f32 %v385, %v444
        %v446 = vld [vmem:[%s386 + $0x8] sm:$0xff]
        %v447 = vmul.f32 %v434, %v446
        %v448 = vadd.f32 %v389, %v447
        %v449 = vmul.f32 %v435, %v446
        %v450 = vadd.f32 %v391, %v449
        %v451 = vld [vmem:[%s392 + $0x8] sm:$0xff]
        %v452 = vmul.f32 %v434, %v451
        %v453 = vadd.f32 %v395, %v452
        %v454 = vmul.f32 %v435, %v451
        %v455 = vadd.f32 %v397, %v454
        %v456 = vld [vmem:[%s398 + $0x8] sm:$0xff]
        %v457 = vmul.f32 %v434, %v456
        %v458 = vadd.f32 %v401, %v457
        %v459 = vmul.f32 %v435, %v456
        %v460 = vadd.f32 %v403, %v459
        %v461 = vld [vmem:[%s404 + $0x8] sm:$0xff]
        %v462 = vmul.f32 %v434, %v461
        %v463 = vadd.f32 %v407, %v462
        %v464 = vmul.f32 %v435, %v461
        %v465 = vadd.f32 %v409, %v464
        %v466 = vld [vmem:[%s410 + $0x8] sm:$0xff]
        %v467 = vmul.f32 %v434, %v466
        %v468 = vadd.f32 %v413, %v467
        %v469 = vmul.f32 %v435, %v466
        %v470 = vadd.f32 %v415, %v469
        %v471 = vld [vmem:[%s416 + $0x8] sm:$0xff]
        %v472 = vmul.f32 %v434, %v471
        %v473 = vadd.f32 %v419, %v472
        %v474 = vmul.f32 %v435, %v471
        %v475 = vadd.f32 %v421, %v474
        %v476 = vld [vmem:[%s422 + $0x8] sm:$0xff]
        %v477 = vmul.f32 %v434, %v476
        %v478 = vadd.f32 %v425, %v477
        %v479 = vmul.f32 %v435, %v476
        %v480 = vadd.f32 %v427, %v479
        %v481 = vld [vmem:[%s428 + $0x8] sm:$0xff]
        %v482 = vmul.f32 %v434, %v481
        %v483 = vadd.f32 %v431, %v482
        %v484 = vmul.f32 %v435, %v481
        %v485 = vadd.f32 %v433, %v484
        %v486 = vld [vmem:[%s267 + $0x10] sm:$0xff]
        %v487 = vld [vmem:[%s373 + $0x10] sm:$0xff]
        %v488 = vld [vmem:[%s276 + $0x10] sm:$0xff]
        %v489 = vmul.f32 %v486, %v488
        %v490 = vadd.f32 %v438, %v489
        %v491 = vmul.f32 %v487, %v488
        %v492 = vadd.f32 %v440, %v491
        %v493 = vld [vmem:[%s380 + $0x10] sm:$0xff]
        %v494 = vmul.f32 %v486, %v493
        %v495 = vadd.f32 %v443, %v494
        %v496 = vmul.f32 %v487, %v493
        %v497 = vadd.f32 %v445, %v496
        %v498 = vld [vmem:[%s386 + $0x10] sm:$0xff]
        %v499 = vmul.f32 %v486, %v498
        %v500 = vadd.f32 %v448, %v499
        %v501 = vmul.f32 %v487, %v498
        %v502 = vadd.f32 %v450, %v501
        %v503 = vld [vmem:[%s392 + $0x10] sm:$0xff]
        %v504 = vmul.f32 %v486, %v503
        %v505 = vadd.f32 %v453, %v504
        %v506 = vmul.f32 %v487, %v503
        %v507 = vadd.f32 %v455, %v506
        %v508 = vld [vmem:[%s398 + $0x10] sm:$0xff]
        %v509 = vmul.f32 %v486, %v508
        %v510 = vadd.f32 %v458, %v509
        %v511 = vmul.f32 %v487, %v508
        %v512 = vadd.f32 %v460, %v511
        %v513 = vld [vmem:[%s404 + $0x10] sm:$0xff]
        %v514 = vmul.f32 %v486, %v513
        %v515 = vadd.f32 %v463, %v514
        %v516 = vmul.f32 %v487, %v513
        %v517 = vadd.f32 %v465, %v516
        %v518 = vld [vmem:[%s410 + $0x10] sm:$0xff]
        %v519 = vmul.f32 %v486, %v518
        %v520 = vadd.f32 %v468, %v519
        %v521 = vmul.f32 %v487, %v518
        %v522 = vadd.f32 %v470, %v521
        %v523 = vld [vmem:[%s416 + $0x10] sm:$0xff]
        %v524 = vmul.f32 %v486, %v523
        %v525 = vadd.f32 %v473, %v524
        %v526 = vmul.f32 %v487, %v523
        %v527 = vadd.f32 %v475, %v526
        %v528 = vld [vmem:[%s422 + $0x10] sm:$0xff]
        %v529 = vmul.f32 %v486, %v528
        %v530 = vadd.f32 %v478, %v529
        %v531 = vmul.f32 %v487, %v528
        %v532 = vadd.f32 %v480, %v531
        %v533 = vld [vmem:[%s428 + $0x10] sm:$0xff]
        %v534 = vmul.f32 %v486, %v533
        %v535 = vadd.f32 %v483, %v534
        %v536 = vmul.f32 %v487, %v533
        %v537 = vadd.f32 %v485, %v536
        %v538 = vld [vmem:[%s267 + $0x18] sm:$0xff]
        %v539 = vld [vmem:[%s373 + $0x18] sm:$0xff]
        %v540 = vld [vmem:[%s276 + $0x18] sm:$0xff]
        %v541 = vmul.f32 %v538, %v540
        %v542 = vadd.f32 %v490, %v541
        %v543 = vmul.f32 %v539, %v540
        %v544 = vadd.f32 %v492, %v543
        %v545 = vld [vmem:[%s380 + $0x18] sm:$0xff]
        %v546 = vmul.f32 %v538, %v545
        %v547 = vadd.f32 %v495, %v546
        %v548 = vmul.f32 %v539, %v545
        %v549 = vadd.f32 %v497, %v548
        %v550 = vld [vmem:[%s386 + $0x18] sm:$0xff]
        %v551 = vmul.f32 %v538, %v550
        %v552 = vadd.f32 %v500, %v551
        %v553 = vmul.f32 %v539, %v550
        %v554 = vadd.f32 %v502, %v553
        %v555 = vld [vmem:[%s392 + $0x18] sm:$0xff]
        %v556 = vmul.f32 %v538, %v555
        %v557 = vadd.f32 %v505, %v556
        %v558 = vmul.f32 %v539, %v555
        %v559 = vadd.f32 %v507, %v558
        %v560 = vld [vmem:[%s398 + $0x18] sm:$0xff]
        %v561 = vmul.f32 %v538, %v560
        %v562 = vadd.f32 %v510, %v561
        %v563 = vmul.f32 %v539, %v560
        %v564 = vadd.f32 %v512, %v563
        %v565 = vld [vmem:[%s404 + $0x18] sm:$0xff]
        %v566 = vmul.f32 %v538, %v565
        %v567 = vadd.f32 %v515, %v566
        %v568 = vmul.f32 %v539, %v565
        %v569 = vadd.f32 %v517, %v568
        %v570 = vld [vmem:[%s410 + $0x18] sm:$0xff]
        %v571 = vmul.f32 %v538, %v570
        %v572 = vadd.f32 %v520, %v571
        %v573 = vmul.f32 %v539, %v570
        %v574 = vadd.f32 %v522, %v573
        %v575 = vld [vmem:[%s416 + $0x18] sm:$0xff]
        %v576 = vmul.f32 %v538, %v575
        %v577 = vadd.f32 %v525, %v576
        %v578 = vmul.f32 %v539, %v575
        %v579 = vadd.f32 %v527, %v578
        %v580 = vld [vmem:[%s422 + $0x18] sm:$0xff]
        %v581 = vmul.f32 %v538, %v580
        %v582 = vadd.f32 %v530, %v581
        %v583 = vmul.f32 %v539, %v580
        %v584 = vadd.f32 %v532, %v583
        %v585 = vld [vmem:[%s428 + $0x18] sm:$0xff]
        %v586 = vmul.f32 %v538, %v585
        %v587 = vadd.f32 %v535, %v586
        %v588 = vmul.f32 %v539, %v585
        %v589 = vadd.f32 %v537, %v588
        %v590 = vld [vmem:[%s267 + $0x20] sm:$0xff]
        %v591 = vld [vmem:[%s373 + $0x20] sm:$0xff]
        %v592 = vld [vmem:[%s276 + $0x20] sm:$0xff]
        %v593 = vmul.f32 %v590, %v592
        %v594 = vadd.f32 %v542, %v593
        %v595 = vmul.f32 %v591, %v592
        %v596 = vadd.f32 %v544, %v595
        %v597 = vld [vmem:[%s380 + $0x20] sm:$0xff]
        %v598 = vmul.f32 %v590, %v597
        %v599 = vadd.f32 %v547, %v598
        %v600 = vmul.f32 %v591, %v597
        %v601 = vadd.f32 %v549, %v600
        %v602 = vld [vmem:[%s386 + $0x20] sm:$0xff]
        %v603 = vmul.f32 %v590, %v602
        %v604 = vadd.f32 %v552, %v603
        %v605 = vmul.f32 %v591, %v602
        %v606 = vadd.f32 %v554, %v605
        %v607 = vld [vmem:[%s392 + $0x20] sm:$0xff]
        %v608 = vmul.f32 %v590, %v607
        %v609 = vadd.f32 %v557, %v608
        %v610 = vmul.f32 %v591, %v607
        %v611 = vadd.f32 %v559, %v610
        %v612 = vld [vmem:[%s398 + $0x20] sm:$0xff]
        %v613 = vmul.f32 %v590, %v612
        %v614 = vadd.f32 %v562, %v613
        %v615 = vmul.f32 %v591, %v612
        %v616 = vadd.f32 %v564, %v615
        %v617 = vld [vmem:[%s404 + $0x20] sm:$0xff]
        %v618 = vmul.f32 %v590, %v617
        %v619 = vadd.f32 %v567, %v618
        %v620 = vmul.f32 %v591, %v617
        %v621 = vadd.f32 %v569, %v620
        %v622 = vld [vmem:[%s410 + $0x20] sm:$0xff]
        %v623 = vmul.f32 %v590, %v622
        %v624 = vadd.f32 %v572, %v623
        %v625 = vmul.f32 %v591, %v622
        %v626 = vadd.f32 %v574, %v625
        %v627 = vld [vmem:[%s416 + $0x20] sm:$0xff]
        %v628 = vmul.f32 %v590, %v627
        %v629 = vadd.f32 %v577, %v628
        %v630 = vmul.f32 %v591, %v627
        %v631 = vadd.f32 %v579, %v630
        %v632 = vld [vmem:[%s422 + $0x20] sm:$0xff]
        %v633 = vmul.f32 %v590, %v632
        %v634 = vadd.f32 %v582, %v633
        %v635 = vmul.f32 %v591, %v632
        %v636 = vadd.f32 %v584, %v635
        %v637 = vld [vmem:[%s428 + $0x20] sm:$0xff]
        %v638 = vmul.f32 %v590, %v637
        %v639 = vadd.f32 %v587, %v638
        %v640 = vmul.f32 %v591, %v637
        %v641 = vadd.f32 %v589, %v640
        %v642 = vld [vmem:[%s267 + $0x28] sm:$0xff]
        %v643 = vld [vmem:[%s373 + $0x28] sm:$0xff]
        %v644 = vld [vmem:[%s276 + $0x28] sm:$0xff]
        %v645 = vmul.f32 %v642, %v644
        %v646 = vadd.f32 %v594, %v645
        %v647 = vmul.f32 %v643, %v644
        %v648 = vadd.f32 %v596, %v647
        %v649 = vld [vmem:[%s380 + $0x28] sm:$0xff]
        %v650 = vmul.f32 %v642, %v649
        %v651 = vadd.f32 %v599, %v650
        %v652 = vmul.f32 %v643, %v649
        %v653 = vadd.f32 %v601, %v652
        %v654 = vld [vmem:[%s386 + $0x28] sm:$0xff]
        %v655 = vmul.f32 %v642, %v654
        %v656 = vadd.f32 %v604, %v655
        %v657 = vmul.f32 %v643, %v654
        %v658 = vadd.f32 %v606, %v657
        %v659 = vld [vmem:[%s392 + $0x28] sm:$0xff]
        %v660 = vmul.f32 %v642, %v659
        %v661 = vadd.f32 %v609, %v660
        %v662 = vmul.f32 %v643, %v659
        %v663 = vadd.f32 %v611, %v662
        %v664 = vld [vmem:[%s398 + $0x28] sm:$0xff]
        %v665 = vmul.f32 %v642, %v664
        %v666 = vadd.f32 %v614, %v665
        %v667 = vmul.f32 %v643, %v664
        %v668 = vadd.f32 %v616, %v667
        %v669 = vld [vmem:[%s404 + $0x28] sm:$0xff]
        %v670 = vmul.f32 %v642, %v669
        %v671 = vadd.f32 %v619, %v670
        %v672 = vmul.f32 %v643, %v669
        %v673 = vadd.f32 %v621, %v672
        %v674 = vld [vmem:[%s410 + $0x28] sm:$0xff]
        %v675 = vmul.f32 %v642, %v674
        %v676 = vadd.f32 %v624, %v675
        %v677 = vmul.f32 %v643, %v674
        %v678 = vadd.f32 %v626, %v677
        %v679 = vld [vmem:[%s416 + $0x28] sm:$0xff]
        %v680 = vmul.f32 %v642, %v679
        %v681 = vadd.f32 %v629, %v680
        %v682 = vmul.f32 %v643, %v679
        %v683 = vadd.f32 %v631, %v682
        %v684 = vld [vmem:[%s422 + $0x28] sm:$0xff]
        %v685 = vmul.f32 %v642, %v684
        %v686 = vadd.f32 %v634, %v685
        %v687 = vmul.f32 %v643, %v684
        %v688 = vadd.f32 %v636, %v687
        %v689 = vld [vmem:[%s428 + $0x28] sm:$0xff]
        %v690 = vmul.f32 %v642, %v689
        %v691 = vadd.f32 %v639, %v690
        %v692 = vmul.f32 %v643, %v689
        %v693 = vadd.f32 %v641, %v692
        %v694 = vld [vmem:[%s267 + $0x30] sm:$0xff]
        %v695 = vld [vmem:[%s373 + $0x30] sm:$0xff]
        %v696 = vld [vmem:[%s276 + $0x30] sm:$0xff]
        %v697 = vmul.f32 %v694, %v696
        %v698 = vadd.f32 %v646, %v697
        %v699 = vmul.f32 %v695, %v696
        %v700 = vadd.f32 %v648, %v699
        %v701 = vld [vmem:[%s380 + $0x30] sm:$0xff]
        %v702 = vmul.f32 %v694, %v701
        %v703 = vadd.f32 %v651, %v702
        %v704 = vmul.f32 %v695, %v701
        %v705 = vadd.f32 %v653, %v704
        %v706 = vld [vmem:[%s386 + $0x30] sm:$0xff]
        %v707 = vmul.f32 %v694, %v706
        %v708 = vadd.f32 %v656, %v707
        %v709 = vmul.f32 %v695, %v706
        %v710 = vadd.f32 %v658, %v709
        %v711 = vld [vmem:[%s392 + $0x30] sm:$0xff]
        %v712 = vmul.f32 %v694, %v711
        %v713 = vadd.f32 %v661, %v712
        %v714 = vmul.f32 %v695, %v711
        %v715 = vadd.f32 %v663, %v714
        %v716 = vld [vmem:[%s398 + $0x30] sm:$0xff]
        %v717 = vmul.f32 %v694, %v716
        %v718 = vadd.f32 %v666, %v717
        %v719 = vmul.f32 %v695, %v716
        %v720 = vadd.f32 %v668, %v719
        %v721 = vld [vmem:[%s404 + $0x30] sm:$0xff]
        %v722 = vmul.f32 %v694, %v721
        %v723 = vadd.f32 %v671, %v722
        %v724 = vmul.f32 %v695, %v721
        %v725 = vadd.f32 %v673, %v724
        %v726 = vld [vmem:[%s410 + $0x30] sm:$0xff]
        %v727 = vmul.f32 %v694, %v726
        %v728 = vadd.f32 %v676, %v727
        %v729 = vmul.f32 %v695, %v726
        %v730 = vadd.f32 %v678, %v729
        %v731 = vld [vmem:[%s416 + $0x30] sm:$0xff]
        %v732 = vmul.f32 %v694, %v731
        %v733 = vadd.f32 %v681, %v732
        %v734 = vmul.f32 %v695, %v731
        %v735 = vadd.f32 %v683, %v734
        %v736 = vld [vmem:[%s422 + $0x30] sm:$0xff]
        %v737 = vmul.f32 %v694, %v736
        %v738 = vadd.f32 %v686, %v737
        %v739 = vmul.f32 %v695, %v736
        %v740 = vadd.f32 %v688, %v739
        %v741 = vld [vmem:[%s428 + $0x30] sm:$0xff]
        %v742 = vmul.f32 %v694, %v741
        %v743 = vadd.f32 %v691, %v742
        %v744 = vmul.f32 %v695, %v741
        %v745 = vadd.f32 %v693, %v744
        %v746 = vld [vmem:[%s267 + $0x38] sm:$0xff]
        %v747 = vld [vmem:[%s373 + $0x38] sm:$0xff]
        %v748 = vld [vmem:[%s276 + $0x38] sm:$0xff]
        %v749 = vmul.f32 %v746, %v748
        %v750 = vadd.f32 %v698, %v749
        %v751 = vmul.f32 %v747, %v748
        %v752 = vadd.f32 %v700, %v751
        %v753 = vld [vmem:[%s380 + $0x38] sm:$0xff]
        %v754 = vmul.f32 %v746, %v753
        %v755 = vadd.f32 %v703, %v754
        %v756 = vmul.f32 %v747, %v753
        %v757 = vadd.f32 %v705, %v756
        %v758 = vld [vmem:[%s386 + $0x38] sm:$0xff]
        %v759 = vmul.f32 %v746, %v758
        %v760 = vadd.f32 %v708, %v759
        %v761 = vmul.f32 %v747, %v758
        %v762 = vadd.f32 %v710, %v761
        %v763 = vld [vmem:[%s392 + $0x38] sm:$0xff]
        %v764 = vmul.f32 %v746, %v763
        %v765 = vadd.f32 %v713, %v764
        %v766 = vmul.f32 %v747, %v763
        %v767 = vadd.f32 %v715, %v766
        %v768 = vld [vmem:[%s398 + $0x38] sm:$0xff]
        %v769 = vmul.f32 %v746, %v768
        %v770 = vadd.f32 %v718, %v769
        %v771 = vmul.f32 %v747, %v768
        %v772 = vadd.f32 %v720, %v771
        %v773 = vld [vmem:[%s404 + $0x38] sm:$0xff]
        %v774 = vmul.f32 %v746, %v773
        %v775 = vadd.f32 %v723, %v774
        %v776 = vmul.f32 %v747, %v773
        %v777 = vadd.f32 %v725, %v776
        %v778 = vld [vmem:[%s410 + $0x38] sm:$0xff]
        %v779 = vmul.f32 %v746, %v778
        %v780 = vadd.f32 %v728, %v779
        %v781 = vmul.f32 %v747, %v778
        %v782 = vadd.f32 %v730, %v781
        %v783 = vld [vmem:[%s416 + $0x38] sm:$0xff]
        %v784 = vmul.f32 %v746, %v783
        %v785 = vadd.f32 %v733, %v784
        %v786 = vmul.f32 %v747, %v783
        %v787 = vadd.f32 %v735, %v786
        %v788 = vld [vmem:[%s422 + $0x38] sm:$0xff]
        %v789 = vmul.f32 %v746, %v788
        %v790 = vadd.f32 %v738, %v789
        %v791 = vmul.f32 %v747, %v788
        %v792 = vadd.f32 %v740, %v791
        %v793 = vld [vmem:[%s428 + $0x38] sm:$0xff]
        %v794 = vmul.f32 %v746, %v793
        %v795 = vadd.f32 %v743, %v794
        %v796 = vmul.f32 %v747, %v793
        %v797 = vadd.f32 %v745, %v796
        %v798 = vld [vmem:[%s267 + $0x40] sm:$0xff]
        %v799 = vld [vmem:[%s373 + $0x40] sm:$0xff]
        %v800 = vld [vmem:[%s276 + $0x40] sm:$0xff]
        %v801 = vmul.f32 %v798, %v800
        %v802 = vadd.f32 %v750, %v801
        %v803 = vmul.f32 %v799, %v800
        %v804 = vadd.f32 %v752, %v803
        %v805 = vld [vmem:[%s380 + $0x40] sm:$0xff]
        %v806 = vmul.f32 %v798, %v805
        %v807 = vadd.f32 %v755, %v806
        %v808 = vmul.f32 %v799, %v805
        %v809 = vadd.f32 %v757, %v808
        %v810 = vld [vmem:[%s386 + $0x40] sm:$0xff]
        %v811 = vmul.f32 %v798, %v810
        %v812 = vadd.f32 %v760, %v811
        %v813 = vmul.f32 %v799, %v810
        %v814 = vadd.f32 %v762, %v813
        %v815 = vld [vmem:[%s392 + $0x40] sm:$0xff]
        %v816 = vmul.f32 %v798, %v815
        %v817 = vadd.f32 %v765, %v816
        %v818 = vmul.f32 %v799, %v815
        %v819 = vadd.f32 %v767, %v818
        %v820 = vld [vmem:[%s398 + $0x40] sm:$0xff]
        %v821 = vmul.f32 %v798, %v820
        %v822 = vadd.f32 %v770, %v821
        %v823 = vmul.f32 %v799, %v820
        %v824 = vadd.f32 %v772, %v823
        %v825 = vld [vmem:[%s404 + $0x40] sm:$0xff]
        %v826 = vmul.f32 %v798, %v825
        %v827 = vadd.f32 %v775, %v826
        %v828 = vmul.f32 %v799, %v825
        %v829 = vadd.f32 %v777, %v828
        %v830 = vld [vmem:[%s410 + $0x40] sm:$0xff]
        %v831 = vmul.f32 %v798, %v830
        %v832 = vadd.f32 %v780, %v831
        %v833 = vmul.f32 %v799, %v830
        %v834 = vadd.f32 %v782, %v833
        %v835 = vld [vmem:[%s416 + $0x40] sm:$0xff]
        %v836 = vmul.f32 %v798, %v835
        %v837 = vadd.f32 %v785, %v836
        %v838 = vmul.f32 %v799, %v835
        %v839 = vadd.f32 %v787, %v838
        %v840 = vld [vmem:[%s422 + $0x40] sm:$0xff]
        %v841 = vmul.f32 %v798, %v840
        %v842 = vadd.f32 %v790, %v841
        %v843 = vmul.f32 %v799, %v840
        %v844 = vadd.f32 %v792, %v843
        %v845 = vld [vmem:[%s428 + $0x40] sm:$0xff]
        %v846 = vmul.f32 %v798, %v845
        %v847 = vadd.f32 %v795, %v846
        %v848 = vmul.f32 %v799, %v845
        %v849 = vadd.f32 %v797, %v848
        %v850 = vld [vmem:[%s267 + $0x48] sm:$0xff]
        %v851 = vld [vmem:[%s373 + $0x48] sm:$0xff]
        %v852 = vld [vmem:[%s276 + $0x48] sm:$0xff]
        %v853 = vmul.f32 %v850, %v852
        %v854 = vadd.f32 %v802, %v853
        %v855 = vmul.f32 %v851, %v852
        %v856 = vadd.f32 %v804, %v855
        %v857 = vld [vmem:[%s380 + $0x48] sm:$0xff]
        %v858 = vmul.f32 %v850, %v857
        %v859 = vadd.f32 %v807, %v858
        %v860 = vmul.f32 %v851, %v857
        %v861 = vadd.f32 %v809, %v860
        %v862 = vld [vmem:[%s386 + $0x48] sm:$0xff]
        %v863 = vmul.f32 %v850, %v862
        %v864 = vadd.f32 %v812, %v863
        %v865 = vmul.f32 %v851, %v862
        %v866 = vadd.f32 %v814, %v865
        %v867 = vld [vmem:[%s392 + $0x48] sm:$0xff]
        %v868 = vmul.f32 %v850, %v867
        %v869 = vadd.f32 %v817, %v868
        %v870 = vmul.f32 %v851, %v867
        %v871 = vadd.f32 %v819, %v870
        %v872 = vld [vmem:[%s398 + $0x48] sm:$0xff]
        %v873 = vmul.f32 %v850, %v872
        %v874 = vadd.f32 %v822, %v873
        %v875 = vmul.f32 %v851, %v872
        %v876 = vadd.f32 %v824, %v875
        %v877 = vld [vmem:[%s404 + $0x48] sm:$0xff]
        %v878 = vmul.f32 %v850, %v877
        %v879 = vadd.f32 %v827, %v878
        %v880 = vmul.f32 %v851, %v877
        %v881 = vadd.f32 %v829, %v880
        %v882 = vld [vmem:[%s410 + $0x48] sm:$0xff]
        %v883 = vmul.f32 %v850, %v882
        %v884 = vadd.f32 %v832, %v883
        %v885 = vmul.f32 %v851, %v882
        %v886 = vadd.f32 %v834, %v885
        %v887 = vld [vmem:[%s416 + $0x48] sm:$0xff]
        %v888 = vmul.f32 %v850, %v887
        %v889 = vadd.f32 %v837, %v888
        %v890 = vmul.f32 %v851, %v887
        %v891 = vadd.f32 %v839, %v890
        %v892 = vld [vmem:[%s422 + $0x48] sm:$0xff]
        %v893 = vmul.f32 %v850, %v892
        %v894 = vadd.f32 %v842, %v893
        %v895 = vmul.f32 %v851, %v892
        %v896 = vadd.f32 %v844, %v895
        %v897 = vld [vmem:[%s428 + $0x48] sm:$0xff]
        %v898 = vmul.f32 %v850, %v897
        %v899 = vadd.f32 %v847, %v898
        %v900 = vmul.f32 %v851, %v897
        %v901 = vadd.f32 %v849, %v900
        %v902 = vld [vmem:[%s267 + $0x50] sm:$0xff]
        %v903 = vld [vmem:[%s373 + $0x50] sm:$0xff]
        %v904 = vld [vmem:[%s276 + $0x50] sm:$0xff]
        %v905 = vmul.f32 %v902, %v904
        %v906 = vadd.f32 %v854, %v905
        %v907 = vmul.f32 %v903, %v904
        %v908 = vadd.f32 %v856, %v907
        %v909 = vld [vmem:[%s380 + $0x50] sm:$0xff]
        %v910 = vmul.f32 %v902, %v909
        %v911 = vadd.f32 %v859, %v910
        %v912 = vmul.f32 %v903, %v909
        %v913 = vadd.f32 %v861, %v912
        %v914 = vld [vmem:[%s386 + $0x50] sm:$0xff]
        %v915 = vmul.f32 %v902, %v914
        %v916 = vadd.f32 %v864, %v915
        %v917 = vmul.f32 %v903, %v914
        %v918 = vadd.f32 %v866, %v917
        %v919 = vld [vmem:[%s392 + $0x50] sm:$0xff]
        %v920 = vmul.f32 %v902, %v919
        %v921 = vadd.f32 %v869, %v920
        %v922 = vmul.f32 %v903, %v919
        %v923 = vadd.f32 %v871, %v922
        %v924 = vld [vmem:[%s398 + $0x50] sm:$0xff]
        %v925 = vmul.f32 %v902, %v924
        %v926 = vadd.f32 %v874, %v925
        %v927 = vmul.f32 %v903, %v924
        %v928 = vadd.f32 %v876, %v927
        %v929 = vld [vmem:[%s404 + $0x50] sm:$0xff]
        %v930 = vmul.f32 %v902, %v929
        %v931 = vadd.f32 %v879, %v930
        %v932 = vmul.f32 %v903, %v929
        %v933 = vadd.f32 %v881, %v932
        %v934 = vld [vmem:[%s410 + $0x50] sm:$0xff]
        %v935 = vmul.f32 %v902, %v934
        %v936 = vadd.f32 %v884, %v935
        %v937 = vmul.f32 %v903, %v934
        %v938 = vadd.f32 %v886, %v937
        %v939 = vld [vmem:[%s416 + $0x50] sm:$0xff]
        %v940 = vmul.f32 %v902, %v939
        %v941 = vadd.f32 %v889, %v940
        %v942 = vmul.f32 %v903, %v939
        %v943 = vadd.f32 %v891, %v942
        %v944 = vld [vmem:[%s422 + $0x50] sm:$0xff]
        %v945 = vmul.f32 %v902, %v944
        %v946 = vadd.f32 %v894, %v945
        %v947 = vmul.f32 %v903, %v944
        %v948 = vadd.f32 %v896, %v947
        %v949 = vld [vmem:[%s428 + $0x50] sm:$0xff]
        %v950 = vmul.f32 %v902, %v949
        %v951 = vadd.f32 %v899, %v950
        %v952 = vmul.f32 %v903, %v949
        %v953 = vadd.f32 %v901, %v952
        %v954 = vld [vmem:[%s267 + $0x58] sm:$0xff]
        %v955 = vld [vmem:[%s373 + $0x58] sm:$0xff]
        %v956 = vld [vmem:[%s276 + $0x58] sm:$0xff]
        %v957 = vmul.f32 %v954, %v956
        %v958 = vadd.f32 %v906, %v957
        %v959 = vmul.f32 %v955, %v956
        %v960 = vadd.f32 %v908, %v959
        %v961 = vld [vmem:[%s380 + $0x58] sm:$0xff]
        %v962 = vmul.f32 %v954, %v961
        %v963 = vadd.f32 %v911, %v962
        %v964 = vmul.f32 %v955, %v961
        %v965 = vadd.f32 %v913, %v964
        %v966 = vld [vmem:[%s386 + $0x58] sm:$0xff]
        %v967 = vmul.f32 %v954, %v966
        %v968 = vadd.f32 %v916, %v967
        %v969 = vmul.f32 %v955, %v966
        %v970 = vadd.f32 %v918, %v969
        %v971 = vld [vmem:[%s392 + $0x58] sm:$0xff]
        %v972 = vmul.f32 %v954, %v971
        %v973 = vadd.f32 %v921, %v972
        %v974 = vmul.f32 %v955, %v971
        %v975 = vadd.f32 %v923, %v974
        %v976 = vld [vmem:[%s398 + $0x58] sm:$0xff]
        %v977 = vmul.f32 %v954, %v976
        %v978 = vadd.f32 %v926, %v977
        %v979 = vmul.f32 %v955, %v976
        %v980 = vadd.f32 %v928, %v979
        %v981 = vld [vmem:[%s404 + $0x58] sm:$0xff]
        %v982 = vmul.f32 %v954, %v981
        %v983 = vadd.f32 %v931, %v982
        %v984 = vmul.f32 %v955, %v981
        %v985 = vadd.f32 %v933, %v984
        %v986 = vld [vmem:[%s410 + $0x58] sm:$0xff]
        %v987 = vmul.f32 %v954, %v986
        %v988 = vadd.f32 %v936, %v987
        %v989 = vmul.f32 %v955, %v986
        %v990 = vadd.f32 %v938, %v989
        %v991 = vld [vmem:[%s416 + $0x58] sm:$0xff]
        %v992 = vmul.f32 %v954, %v991
        %v993 = vadd.f32 %v941, %v992
        %v994 = vmul.f32 %v955, %v991
        %v995 = vadd.f32 %v943, %v994
        %v996 = vld [vmem:[%s422 + $0x58] sm:$0xff]
        %v997 = vmul.f32 %v954, %v996
        %v998 = vadd.f32 %v946, %v997
        %v999 = vmul.f32 %v955, %v996
        %v1000 = vadd.f32 %v948, %v999
        %v1001 = vld [vmem:[%s428 + $0x58] sm:$0xff]
        %v1002 = vmul.f32 %v954, %v1001
        %v1003 = vadd.f32 %v951, %v1002
        %v1004 = vmul.f32 %v955, %v1001
        %v1005 = vadd.f32 %v953, %v1004
        %v1006 = vld [vmem:[%s267 + $0x60] sm:$0xff]
        %v1007 = vld [vmem:[%s373 + $0x60] sm:$0xff]
        %v1008 = vld [vmem:[%s276 + $0x60] sm:$0xff]
        %v1009 = vmul.f32 %v1006, %v1008
        %v1010 = vadd.f32 %v958, %v1009
        %v1011 = vmul.f32 %v1007, %v1008
        %v1012 = vadd.f32 %v960, %v1011
        %v1013 = vld [vmem:[%s380 + $0x60] sm:$0xff]
        %v1014 = vmul.f32 %v1006, %v1013
        %v1015 = vadd.f32 %v963, %v1014
        %v1016 = vmul.f32 %v1007, %v1013
        %v1017 = vadd.f32 %v965, %v1016
        %v1018 = vld [vmem:[%s386 + $0x60] sm:$0xff]
        %v1019 = vmul.f32 %v1006, %v1018
        %v1020 = vadd.f32 %v968, %v1019
        %v1021 = vmul.f32 %v1007, %v1018
        %v1022 = vadd.f32 %v970, %v1021
        %v1023 = vld [vmem:[%s392 + $0x60] sm:$0xff]
        %v1024 = vmul.f32 %v1006, %v1023
        %v1025 = vadd.f32 %v973, %v1024
        %v1026 = vmul.f32 %v1007, %v1023
        %v1027 = vadd.f32 %v975, %v1026
        %v1028 = vld [vmem:[%s398 + $0x60] sm:$0xff]
        %v1029 = vmul.f32 %v1006, %v1028
        %v1030 = vadd.f32 %v978, %v1029
        %v1031 = vmul.f32 %v1007, %v1028
        %v1032 = vadd.f32 %v980, %v1031
        %v1033 = vld [vmem:[%s404 + $0x60] sm:$0xff]
        %v1034 = vmul.f32 %v1006, %v1033
        %v1035 = vadd.f32 %v983, %v1034
        %v1036 = vmul.f32 %v1007, %v1033
        %v1037 = vadd.f32 %v985, %v1036
        %v1038 = vld [vmem:[%s410 + $0x60] sm:$0xff]
        %v1039 = vmul.f32 %v1006, %v1038
        %v1040 = vadd.f32 %v988, %v1039
        %v1041 = vmul.f32 %v1007, %v1038
        %v1042 = vadd.f32 %v990, %v1041
        %v1043 = vld [vmem:[%s416 + $0x60] sm:$0xff]
        %v1044 = vmul.f32 %v1006, %v1043
        %v1045 = vadd.f32 %v993, %v1044
        %v1046 = vmul.f32 %v1007, %v1043
        %v1047 = vadd.f32 %v995, %v1046
        %v1048 = vld [vmem:[%s422 + $0x60] sm:$0xff]
        %v1049 = vmul.f32 %v1006, %v1048
        %v1050 = vadd.f32 %v998, %v1049
        %v1051 = vmul.f32 %v1007, %v1048
        %v1052 = vadd.f32 %v1000, %v1051
        %v1053 = vld [vmem:[%s428 + $0x60] sm:$0xff]
        %v1054 = vmul.f32 %v1006, %v1053
        %v1055 = vadd.f32 %v1003, %v1054
        %v1056 = vmul.f32 %v1007, %v1053
        %v1057 = vadd.f32 %v1005, %v1056
        %v1058 = vld [vmem:[%s267 + $0x68] sm:$0xff]
        %v1059 = vld [vmem:[%s373 + $0x68] sm:$0xff]
        %v1060 = vld [vmem:[%s276 + $0x68] sm:$0xff]
        %v1061 = vmul.f32 %v1058, %v1060
        %v1062 = vadd.f32 %v1010, %v1061
        %v1063 = vmul.f32 %v1059, %v1060
        %v1064 = vadd.f32 %v1012, %v1063
        %v1065 = vld [vmem:[%s380 + $0x68] sm:$0xff]
        %v1066 = vmul.f32 %v1058, %v1065
        %v1067 = vadd.f32 %v1015, %v1066
        %v1068 = vmul.f32 %v1059, %v1065
        %v1069 = vadd.f32 %v1017, %v1068
        %v1070 = vld [vmem:[%s386 + $0x68] sm:$0xff]
        %v1071 = vmul.f32 %v1058, %v1070
        %v1072 = vadd.f32 %v1020, %v1071
        %v1073 = vmul.f32 %v1059, %v1070
        %v1074 = vadd.f32 %v1022, %v1073
        %v1075 = vld [vmem:[%s392 + $0x68] sm:$0xff]
        %v1076 = vmul.f32 %v1058, %v1075
        %v1077 = vadd.f32 %v1025, %v1076
        %v1078 = vmul.f32 %v1059, %v1075
        %v1079 = vadd.f32 %v1027, %v1078
        %v1080 = vld [vmem:[%s398 + $0x68] sm:$0xff]
        %v1081 = vmul.f32 %v1058, %v1080
        %v1082 = vadd.f32 %v1030, %v1081
        %v1083 = vmul.f32 %v1059, %v1080
        %v1084 = vadd.f32 %v1032, %v1083
        %v1085 = vld [vmem:[%s404 + $0x68] sm:$0xff]
        %v1086 = vmul.f32 %v1058, %v1085
        %v1087 = vadd.f32 %v1035, %v1086
        %v1088 = vmul.f32 %v1059, %v1085
        %v1089 = vadd.f32 %v1037, %v1088
        %v1090 = vld [vmem:[%s410 + $0x68] sm:$0xff]
        %v1091 = vmul.f32 %v1058, %v1090
        %v1092 = vadd.f32 %v1040, %v1091
        %v1093 = vmul.f32 %v1059, %v1090
        %v1094 = vadd.f32 %v1042, %v1093
        %v1095 = vld [vmem:[%s416 + $0x68] sm:$0xff]
        %v1096 = vmul.f32 %v1058, %v1095
        %v1097 = vadd.f32 %v1045, %v1096
        %v1098 = vmul.f32 %v1059, %v1095
        %v1099 = vadd.f32 %v1047, %v1098
        %v1100 = vld [vmem:[%s422 + $0x68] sm:$0xff]
        %v1101 = vmul.f32 %v1058, %v1100
        %v1102 = vadd.f32 %v1050, %v1101
        %v1103 = vmul.f32 %v1059, %v1100
        %v1104 = vadd.f32 %v1052, %v1103
        %v1105 = vld [vmem:[%s428 + $0x68] sm:$0xff]
        %v1106 = vmul.f32 %v1058, %v1105
        %v1107 = vadd.f32 %v1055, %v1106
        %v1108 = vmul.f32 %v1059, %v1105
        %v1109 = vadd.f32 %v1057, %v1108
        %v1110 = vld [vmem:[%s267 + $0x70] sm:$0xff]
        %v1111 = vld [vmem:[%s373 + $0x70] sm:$0xff]
        %v1112 = vld [vmem:[%s276 + $0x70] sm:$0xff]
        %v1113 = vmul.f32 %v1110, %v1112
        %v1114 = vadd.f32 %v1062, %v1113
        %v1115 = vmul.f32 %v1111, %v1112
        %v1116 = vadd.f32 %v1064, %v1115
        %v1117 = vld [vmem:[%s380 + $0x70] sm:$0xff]
        %v1118 = vmul.f32 %v1110, %v1117
        %v1119 = vadd.f32 %v1067, %v1118
        %v1120 = vmul.f32 %v1111, %v1117
        %v1121 = vadd.f32 %v1069, %v1120
        %v1122 = vld [vmem:[%s386 + $0x70] sm:$0xff]
        %v1123 = vmul.f32 %v1110, %v1122
        %v1124 = vadd.f32 %v1072, %v1123
        %v1125 = vmul.f32 %v1111, %v1122
        %v1126 = vadd.f32 %v1074, %v1125
        %v1127 = vld [vmem:[%s392 + $0x70] sm:$0xff]
        %v1128 = vmul.f32 %v1110, %v1127
        %v1129 = vadd.f32 %v1077, %v1128
        %v1130 = vmul.f32 %v1111, %v1127
        %v1131 = vadd.f32 %v1079, %v1130
        %v1132 = vld [vmem:[%s398 + $0x70] sm:$0xff]
        %v1133 = vmul.f32 %v1110, %v1132
        %v1134 = vadd.f32 %v1082, %v1133
        %v1135 = vmul.f32 %v1111, %v1132
        %v1136 = vadd.f32 %v1084, %v1135
        %v1137 = vld [vmem:[%s404 + $0x70] sm:$0xff]
        %v1138 = vmul.f32 %v1110, %v1137
        %v1139 = vadd.f32 %v1087, %v1138
        %v1140 = vmul.f32 %v1111, %v1137
        %v1141 = vadd.f32 %v1089, %v1140
        %v1142 = vld [vmem:[%s410 + $0x70] sm:$0xff]
        %v1143 = vmul.f32 %v1110, %v1142
        %v1144 = vadd.f32 %v1092, %v1143
        %v1145 = vmul.f32 %v1111, %v1142
        %v1146 = vadd.f32 %v1094, %v1145
        %v1147 = vld [vmem:[%s416 + $0x70] sm:$0xff]
        %v1148 = vmul.f32 %v1110, %v1147
        %v1149 = vadd.f32 %v1097, %v1148
        %v1150 = vmul.f32 %v1111, %v1147
        %v1151 = vadd.f32 %v1099, %v1150
        %v1152 = vld [vmem:[%s422 + $0x70] sm:$0xff]
        %v1153 = vmul.f32 %v1110, %v1152
        %v1154 = vadd.f32 %v1102, %v1153
        %v1155 = vmul.f32 %v1111, %v1152
        %v1156 = vadd.f32 %v1104, %v1155
        %v1157 = vld [vmem:[%s428 + $0x70] sm:$0xff]
        %v1158 = vmul.f32 %v1110, %v1157
        %v1159 = vadd.f32 %v1107, %v1158
        %v1160 = vmul.f32 %v1111, %v1157
        %v1161 = vadd.f32 %v1109, %v1160
        %v1162 = vld [vmem:[%s267 + $0x78] sm:$0xff]
        %v1163 = vld [vmem:[%s373 + $0x78] sm:$0xff]
        %v1164 = vld [vmem:[%s276 + $0x78] sm:$0xff]
        %v1165 = vmul.f32 %v1162, %v1164
        %v1166 = vadd.f32 %v1114, %v1165
        %v1167 = vmul.f32 %v1163, %v1164
        %v1168 = vadd.f32 %v1116, %v1167
        %v1169 = vld [vmem:[%s380 + $0x78] sm:$0xff]
        %v1170 = vmul.f32 %v1162, %v1169
        %v1171 = vadd.f32 %v1119, %v1170
        %v1172 = vmul.f32 %v1163, %v1169
        %v1173 = vadd.f32 %v1121, %v1172
        %v1174 = vld [vmem:[%s386 + $0x78] sm:$0xff]
        %v1175 = vmul.f32 %v1162, %v1174
        %v1176 = vadd.f32 %v1124, %v1175
        %v1177 = vmul.f32 %v1163, %v1174
        %v1178 = vadd.f32 %v1126, %v1177
        %v1179 = vld [vmem:[%s392 + $0x78] sm:$0xff]
        %v1180 = vmul.f32 %v1162, %v1179
        %v1181 = vadd.f32 %v1129, %v1180
        %v1182 = vmul.f32 %v1163, %v1179
        %v1183 = vadd.f32 %v1131, %v1182
        %v1184 = vld [vmem:[%s398 + $0x78] sm:$0xff]
        %v1185 = vmul.f32 %v1162, %v1184
        %v1186 = vadd.f32 %v1134, %v1185
        %v1187 = vmul.f32 %v1163, %v1184
        %v1188 = vadd.f32 %v1136, %v1187
        %v1189 = vld [vmem:[%s404 + $0x78] sm:$0xff]
        %v1190 = vmul.f32 %v1162, %v1189
        %v1191 = vadd.f32 %v1139, %v1190
        %v1192 = vmul.f32 %v1163, %v1189
        %v1193 = vadd.f32 %v1141, %v1192
        %v1194 = vld [vmem:[%s410 + $0x78] sm:$0xff]
        %v1195 = vmul.f32 %v1162, %v1194
        %v1196 = vadd.f32 %v1144, %v1195
        %v1197 = vmul.f32 %v1163, %v1194
        %v1198 = vadd.f32 %v1146, %v1197
        %v1199 = vld [vmem:[%s416 + $0x78] sm:$0xff]
        %v1200 = vmul.f32 %v1162, %v1199
        %v1201 = vadd.f32 %v1149, %v1200
        %v1202 = vmul.f32 %v1163, %v1199
        %v1203 = vadd.f32 %v1151, %v1202
        %v1204 = vld [vmem:[%s422 + $0x78] sm:$0xff]
        %v1205 = vmul.f32 %v1162, %v1204
        %v1206 = vadd.f32 %v1154, %v1205
        %v1207 = vmul.f32 %v1163, %v1204
        %v1208 = vadd.f32 %v1156, %v1207
        %v1209 = vld [vmem:[%s428 + $0x78] sm:$0xff]
        %v1210 = vmul.f32 %v1162, %v1209
        %v1211 = vadd.f32 %v1159, %v1210
        %v1212 = vmul.f32 %v1163, %v1209
        %v1213 = vadd.f32 %v1161, %v1212
        %v1214 = vld [vmem:[%s267 + $0x80] sm:$0xff]
        %v1215 = vld [vmem:[%s373 + $0x80] sm:$0xff]
        %v1216 = vld [vmem:[%s276 + $0x80] sm:$0xff]
        %v1217 = vmul.f32 %v1214, %v1216
        %v1218 = vadd.f32 %v1166, %v1217
        %v1219 = vmul.f32 %v1215, %v1216
        %v1220 = vadd.f32 %v1168, %v1219
        %v1221 = vld [vmem:[%s380 + $0x80] sm:$0xff]
        %v1222 = vmul.f32 %v1214, %v1221
        %v1223 = vadd.f32 %v1171, %v1222
        %v1224 = vmul.f32 %v1215, %v1221
        %v1225 = vadd.f32 %v1173, %v1224
        %v1226 = vld [vmem:[%s386 + $0x80] sm:$0xff]
        %v1227 = vmul.f32 %v1214, %v1226
        %v1228 = vadd.f32 %v1176, %v1227
        %v1229 = vmul.f32 %v1215, %v1226
        %v1230 = vadd.f32 %v1178, %v1229
        %v1231 = vld [vmem:[%s392 + $0x80] sm:$0xff]
        %v1232 = vmul.f32 %v1214, %v1231
        %v1233 = vadd.f32 %v1181, %v1232
        %v1234 = vmul.f32 %v1215, %v1231
        %v1235 = vadd.f32 %v1183, %v1234
        %v1236 = vld [vmem:[%s398 + $0x80] sm:$0xff]
        %v1237 = vmul.f32 %v1214, %v1236
        %v1238 = vadd.f32 %v1186, %v1237
        %v1239 = vmul.f32 %v1215, %v1236
        %v1240 = vadd.f32 %v1188, %v1239
        %v1241 = vld [vmem:[%s404 + $0x80] sm:$0xff]
        %v1242 = vmul.f32 %v1214, %v1241
        %v1243 = vadd.f32 %v1191, %v1242
        %v1244 = vmul.f32 %v1215, %v1241
        %v1245 = vadd.f32 %v1193, %v1244
        %v1246 = vld [vmem:[%s410 + $0x80] sm:$0xff]
        %v1247 = vmul.f32 %v1214, %v1246
        %v1248 = vadd.f32 %v1196, %v1247
        %v1249 = vmul.f32 %v1215, %v1246
        %v1250 = vadd.f32 %v1198, %v1249
        %v1251 = vld [vmem:[%s416 + $0x80] sm:$0xff]
        %v1252 = vmul.f32 %v1214, %v1251
        %v1253 = vadd.f32 %v1201, %v1252
        %v1254 = vmul.f32 %v1215, %v1251
        %v1255 = vadd.f32 %v1203, %v1254
        %v1256 = vld [vmem:[%s422 + $0x80] sm:$0xff]
        %v1257 = vmul.f32 %v1214, %v1256
        %v1258 = vadd.f32 %v1206, %v1257
        %v1259 = vmul.f32 %v1215, %v1256
        %v1260 = vadd.f32 %v1208, %v1259
        %v1261 = vld [vmem:[%s428 + $0x80] sm:$0xff]
        %v1262 = vmul.f32 %v1214, %v1261
        %v1263 = vadd.f32 %v1211, %v1262
        %v1264 = vmul.f32 %v1215, %v1261
        %v1265 = vadd.f32 %v1213, %v1264
        %v1266 = vld [vmem:[%s267 + $0x88] sm:$0xff]
        %v1267 = vld [vmem:[%s373 + $0x88] sm:$0xff]
        %v1268 = vld [vmem:[%s276 + $0x88] sm:$0xff]
        %v1269 = vmul.f32 %v1266, %v1268
        %v1270 = vadd.f32 %v1218, %v1269
        %v1271 = vmul.f32 %v1267, %v1268
        %v1272 = vadd.f32 %v1220, %v1271
        %v1273 = vld [vmem:[%s380 + $0x88] sm:$0xff]
        %v1274 = vmul.f32 %v1266, %v1273
        %v1275 = vadd.f32 %v1223, %v1274
        %v1276 = vmul.f32 %v1267, %v1273
        %v1277 = vadd.f32 %v1225, %v1276
        %v1278 = vld [vmem:[%s386 + $0x88] sm:$0xff]
        %v1279 = vmul.f32 %v1266, %v1278
        %v1280 = vadd.f32 %v1228, %v1279
        %v1281 = vmul.f32 %v1267, %v1278
        %v1282 = vadd.f32 %v1230, %v1281
        %v1283 = vld [vmem:[%s392 + $0x88] sm:$0xff]
        %v1284 = vmul.f32 %v1266, %v1283
        %v1285 = vadd.f32 %v1233, %v1284
        %v1286 = vmul.f32 %v1267, %v1283
        %v1287 = vadd.f32 %v1235, %v1286
        %v1288 = vld [vmem:[%s398 + $0x88] sm:$0xff]
        %v1289 = vmul.f32 %v1266, %v1288
        %v1290 = vadd.f32 %v1238, %v1289
        %v1291 = vmul.f32 %v1267, %v1288
        %v1292 = vadd.f32 %v1240, %v1291
        %v1293 = vld [vmem:[%s404 + $0x88] sm:$0xff]
        %v1294 = vmul.f32 %v1266, %v1293
        %v1295 = vadd.f32 %v1243, %v1294
        %v1296 = vmul.f32 %v1267, %v1293
        %v1297 = vadd.f32 %v1245, %v1296
        %v1298 = vld [vmem:[%s410 + $0x88] sm:$0xff]
        %v1299 = vmul.f32 %v1266, %v1298
        %v1300 = vadd.f32 %v1248, %v1299
        %v1301 = vmul.f32 %v1267, %v1298
        %v1302 = vadd.f32 %v1250, %v1301
        %v1303 = vld [vmem:[%s416 + $0x88] sm:$0xff]
        %v1304 = vmul.f32 %v1266, %v1303
        %v1305 = vadd.f32 %v1253, %v1304
        %v1306 = vmul.f32 %v1267, %v1303
        %v1307 = vadd.f32 %v1255, %v1306
        %v1308 = vld [vmem:[%s422 + $0x88] sm:$0xff]
        %v1309 = vmul.f32 %v1266, %v1308
        %v1310 = vadd.f32 %v1258, %v1309
        %v1311 = vmul.f32 %v1267, %v1308
        %v1312 = vadd.f32 %v1260, %v1311
        %v1313 = vld [vmem:[%s428 + $0x88] sm:$0xff]
        %v1314 = vmul.f32 %v1266, %v1313
        %v1315 = vadd.f32 %v1263, %v1314
        %v1316 = vmul.f32 %v1267, %v1313
        %v1317 = vadd.f32 %v1265, %v1316
        %v1318 = vld [vmem:[%s267 + $0x90] sm:$0xff]
        %v1319 = vld [vmem:[%s373 + $0x90] sm:$0xff]
        %v1320 = vld [vmem:[%s276 + $0x90] sm:$0xff]
        %v1321 = vmul.f32 %v1318, %v1320
        %v1322 = vadd.f32 %v1270, %v1321
        %v1323 = vmul.f32 %v1319, %v1320
        %v1324 = vadd.f32 %v1272, %v1323
        %v1325 = vld [vmem:[%s380 + $0x90] sm:$0xff]
        %v1326 = vmul.f32 %v1318, %v1325
        %v1327 = vadd.f32 %v1275, %v1326
        %v1328 = vmul.f32 %v1319, %v1325
        %v1329 = vadd.f32 %v1277, %v1328
        %v1330 = vld [vmem:[%s386 + $0x90] sm:$0xff]
        %v1331 = vmul.f32 %v1318, %v1330
        %v1332 = vadd.f32 %v1280, %v1331
        %v1333 = vmul.f32 %v1319, %v1330
        %v1334 = vadd.f32 %v1282, %v1333
        %v1335 = vld [vmem:[%s392 + $0x90] sm:$0xff]
        %v1336 = vmul.f32 %v1318, %v1335
        %v1337 = vadd.f32 %v1285, %v1336
        %v1338 = vmul.f32 %v1319, %v1335
        %v1339 = vadd.f32 %v1287, %v1338
        %v1340 = vld [vmem:[%s398 + $0x90] sm:$0xff]
        %v1341 = vmul.f32 %v1318, %v1340
        %v1342 = vadd.f32 %v1290, %v1341
        %v1343 = vmul.f32 %v1319, %v1340
        %v1344 = vadd.f32 %v1292, %v1343
        %v1345 = vld [vmem:[%s404 + $0x90] sm:$0xff]
        %v1346 = vmul.f32 %v1318, %v1345
        %v1347 = vadd.f32 %v1295, %v1346
        %v1348 = vmul.f32 %v1319, %v1345
        %v1349 = vadd.f32 %v1297, %v1348
        %v1350 = vld [vmem:[%s410 + $0x90] sm:$0xff]
        %v1351 = vmul.f32 %v1318, %v1350
        %v1352 = vadd.f32 %v1300, %v1351
        %v1353 = vmul.f32 %v1319, %v1350
        %v1354 = vadd.f32 %v1302, %v1353
        %v1355 = vld [vmem:[%s416 + $0x90] sm:$0xff]
        %v1356 = vmul.f32 %v1318, %v1355
        %v1357 = vadd.f32 %v1305, %v1356
        %v1358 = vmul.f32 %v1319, %v1355
        %v1359 = vadd.f32 %v1307, %v1358
        %v1360 = vld [vmem:[%s422 + $0x90] sm:$0xff]
        %v1361 = vmul.f32 %v1318, %v1360
        %v1362 = vadd.f32 %v1310, %v1361
        %v1363 = vmul.f32 %v1319, %v1360
        %v1364 = vadd.f32 %v1312, %v1363
        %v1365 = vld [vmem:[%s428 + $0x90] sm:$0xff]
        %v1366 = vmul.f32 %v1318, %v1365
        %v1367 = vadd.f32 %v1315, %v1366
        %v1368 = vmul.f32 %v1319, %v1365
        %v1369 = vadd.f32 %v1317, %v1368
        %v1370 = vld [vmem:[%s267 + $0x98] sm:$0xff]
        %v1371 = vld [vmem:[%s373 + $0x98] sm:$0xff]
        %v1372 = vld [vmem:[%s276 + $0x98] sm:$0xff]
        %v1373 = vmul.f32 %v1370, %v1372
        %v1374 = vadd.f32 %v1322, %v1373
        %v1375 = vmul.f32 %v1371, %v1372
        %v1376 = vadd.f32 %v1324, %v1375
        %v1377 = vld [vmem:[%s380 + $0x98] sm:$0xff]
        %v1378 = vmul.f32 %v1370, %v1377
        %v1379 = vadd.f32 %v1327, %v1378
        %v1380 = vmul.f32 %v1371, %v1377
        %v1381 = vadd.f32 %v1329, %v1380
        %v1382 = vld [vmem:[%s386 + $0x98] sm:$0xff]
        %v1383 = vmul.f32 %v1370, %v1382
        %v1384 = vadd.f32 %v1332, %v1383
        %v1385 = vmul.f32 %v1371, %v1382
        %v1386 = vadd.f32 %v1334, %v1385
        %v1387 = vld [vmem:[%s392 + $0x98] sm:$0xff]
        %v1388 = vmul.f32 %v1370, %v1387
        %v1389 = vadd.f32 %v1337, %v1388
        %v1390 = vmul.f32 %v1371, %v1387
        %v1391 = vadd.f32 %v1339, %v1390
        %v1392 = vld [vmem:[%s398 + $0x98] sm:$0xff]
        %v1393 = vmul.f32 %v1370, %v1392
        %v1394 = vadd.f32 %v1342, %v1393
        %v1395 = vmul.f32 %v1371, %v1392
        %v1396 = vadd.f32 %v1344, %v1395
        %v1397 = vld [vmem:[%s404 + $0x98] sm:$0xff]
        %v1398 = vmul.f32 %v1370, %v1397
        %v1399 = vadd.f32 %v1347, %v1398
        %v1400 = vmul.f32 %v1371, %v1397
        %v1401 = vadd.f32 %v1349, %v1400
        %v1402 = vld [vmem:[%s410 + $0x98] sm:$0xff]
        %v1403 = vmul.f32 %v1370, %v1402
        %v1404 = vadd.f32 %v1352, %v1403
        %v1405 = vmul.f32 %v1371, %v1402
        %v1406 = vadd.f32 %v1354, %v1405
        %v1407 = vld [vmem:[%s416 + $0x98] sm:$0xff]
        %v1408 = vmul.f32 %v1370, %v1407
        %v1409 = vadd.f32 %v1357, %v1408
        %v1410 = vmul.f32 %v1371, %v1407
        %v1411 = vadd.f32 %v1359, %v1410
        %v1412 = vld [vmem:[%s422 + $0x98] sm:$0xff]
        %v1413 = vmul.f32 %v1370, %v1412
        %v1414 = vadd.f32 %v1362, %v1413
        %v1415 = vmul.f32 %v1371, %v1412
        %v1416 = vadd.f32 %v1364, %v1415
        %v1417 = vld [vmem:[%s428 + $0x98] sm:$0xff]
        %v1418 = vmul.f32 %v1370, %v1417
        %v1419 = vadd.f32 %v1367, %v1418
        %v1420 = vmul.f32 %v1371, %v1417
        %v1421 = vadd.f32 %v1369, %v1420
        %v1422 = vld [vmem:[%s267 + $0xa0] sm:$0xff]
        %v1423 = vld [vmem:[%s373 + $0xa0] sm:$0xff]
        %v1424 = vld [vmem:[%s276 + $0xa0] sm:$0xff]
        %v1425 = vmul.f32 %v1422, %v1424
        %v1426 = vadd.f32 %v1374, %v1425
        %v1427 = vmul.f32 %v1423, %v1424
        %v1428 = vadd.f32 %v1376, %v1427
        %v1429 = vld [vmem:[%s380 + $0xa0] sm:$0xff]
        %v1430 = vmul.f32 %v1422, %v1429
        %v1431 = vadd.f32 %v1379, %v1430
        %v1432 = vmul.f32 %v1423, %v1429
        %v1433 = vadd.f32 %v1381, %v1432
        %v1434 = vld [vmem:[%s386 + $0xa0] sm:$0xff]
        %v1435 = vmul.f32 %v1422, %v1434
        %v1436 = vadd.f32 %v1384, %v1435
        %v1437 = vmul.f32 %v1423, %v1434
        %v1438 = vadd.f32 %v1386, %v1437
        %v1439 = vld [vmem:[%s392 + $0xa0] sm:$0xff]
        %v1440 = vmul.f32 %v1422, %v1439
        %v1441 = vadd.f32 %v1389, %v1440
        %v1442 = vmul.f32 %v1423, %v1439
        %v1443 = vadd.f32 %v1391, %v1442
        %v1444 = vld [vmem:[%s398 + $0xa0] sm:$0xff]
        %v1445 = vmul.f32 %v1422, %v1444
        %v1446 = vadd.f32 %v1394, %v1445
        %v1447 = vmul.f32 %v1423, %v1444
        %v1448 = vadd.f32 %v1396, %v1447
        %v1449 = vld [vmem:[%s404 + $0xa0] sm:$0xff]
        %v1450 = vmul.f32 %v1422, %v1449
        %v1451 = vadd.f32 %v1399, %v1450
        %v1452 = vmul.f32 %v1423, %v1449
        %v1453 = vadd.f32 %v1401, %v1452
        %v1454 = vld [vmem:[%s410 + $0xa0] sm:$0xff]
        %v1455 = vmul.f32 %v1422, %v1454
        %v1456 = vadd.f32 %v1404, %v1455
        %v1457 = vmul.f32 %v1423, %v1454
        %v1458 = vadd.f32 %v1406, %v1457
        %v1459 = vld [vmem:[%s416 + $0xa0] sm:$0xff]
        %v1460 = vmul.f32 %v1422, %v1459
        %v1461 = vadd.f32 %v1409, %v1460
        %v1462 = vmul.f32 %v1423, %v1459
        %v1463 = vadd.f32 %v1411, %v1462
        %v1464 = vld [vmem:[%s422 + $0xa0] sm:$0xff]
        %v1465 = vmul.f32 %v1422, %v1464
        %v1466 = vadd.f32 %v1414, %v1465
        %v1467 = vmul.f32 %v1423, %v1464
        %v1468 = vadd.f32 %v1416, %v1467
        %v1469 = vld [vmem:[%s428 + $0xa0] sm:$0xff]
        %v1470 = vmul.f32 %v1422, %v1469
        %v1471 = vadd.f32 %v1419, %v1470
        %v1472 = vmul.f32 %v1423, %v1469
        %v1473 = vadd.f32 %v1421, %v1472
        %v1474 = vld [vmem:[%s267 + $0xa8] sm:$0xff]
        %v1475 = vld [vmem:[%s373 + $0xa8] sm:$0xff]
        %v1476 = vld [vmem:[%s276 + $0xa8] sm:$0xff]
        %v1477 = vmul.f32 %v1474, %v1476
        %v1478 = vadd.f32 %v1426, %v1477
        %v1479 = vmul.f32 %v1475, %v1476
        %v1480 = vadd.f32 %v1428, %v1479
        %v1481 = vld [vmem:[%s380 + $0xa8] sm:$0xff]
        %v1482 = vmul.f32 %v1474, %v1481
        %v1483 = vadd.f32 %v1431, %v1482
        %v1484 = vmul.f32 %v1475, %v1481
        %v1485 = vadd.f32 %v1433, %v1484
        %v1486 = vld [vmem:[%s386 + $0xa8] sm:$0xff]
        %v1487 = vmul.f32 %v1474, %v1486
        %v1488 = vadd.f32 %v1436, %v1487
        %v1489 = vmul.f32 %v1475, %v1486
        %v1490 = vadd.f32 %v1438, %v1489
        %v1491 = vld [vmem:[%s392 + $0xa8] sm:$0xff]
        %v1492 = vmul.f32 %v1474, %v1491
        %v1493 = vadd.f32 %v1441, %v1492
        %v1494 = vmul.f32 %v1475, %v1491
        %v1495 = vadd.f32 %v1443, %v1494
        %v1496 = vld [vmem:[%s398 + $0xa8] sm:$0xff]
        %v1497 = vmul.f32 %v1474, %v1496
        %v1498 = vadd.f32 %v1446, %v1497
        %v1499 = vmul.f32 %v1475, %v1496
        %v1500 = vadd.f32 %v1448, %v1499
        %v1501 = vld [vmem:[%s404 + $0xa8] sm:$0xff]
        %v1502 = vmul.f32 %v1474, %v1501
        %v1503 = vadd.f32 %v1451, %v1502
        %v1504 = vmul.f32 %v1475, %v1501
        %v1505 = vadd.f32 %v1453, %v1504
        %v1506 = vld [vmem:[%s410 + $0xa8] sm:$0xff]
        %v1507 = vmul.f32 %v1474, %v1506
        %v1508 = vadd.f32 %v1456, %v1507
        %v1509 = vmul.f32 %v1475, %v1506
        %v1510 = vadd.f32 %v1458, %v1509
        %v1511 = vld [vmem:[%s416 + $0xa8] sm:$0xff]
        %v1512 = vmul.f32 %v1474, %v1511
        %v1513 = vadd.f32 %v1461, %v1512
        %v1514 = vmul.f32 %v1475, %v1511
        %v1515 = vadd.f32 %v1463, %v1514
        %v1516 = vld [vmem:[%s422 + $0xa8] sm:$0xff]
        %v1517 = vmul.f32 %v1474, %v1516
        %v1518 = vadd.f32 %v1466, %v1517
        %v1519 = vmul.f32 %v1475, %v1516
        %v1520 = vadd.f32 %v1468, %v1519
        %v1521 = vld [vmem:[%s428 + $0xa8] sm:$0xff]
        %v1522 = vmul.f32 %v1474, %v1521
        %v1523 = vadd.f32 %v1471, %v1522
        %v1524 = vmul.f32 %v1475, %v1521
        %v1525 = vadd.f32 %v1473, %v1524
        %v1526 = vld [vmem:[%s267 + $0xb0] sm:$0xff]
        %v1527 = vld [vmem:[%s373 + $0xb0] sm:$0xff]
        %v1528 = vld [vmem:[%s276 + $0xb0] sm:$0xff]
        %v1529 = vmul.f32 %v1526, %v1528
        %v1530 = vadd.f32 %v1478, %v1529
        %v1531 = vmul.f32 %v1527, %v1528
        %v1532 = vadd.f32 %v1480, %v1531
        %v1533 = vld [vmem:[%s380 + $0xb0] sm:$0xff]
        %v1534 = vmul.f32 %v1526, %v1533
        %v1535 = vadd.f32 %v1483, %v1534
        %v1536 = vmul.f32 %v1527, %v1533
        %v1537 = vadd.f32 %v1485, %v1536
        %v1538 = vld [vmem:[%s386 + $0xb0] sm:$0xff]
        %v1539 = vmul.f32 %v1526, %v1538
        %v1540 = vadd.f32 %v1488, %v1539
        %v1541 = vmul.f32 %v1527, %v1538
        %v1542 = vadd.f32 %v1490, %v1541
        %v1543 = vld [vmem:[%s392 + $0xb0] sm:$0xff]
        %v1544 = vmul.f32 %v1526, %v1543
        %v1545 = vadd.f32 %v1493, %v1544
        %v1546 = vmul.f32 %v1527, %v1543
        %v1547 = vadd.f32 %v1495, %v1546
        %v1548 = vld [vmem:[%s398 + $0xb0] sm:$0xff]
        %v1549 = vmul.f32 %v1526, %v1548
        %v1550 = vadd.f32 %v1498, %v1549
        %v1551 = vmul.f32 %v1527, %v1548
        %v1552 = vadd.f32 %v1500, %v1551
        %v1553 = vld [vmem:[%s404 + $0xb0] sm:$0xff]
        %v1554 = vmul.f32 %v1526, %v1553
        %v1555 = vadd.f32 %v1503, %v1554
        %v1556 = vmul.f32 %v1527, %v1553
        %v1557 = vadd.f32 %v1505, %v1556
        %v1558 = vld [vmem:[%s410 + $0xb0] sm:$0xff]
        %v1559 = vmul.f32 %v1526, %v1558
        %v1560 = vadd.f32 %v1508, %v1559
        %v1561 = vmul.f32 %v1527, %v1558
        %v1562 = vadd.f32 %v1510, %v1561
        %v1563 = vld [vmem:[%s416 + $0xb0] sm:$0xff]
        %v1564 = vmul.f32 %v1526, %v1563
        %v1565 = vadd.f32 %v1513, %v1564
        %v1566 = vmul.f32 %v1527, %v1563
        %v1567 = vadd.f32 %v1515, %v1566
        %v1568 = vld [vmem:[%s422 + $0xb0] sm:$0xff]
        %v1569 = vmul.f32 %v1526, %v1568
        %v1570 = vadd.f32 %v1518, %v1569
        %v1571 = vmul.f32 %v1527, %v1568
        %v1572 = vadd.f32 %v1520, %v1571
        %v1573 = vld [vmem:[%s428 + $0xb0] sm:$0xff]
        %v1574 = vmul.f32 %v1526, %v1573
        %v1575 = vadd.f32 %v1523, %v1574
        %v1576 = vmul.f32 %v1527, %v1573
        %v1577 = vadd.f32 %v1525, %v1576
        %v1578 = vld [vmem:[%s267 + $0xb8] sm:$0xff]
        %v1579 = vld [vmem:[%s373 + $0xb8] sm:$0xff]
        %v1580 = vld [vmem:[%s276 + $0xb8] sm:$0xff]
        %v1581 = vmul.f32 %v1578, %v1580
        %v1582 = vadd.f32 %v1530, %v1581
        %v1583 = vmul.f32 %v1579, %v1580
        %v1584 = vadd.f32 %v1532, %v1583
        %v1585 = vld [vmem:[%s380 + $0xb8] sm:$0xff]
        %v1586 = vmul.f32 %v1578, %v1585
        %v1587 = vadd.f32 %v1535, %v1586
        %v1588 = vmul.f32 %v1579, %v1585
        %v1589 = vadd.f32 %v1537, %v1588
        %v1590 = vld [vmem:[%s386 + $0xb8] sm:$0xff]
        %v1591 = vmul.f32 %v1578, %v1590
        %v1592 = vadd.f32 %v1540, %v1591
        %v1593 = vmul.f32 %v1579, %v1590
        %v1594 = vadd.f32 %v1542, %v1593
        %v1595 = vld [vmem:[%s392 + $0xb8] sm:$0xff]
        %v1596 = vmul.f32 %v1578, %v1595
        %v1597 = vadd.f32 %v1545, %v1596
        %v1598 = vmul.f32 %v1579, %v1595
        %v1599 = vadd.f32 %v1547, %v1598
        %v1600 = vld [vmem:[%s398 + $0xb8] sm:$0xff]
        %v1601 = vmul.f32 %v1578, %v1600
        %v1602 = vadd.f32 %v1550, %v1601
        %v1603 = vmul.f32 %v1579, %v1600
        %v1604 = vadd.f32 %v1552, %v1603
        %v1605 = vld [vmem:[%s404 + $0xb8] sm:$0xff]
        %v1606 = vmul.f32 %v1578, %v1605
        %v1607 = vadd.f32 %v1555, %v1606
        %v1608 = vmul.f32 %v1579, %v1605
        %v1609 = vadd.f32 %v1557, %v1608
        %v1610 = vld [vmem:[%s410 + $0xb8] sm:$0xff]
        %v1611 = vmul.f32 %v1578, %v1610
        %v1612 = vadd.f32 %v1560, %v1611
        %v1613 = vmul.f32 %v1579, %v1610
        %v1614 = vadd.f32 %v1562, %v1613
        %v1615 = vld [vmem:[%s416 + $0xb8] sm:$0xff]
        %v1616 = vmul.f32 %v1578, %v1615
        %v1617 = vadd.f32 %v1565, %v1616
        %v1618 = vmul.f32 %v1579, %v1615
        %v1619 = vadd.f32 %v1567, %v1618
        %v1620 = vld [vmem:[%s422 + $0xb8] sm:$0xff]
        %v1621 = vmul.f32 %v1578, %v1620
        %v1622 = vadd.f32 %v1570, %v1621
        %v1623 = vmul.f32 %v1579, %v1620
        %v1624 = vadd.f32 %v1572, %v1623
        %v1625 = vld [vmem:[%s428 + $0xb8] sm:$0xff]
        %v1626 = vmul.f32 %v1578, %v1625
        %v1627 = vadd.f32 %v1575, %v1626
        %v1628 = vmul.f32 %v1579, %v1625
        %v1629 = vadd.f32 %v1577, %v1628
        %1630 = vst [vmem:[#allocation2] sm:$0xff] %v1582
        %1631 = vst [vmem:[%s334] sm:$0xff] %v1587
        %1632 = vst [vmem:[%s336] sm:$0xff] %v1592
        %1633 = vst [vmem:[%s338] sm:$0xff] %v1597
        %1634 = vst [vmem:[%s340] sm:$0xff] %v1602
        %1635 = vst [vmem:[%s342] sm:$0xff] %v1607
        %1636 = vst [vmem:[%s344] sm:$0xff] %v1612
        %1637 = vst [vmem:[%s346] sm:$0xff] %v1617
        %1638 = vst [vmem:[%s348] sm:$0xff] %v1622
        %1639 = vst [vmem:[%s350] sm:$0xff] %v1627
        %1640 = vst [vmem:[%s352] sm:$0xff] %v1584
        %1641 = vst [vmem:[%s354] sm:$0xff] %v1589
        %1642 = vst [vmem:[%s356] sm:$0xff] %v1594
        %1643 = vst [vmem:[%s358] sm:$0xff] %v1599
        %1644 = vst [vmem:[%s360] sm:$0xff] %v1604
        %1645 = vst [vmem:[%s362] sm:$0xff] %v1609
        %1646 = vst [vmem:[%s364] sm:$0xff] %v1614
        %1647 = vst [vmem:[%s366] sm:$0xff] %v1619
        %1648 = vst [vmem:[%s368] sm:$0xff] %v1624
        %1649 = vst [vmem:[%s370] sm:$0xff] %v1629
        %p1650 = scmp.eq.s32.totalorder %s26, 7
        // Predicated region
        $region49: #{tpu_custom_call.1} parent=31 // pred_check
          %p1651 = pneg %p1650
        $region50: #{tpu_custom_call.1} parent=31 // pred_check_branch
          %1653 = sbr.rel (%p1651) target = $region52
        $region51: #{tpu_custom_call.1} parent=31 // pred_region
          %v1654 = vld [vmem:[#allocation2] sm:$0xff]
          %v1655 = vld [vmem:[#allocation2 + $0x8] sm:$0xff]
          %v1656 = vld [vmem:[#allocation2 + $0x10] sm:$0xff]
          %v1657 = vld [vmem:[#allocation2 + $0x18] sm:$0xff]
          %v1658 = vld [vmem:[#allocation2 + $0x20] sm:$0xff]
          %v1659 = vld [vmem:[#allocation2 + $0x28] sm:$0xff]
          %v1660 = vld [vmem:[#allocation2 + $0x30] sm:$0xff]
          %v1661 = vld [vmem:[#allocation2 + $0x38] sm:$0xff]
          %v1662 = vld [vmem:[#allocation2 + $0x40] sm:$0xff]
          %v1663 = vld [vmem:[#allocation2 + $0x48] sm:$0xff]
          %v1664 = vld [vmem:[#allocation2 + $0x50] sm:$0xff]
          %v1665 = vld [vmem:[#allocation2 + $0x58] sm:$0xff]
          %v1666 = vld [vmem:[#allocation2 + $0x60] sm:$0xff]
          %v1667 = vld [vmem:[#allocation2 + $0x68] sm:$0xff]
          %v1668 = vld [vmem:[#allocation2 + $0x70] sm:$0xff]
          %v1669 = vld [vmem:[#allocation2 + $0x78] sm:$0xff]
          %v1670 = vld [vmem:[#allocation2 + $0x80] sm:$0xff]
          %v1671 = vld [vmem:[#allocation2 + $0x88] sm:$0xff]
          %v1672 = vld [vmem:[#allocation2 + $0x90] sm:$0xff]
          %v1673 = vld [vmem:[#allocation2 + $0x98] sm:$0xff]
          %v1674 = vrot.slane %v1654, 4
          %v1675 = vadd.f32 %v1654, %v1674
          %v1676 = vrot.slane %v1675, 2
          %v1677 = vadd.f32 %v1675, %v1676
          %v1678 = vrot.slane %v1677, 1
          %v1679 = vadd.f32 %v1677, %v1678
          %v1680 = vrot.slane %v1655, 4
          %v1681 = vadd.f32 %v1655, %v1680
          %v1682 = vrot.slane %v1681, 2
          %v1683 = vadd.f32 %v1681, %v1682
          %v1684 = vrot.slane %v1683, 1
          %v1685 = vadd.f32 %v1683, %v1684
          %v1686 = vrot.slane %v1656, 4
          %v1687 = vadd.f32 %v1656, %v1686
          %v1688 = vrot.slane %v1687, 2
          %v1689 = vadd.f32 %v1687, %v1688
          %v1690 = vrot.slane %v1689, 1
          %v1691 = vadd.f32 %v1689, %v1690
          %v1692 = vrot.slane %v1657, 4
          %v1693 = vadd.f32 %v1657, %v1692
          %v1694 = vrot.slane %v1693, 2
          %v1695 = vadd.f32 %v1693, %v1694
          %v1696 = vrot.slane %v1695, 1
          %v1697 = vadd.f32 %v1695, %v1696
          %v1698 = vrot.slane %v1658, 4
          %v1699 = vadd.f32 %v1658, %v1698
          %v1700 = vrot.slane %v1699, 2
          %v1701 = vadd.f32 %v1699, %v1700
          %v1702 = vrot.slane %v1701, 1
          %v1703 = vadd.f32 %v1701, %v1702
          %v1704 = vrot.slane %v1659, 4
          %v1705 = vadd.f32 %v1659, %v1704
          %v1706 = vrot.slane %v1705, 2
          %v1707 = vadd.f32 %v1705, %v1706
          %v1708 = vrot.slane %v1707, 1
          %v1709 = vadd.f32 %v1707, %v1708
          %v1710 = vrot.slane %v1660, 4
          %v1711 = vadd.f32 %v1660, %v1710
          %v1712 = vrot.slane %v1711, 2
          %v1713 = vadd.f32 %v1711, %v1712
          %v1714 = vrot.slane %v1713, 1
          %v1715 = vadd.f32 %v1713, %v1714
          %v1716 = vrot.slane %v1661, 4
          %v1717 = vadd.f32 %v1661, %v1716
          %v1718 = vrot.slane %v1717, 2
          %v1719 = vadd.f32 %v1717, %v1718
          %v1720 = vrot.slane %v1719, 1
          %v1721 = vadd.f32 %v1719, %v1720
          %v1722 = vrot.slane %v1662, 4
          %v1723 = vadd.f32 %v1662, %v1722
          %v1724 = vrot.slane %v1723, 2
          %v1725 = vadd.f32 %v1723, %v1724
          %v1726 = vrot.slane %v1725, 1
          %v1727 = vadd.f32 %v1725, %v1726
          %v1728 = vrot.slane %v1663, 4
          %v1729 = vadd.f32 %v1663, %v1728
          %v1730 = vrot.slane %v1729, 2
          %v1731 = vadd.f32 %v1729, %v1730
          %v1732 = vrot.slane %v1731, 1
          %v1733 = vadd.f32 %v1731, %v1732
          %v1734 = vrot.slane %v1664, 4
          %v1735 = vadd.f32 %v1664, %v1734
          %v1736 = vrot.slane %v1735, 2
          %v1737 = vadd.f32 %v1735, %v1736
          %v1738 = vrot.slane %v1737, 1
          %v1739 = vadd.f32 %v1737, %v1738
          %v1740 = vrot.slane %v1665, 4
          %v1741 = vadd.f32 %v1665, %v1740
          %v1742 = vrot.slane %v1741, 2
          %v1743 = vadd.f32 %v1741, %v1742
          %v1744 = vrot.slane %v1743, 1
          %v1745 = vadd.f32 %v1743, %v1744
          %v1746 = vrot.slane %v1666, 4
          %v1747 = vadd.f32 %v1666, %v1746
          %v1748 = vrot.slane %v1747, 2
          %v1749 = vadd.f32 %v1747, %v1748
          %v1750 = vrot.slane %v1749, 1
          %v1751 = vadd.f32 %v1749, %v1750
          %v1752 = vrot.slane %v1667, 4
          %v1753 = vadd.f32 %v1667, %v1752
          %v1754 = vrot.slane %v1753, 2
          %v1755 = vadd.f32 %v1753, %v1754
          %v1756 = vrot.slane %v1755, 1
          %v1757 = vadd.f32 %v1755, %v1756
          %v1758 = vrot.slane %v1668, 4
          %v1759 = vadd.f32 %v1668, %v1758
          %v1760 = vrot.slane %v1759, 2
          %v1761 = vadd.f32 %v1759, %v1760
          %v1762 = vrot.slane %v1761, 1
          %v1763 = vadd.f32 %v1761, %v1762
          %v1764 = vrot.slane %v1669, 4
          %v1765 = vadd.f32 %v1669, %v1764
          %v1766 = vrot.slane %v1765, 2
          %v1767 = vadd.f32 %v1765, %v1766
          %v1768 = vrot.slane %v1767, 1
          %v1769 = vadd.f32 %v1767, %v1768
          %v1770 = vrot.slane %v1670, 4
          %v1771 = vadd.f32 %v1670, %v1770
          %v1772 = vrot.slane %v1771, 2
          %v1773 = vadd.f32 %v1771, %v1772
          %v1774 = vrot.slane %v1773, 1
          %v1775 = vadd.f32 %v1773, %v1774
          %v1776 = vrot.slane %v1671, 4
          %v1777 = vadd.f32 %v1671, %v1776
          %v1778 = vrot.slane %v1777, 2
          %v1779 = vadd.f32 %v1777, %v1778
          %v1780 = vrot.slane %v1779, 1
          %v1781 = vadd.f32 %v1779, %v1780
          %v1782 = vrot.slane %v1672, 4
          %v1783 = vadd.f32 %v1672, %v1782
          %v1784 = vrot.slane %v1783, 2
          %v1785 = vadd.f32 %v1783, %v1784
          %v1786 = vrot.slane %v1785, 1
          %v1787 = vadd.f32 %v1785, %v1786
          %v1788 = vrot.slane %v1673, 4
          %v1789 = vadd.f32 %v1673, %v1788
          %v1790 = vrot.slane %v1789, 2
          %v1791 = vadd.f32 %v1789, %v1790
          %v1792 = vrot.slane %v1791, 1
          %v1793 = vadd.f32 %v1791, %v1792
          %vm1814 = vcmask 1041409
          %v1815 = vsel %vm1814, %v1685, %v1679
          %vm1816 = vcmask 1042434
          %v1817 = vsel %vm1816, %v1691, %v1815
          %vm1818 = vcmask 1043459
          %v1819 = vsel %vm1818, %v1697, %v1817
          %vm1820 = vcmask 1044484
          %v1821 = vsel %vm1820, %v1703, %v1819
          %vm1822 = vcmask 1045509
          %v1823 = vsel %vm1822, %v1709, %v1821
          %vm1824 = vcmask 1046534
          %v1825 = vsel %vm1824, %v1715, %v1823
          %vm1826 = vcmask 1047559
          %v1827 = vsel %vm1826, %v1721, %v1825
          %v1828 = vsel %vm1814, %v1733, %v1727
          %v1829 = vsel %vm1814, %v1745, %v1739
          %v1830 = vsel %vm1816, %v1751, %v1829
          %v1831 = vsel %vm1818, %v1757, %v1830
          %v1832 = vsel %vm1820, %v1763, %v1831
          %v1833 = vsel %vm1822, %v1769, %v1832
          %v1834 = vsel %vm1824, %v1775, %v1833
          %v1835 = vsel %vm1826, %v1781, %v1834
          %v1836 = vsel %vm1814, %v1793, %v1787
          %1841 = vadd.xlane.f32.xlu0 %v1827
          %v1842 = vpop.xlane.xlu0 %1841
          %vm1843 = vcmask 1041408
          %v1844 = vsel %vm1843, %v1828, 0.0
          %1845 = vadd.xlane.f32.xlu0 %v1844
          %v1846 = vpop.xlane.xlu0 %1845
          %1847 = vadd.xlane.f32.xlu0 %v1835
          %v1848 = vpop.xlane.xlu0 %1847
          %v1849 = vsel %vm1843, %v1836, 0.0
          %1850 = vadd.xlane.f32.xlu0 %v1849
          %v1851 = vpop.xlane.xlu0 %1850
          %p1852 = scmp.eq.s32.totalorder %s25, 0
          %s1853 = scalar_select %p1852, 1, 0
          %s1854 = scvt.s32.f32 %s1853
          %v1855 = vld [vmem:[#allocation8] sm:$0x1]
          %v1856 = vstv %s1854
          %v1857 = vmul.f32 %v1856, %v1855
          %v1859 = vlaneseq
          %v1860 = vshrl.u32 %v1859, 7
          %v1861 = vsub.s32 0, %v1860
          %v1862 = vrot.slane %v1857, %v1861
          %1864 = vbcast.lane.b32.xlu0 %v1862, 256
          %v1865 = vpop.permute.xlu0 %1864
          %s1867 = sor.u32 256, 8
          %1868 = vbcast.lane.b32.xlu0 %v1862, %s1867
          %v1869 = vpop.permute.xlu0 %1868
          %v1872 = vadd.f32 %v1842, %v1865
          %v1873 = vadd.f32 %v1846, %v1869
          %v1874 = vadd.f32 %v1848, %v1865
          %v1875 = vadd.f32 %v1851, %v1869
          %1880 = vset.pattern.permute.xlu0 0
          %1881 = vperm.xlu0 %1880, %v1872
          %v1882 = vpop.permute.xlu0 %1881
          %1883 = vset.pattern.permute.xlu0 0
          %1884 = vperm.xlu0 %1883, %v1873
          %v1885 = vpop.permute.xlu0 %1884
          %1886 = vset.pattern.permute.xlu0 0
          %1887 = vperm.xlu0 %1886, %v1874
          %v1888 = vpop.permute.xlu0 %1887
          %1889 = vset.pattern.permute.xlu0 0
          %1890 = vperm.xlu0 %1889, %v1875
          %v1891 = vpop.permute.xlu0 %1890
          %v1892 = vlaneseq
          %v1893 = vand.u32 %v1892, 127
          %v1894 = vlaneseq
          %v1895 = vshrl.u32 %v1894, 7
          %v1896 = vsub.s32 %v1893, %v1895
          %v1897 = vrot.slane %v1882, %v1896
          %v1898 = vadd.s32 %v1893, 4294967288
          %v1899 = vlaneseq
          %v1900 = vshrl.u32 %v1899, 7
          %v1901 = vsub.s32 %v1898, %v1900
          %v1902 = vrot.slane %v1885, %v1901
          %vm1903 = vcmask 130112
          %v1904 = vsel %vm1903, %v1902, %v1897
          %v1905 = vlaneseq
          %v1906 = vshrl.u32 %v1905, 7
          %v1907 = vsub.s32 %v1893, %v1906
          %v1908 = vrot.slane %v1888, %v1907
          %v1909 = vlaneseq
          %v1910 = vshrl.u32 %v1909, 7
          %v1911 = vsub.s32 %v1898, %v1910
          %v1912 = vrot.slane %v1891, %v1911
          %v1913 = vsel %vm1903, %v1912, %v1908
          %v1914 = vsel %vm1814, %v1913, %v1904
          %vm1916 = vcmask 74752
          %1917 = vst.msk [vmem:[#allocation9] sm:$0x3] %vm1916, %v1914
        $region52: #{tpu_custom_call.1} parent=31 // pred_fallthru
          _
        // Predicated region
        $region53: #{tpu_custom_call.1} parent=31 // pred_check
          %p1918 = pneg %p127
        $region54: #{tpu_custom_call.1} parent=31 // pred_check_branch
          %1920 = sbr.rel (%p1918) target = $region56
        $region55: #{tpu_custom_call.1} parent=31 // pred_region
          %s1922 = ssub.s32 32, 32
          %1923 = vsyncadd [#allocation5], %s1922
          %s1925 = sshll.u32 [#allocation9], 4
          %s1926 = int_to_ptr.vmem [resolvable:$true] %s1925
          %1928 = dma.vmem_to_hbm [thread:$0]  %s1926, 32, %s3, [#allocation5]
        $region56: #{tpu_custom_call.1} parent=31 // pred_fallthru
          _
        // Predicated region
        $region57: #{tpu_custom_call.1} parent=31 // pred_check
          %p1929 = pneg %p127
        $region58: #{tpu_custom_call.1} parent=31 // pred_check_branch
          %1931 = sbr.rel (%p1929) target = $region60
        $region59: #{tpu_custom_call.1} parent=31 // pred_region
          %1932 = dma.done [#allocation5], 32
        $region60: #{tpu_custom_call.1} parent=31 // pred_fallthru
          _
      $region32: #{tpu_custom_call.1} parent=5 // pred_fallthru
        _
      %p1933 = scmp.le.s32.totalorder 2, %s16
      // Predicated region
      $region61: #{tpu_custom_call.1} parent=5 // pred_check
        %p1934 = pneg %p1933
      $region62: #{tpu_custom_call.1} parent=5 // pred_check_branch
        %1936 = sbr.rel (%p1934) target = $region64
      $region63: #{tpu_custom_call.1} parent=5 // pred_region
        %s1937 = ssub.s32 %s16, 2
      $region64: #{tpu_custom_call.1} parent=5 // pred_fallthru
        _
    $region6: #{tpu_custom_call.1} parent=1 // loop_footer
      %s20 = sadd.s32 1, %s16
    $region7: #{tpu_custom_call.1} parent=1 // loop_footer_branch
      %15 = sbr.rel target = $region3
    $region8: #{tpu_custom_call.1} parent=1 // loop_exit
      _
    %1938 = vsyncpa [#allocation4], 1
    %s1939 = scalar_lea.sflag [#allocation4], 1
    %1940 = vsyncpa %s1939, 1
    %1941 = vsyncpa [#allocation7], 1
    %s1942 = scalar_lea.sflag [#allocation7], 1
    %1943 = vsyncpa %s1942, 1
    %1944 = vsyncpa [#allocation5], 1
    %s1945 = scalar_lea.sflag [#allocation5], 1
    %1946 = vsyncpa %s1945, 1

</llo_original>
